<compile_context>
chip_gen: v5e
topology: v5e:2x2
jax: 0.10.0
libtpu: 0.0.40
codegen_flags: <defaults>
</compile_context>

<pallas_src>
import functools

import numpy as np
import jax
import jax.numpy as jnp
from jax import lax
from jax.experimental import pallas as pl
from jax.experimental.pallas import tpu as pltpu

EPS = 1e-5  # PyTorch BatchNorm default eps


# ------------------------------ Pallas kernel -------------------------------

def _down_block_kernel(x_ref, m_ref, w1_ref, w2_ref, wp_ref,
                       b1_ref, b2_ref, bp_ref,
                       g1_ref, be1_ref, g2_ref, be2_ref,
                       res_ref, out_ref, act_ref, stk_ref,
                       *, n, cout, h, w, margin):
    f32 = jnp.float32
    wpad = w + 2
    ipad = (h + 2) * wpad            # columns per padded image
    lp = n * ipad                    # total padded columns
    base = margin
    ck = act_ref.shape[0]            # contraction rows per tap (mult. of 8)
    inv_npos = 1.0 / float(n * h * w)

    # ---- one-time setup: zero the end margins, load padded input + coords ----
    act_ref[:, 0:margin] = jnp.zeros((ck, margin), f32)
    act_ref[:, base + lp:base + lp + margin] = jnp.zeros((ck, margin), f32)
    act_ref[:, base:base + lp] = x_ref[...]

    mask = m_ref[...]                # (cout, lp): 1 at real positions, 0 at halo

    # conv1 bias + per-image condition projection, lane-broadcast in-kernel
    col = lax.broadcasted_iota(jnp.int32, (cout, lp), 1)
    b1cols = jnp.broadcast_to(b1_ref[:, 0:1], (cout, lp))
    for i in range(1, n):
        b1cols = jnp.where(col >= i * ipad,
                           jnp.broadcast_to(b1_ref[:, i:i + 1], (cout, lp)),
                           b1cols)

    offs3 = [dh * wpad + dw for dh in (-1, 0, 1) for dw in (-1, 0, 1)]  # 3x3
    offs2 = [ky * wpad + kx for ky in (0, 1) for kx in (0, 1)]          # 2x2

    def conv(w_ref, offs):
        # im2col: shifted (unmasked — the halo holds real zeros) tap windows
        # stacked along the contraction axis, then ONE MXU matmul.
        for t, o in enumerate(offs):
            stk_ref[t * ck:(t + 1) * ck, :] = act_ref[:, base + o:base + o + lp]
        nt = len(offs)
        return jnp.dot(w_ref[...], stk_ref[0:nt * ck, :],
                       preferred_element_type=f32)

    def bn_silu(y, g_ref, be_ref):
        # single-pass training-mode batch statistics: halo columns of y are 0
        # and are excluded via the 1/npos normalizer.
        s = jnp.sum(y, axis=1, keepdims=True)
        ss = jnp.sum(y * y, axis=1, keepdims=True)
        mean = s * inv_npos
        var = ss * inv_npos - mean * mean
        scale = g_ref[...] * lax.rsqrt(var + EPS)
        shift = be_ref[...] - mean * scale
        yn = y * scale + shift
        # SiLU = x*sigmoid(x) = h + h*tanh(h) with h = x/2 ; tanh is an EUP op
        half = 0.5 * yn
        return half + half * jnp.tanh(half)

    # ---- stage 1: conv1 + (bias + condition) -> BN1 -> SiLU ----
    y1 = (conv(w1_ref, offs3) + b1cols) * mask
    r1 = bn_silu(y1, g1_ref, be1_ref) * mask
    act_ref[0:cout, base:base + lp] = r1

    # ---- stage 2: conv2 + bias -> BN2 -> SiLU  (residual output) ----
    y2 = (conv(w2_ref, offs3) + b2_ref[...]) * mask
    r2 = bn_silu(y2, g2_ref, be2_ref) * mask
    res_ref[...] = r2
    act_ref[0:cout, base:base + lp] = r2

    # ---- stage 3: pooling conv (k=2, s=2, p=0) ----
    # Every kept (stride-2) output column reads only real positions of its own
    # image, so it is exact; the wrapper slices out the kept positions.
    out_ref[...] = conv(wp_ref, offs2) + bp_ref[...]


# ------------------------------- JAX wrapper ---------------------------------

def down_block_forward(params, x_nchw, condition):
    """DownBlock.forward.  Returns (out, res) in NCHW like the PyTorch module."""
    n, cin, h, w = x_nchw.shape
    cout = params["conv1_w"].shape[0]
    assert cin <= cout, "row layout assumes in_channels <= out_channels"
    assert h % 2 == 0 and w % 2 == 0, "pooling here hard-codes k=2, s=2, p=0"
    f32 = jnp.float32
    hp_, wp_ = h + 2, w + 2
    ipad = hp_ * wp_
    lp = n * ipad
    ck = -(-(cout + 2) // 8) * 8          # contraction rows per tap (mult. of 8)
    margin = 128                          # lane-aligned scratch margin

    # ---- initial activation in per-image zero-halo layout: (ck, n*ipad) ----
    xp = jnp.pad(x_nchw.astype(f32), ((0, 0), (0, 0), (1, 1), (1, 1)))
    x_rows = jnp.transpose(xp, (1, 0, 2, 3)).reshape(cin, lp)
    cy = jnp.broadcast_to(jnp.linspace(0.0, 1.0, h)[:, None], (h, w))
    cx = jnp.broadcast_to(jnp.linspace(0.0, 1.0, w)[None, :], (h, w))
    coords = jnp.pad(jnp.stack([cy, cx]), ((0, 0), (1, 1), (1, 1)))   # (2,hp,wp)
    coord_rows = jnp.tile(coords.reshape(2, ipad).astype(f32), (1, n))
    x_in = jnp.zeros((ck, lp), f32)
    x_in = x_in.at[:cin].set(x_rows)
    x_in = x_in.at[cout:cout + 2].set(coord_rows)

    # interior mask: 1 at real image positions, 0 at the halo
    m_img = jnp.pad(jnp.ones((h, w), f32), ((1, 1), (1, 1)))
    mask = jnp.broadcast_to(jnp.tile(m_img.reshape(1, ipad), (1, n)), (cout, lp))

    # weights packed per tap into ck contraction rows -> (cout, ntaps*ck);
    # real channels at rows [0, cin_real), coord channels at [cout, cout+2).
    def pack(w_oihw, cin_real):
        co, _, kh, kw = w_oihw.shape
        wt = jnp.transpose(w_oihw, (2, 3, 0, 1)).reshape(kh * kw, co, -1)
        out = jnp.zeros((kh * kw, co, ck), f32)
        out = out.at[:, :, :cin_real].set(wt[:, :, :cin_real])
        out = out.at[:, :, cout:cout + 2].set(wt[:, :, cin_real:cin_real + 2])
        return jnp.transpose(out, (1, 0, 2)).reshape(co, kh * kw * ck)

    w1p = pack(params["conv1_w"], cin)
    w2p = pack(params["conv2_w"], cout)
    wpp = pack(params["pool_w"], cout)

    # conv1 bias + condition projection as a small (cout, n) matrix
    cond = condition @ params["cond_w"].T + params["cond_b"]        # (n, cout)
    b1 = params["conv1_b"][:, None] + cond.T                        # (cout, n)
    colv = lambda v: v[:, None]                                     # (C,) -> (C,1)

    res_k, out_k = pl.pallas_call(
        functools.partial(_down_block_kernel, n=n, cout=cout, h=h, w=w,
                          margin=margin),
        out_shape=(jax.ShapeDtypeStruct((cout, lp), f32),
                   jax.ShapeDtypeStruct((cout, lp), f32)),
        in_specs=[pl.BlockSpec(memory_space=pltpu.MemorySpace.VMEM)
                  for _ in range(12)],
        out_specs=(pl.BlockSpec(memory_space=pltpu.MemorySpace.VMEM),
                   pl.BlockSpec(memory_space=pltpu.MemorySpace.VMEM)),
        scratch_shapes=[pltpu.VMEM((ck, lp + 2 * margin), f32),   # activation
                        pltpu.VMEM((9 * ck, lp), f32)],            # im2col stack
    )(x_in, mask, w1p, w2p, wpp, b1,
      colv(params["conv2_b"]), colv(params["pool_b"]),
      colv(params["bn1_g"]), colv(params["bn1_b"]),
      colv(params["bn2_g"]), colv(params["bn2_b"]))

    # layout plumbing only: drop the halo / keep the stride-2 pooled positions
    res = res_k.reshape(cout, n, hp_, wp_).transpose(1, 0, 2, 3)[:, :, 1:h + 1, 1:w + 1]
    out = out_k.reshape(cout, n, hp_, wp_).transpose(1, 0, 2, 3)[:, :, 1:h + 1:2, 1:w + 1:2]
    return out, res


# ------------------------------ parameter init -------------------------------

def init_params(key, in_channels, out_channels, cond_dim, n_break=2):
    ks = jax.random.split(key, 8)
    c1_in = in_channels + n_break
    c2_in = out_channels + n_break
    f32 = jnp.float32
    return {
        "conv1_w": 0.1 * jax.random.normal(ks[0], (out_channels, c1_in, 3, 3), f32),
        "conv1_b": 0.1 * jax.random.normal(ks[1], (out_channels,), f32),
        "conv2_w": 0.1 * jax.random.normal(ks[2], (out_channels, c2_in, 3, 3), f32),
        "conv2_b": 0.1 * jax.random.normal(ks[3], (out_channels,), f32),
        "pool_w": 0.1 * jax.random.normal(ks[4], (out_channels, c2_in, 2, 2), f32),
        "pool_b": 0.1 * jax.random.normal(ks[5], (out_channels,), f32),
        "cond_w": 0.1 * jax.random.normal(ks[6], (out_channels, cond_dim), f32),
        "cond_b": 0.1 * jax.random.normal(ks[7], (out_channels,), f32),
        # PyTorch BatchNorm default affine init
        "bn1_g": jnp.ones((out_channels,), f32),
        "bn1_b": jnp.zeros((out_channels,), f32),
        "bn2_g": jnp.ones((out_channels,), f32),
        "bn2_b": jnp.zeros((out_channels,), f32),
    }


# ------------------------- pure-JAX reference (NCHW) -------------------------

def reference_forward(params, x, condition):
    def add_coords(t):
        n, _, h, w = t.shape
        ch = jnp.broadcast_to(jnp.linspace(0., 1., h)[None, None, :, None],
                              (n, 1, h, w))
        cw = jnp.broadcast_to(jnp.linspace(0., 1., w)[None, None, None, :],
                              (n, 1, h, w))
        return jnp.concatenate([t, ch, cw], axis=1)

    def conv(t, wgt, b, stride, pad):
        y = lax.conv_general_dilated(
            t, wgt, (stride, stride), [(pad, pad), (pad, pad)],
            dimension_numbers=("NCHW", "OIHW", "NCHW"))
        return y + b[None, :, None, None]

    def bn_silu(t, g, be):
        mean = jnp.mean(t, axis=(0, 2, 3), keepdims=True)
        var = jnp.mean(jnp.square(t - mean), axis=(0, 2, 3), keepdims=True)
        y = (t - mean) * lax.rsqrt(var + EPS) * g[None, :, None, None] \
            + be[None, :, None, None]
        return y * (1.0 / (1.0 + jnp.exp(-y)))

    r = add_coords(x)
    r = conv(r, params["conv1_w"], params["conv1_b"], 1, 1)
    cond = condition @ params["cond_w"].T + params["cond_b"]
    r = r + cond[:, :, None, None]
    r = bn_silu(r, params["bn1_g"], params["bn1_b"])
    r = add_coords(r)
    r = conv(r, params["conv2_w"], params["conv2_b"], 1, 1)
    r = bn_silu(r, params["bn2_g"], params["bn2_b"])
    o = add_coords(r)
    o = conv(o, params["pool_w"], params["pool_b"], 2, 0)
    return o, r


# ----------------------------------- main -------------------------------------

if __name__ == "__main__":
    key = jax.random.PRNGKey(0)
    kx, kc, kp = jax.random.split(key, 3)

    N, CIN, H, W = 2, 4, 16, 16
    COUT, COND_DIM = 8, 8

    x = jax.random.normal(kx, (N, CIN, H, W), jnp.float32)
    condition = jax.random.normal(kc, (N, COND_DIM), jnp.float32)
    params = init_params(kp, CIN, COUT, COND_DIM)

    fwd = jax.jit(functools.partial(down_block_forward, params))
    out, res = fwd(x, condition)
    jax.block_until_ready((out, res))

    ref_out, ref_res = reference_forward(params, x, condition)
    np.testing.assert_allclose(np.asarray(out), np.asarray(ref_out),
                               rtol=5e-4, atol=5e-4)
    np.testing.assert_allclose(np.asarray(res), np.asarray(ref_res),
                               rtol=5e-4, atol=5e-4)

    assert out.shape == (N, COUT, H // 2, W // 2)
    assert res.shape == (N, COUT, H, W)
    print("KERNEL_OK")
</pallas_src>

<mosaic_0001>
module attributes {stable_mosaic.version = 11 : i64} {
  func.func @_down_block_kernel(%arg0: memref<16x648xf32, #tpu.memory_space<vmem>>, %arg1: memref<8x648xf32, #tpu.memory_space<vmem>>, %arg2: memref<8x144xf32, #tpu.memory_space<vmem>>, %arg3: memref<8x144xf32, #tpu.memory_space<vmem>>, %arg4: memref<8x64xf32, #tpu.memory_space<vmem>>, %arg5: memref<8x2xf32, #tpu.memory_space<vmem>>, %arg6: memref<8x1xf32, #tpu.memory_space<vmem>>, %arg7: memref<8x1xf32, #tpu.memory_space<vmem>>, %arg8: memref<8x1xf32, #tpu.memory_space<vmem>>, %arg9: memref<8x1xf32, #tpu.memory_space<vmem>>, %arg10: memref<8x1xf32, #tpu.memory_space<vmem>>, %arg11: memref<8x1xf32, #tpu.memory_space<vmem>>, %arg12: memref<8x648xf32, #tpu.memory_space<vmem>>, %arg13: memref<8x648xf32, #tpu.memory_space<vmem>>, %arg14: memref<16x904xf32, #tpu.memory_space<vmem>>, %arg15: memref<144x648xf32, #tpu.memory_space<vmem>>) attributes {dimension_semantics = [], scalar_prefetch = 0 : i64, scratch_operands = 2 : i64, tpu.core_type = #tpu.core_type<tc>} {
    %cst = arith.constant 0.000000e+00 : f32
    %0 = vector.broadcast %cst : f32 to vector<16x128xf32>
    %c0 = arith.constant 0 : index
    %c0_0 = arith.constant 0 : index
    %1 = vector.load %arg14[%c0, %c0_0] : memref<16x904xf32, #tpu.memory_space<vmem>>, vector<16x128xf32>
    tpu.vector_store %arg14[%c0, %c0_0], %0 {strides = array<i32>} : memref<16x904xf32, #tpu.memory_space<vmem>>, vector<16x128xf32>,
    %cst_1 = arith.constant 0.000000e+00 : f32
    %2 = vector.broadcast %cst_1 : f32 to vector<16x128xf32>
    %c0_2 = arith.constant 0 : index
    %c776 = arith.constant 776 : index
    %3 = vector.load %arg14[%c0_2, %c776] : memref<16x904xf32, #tpu.memory_space<vmem>>, vector<16x128xf32>
    tpu.vector_store %arg14[%c0_2, %c776], %2 {strides = array<i32>} : memref<16x904xf32, #tpu.memory_space<vmem>>, vector<16x128xf32>,
    %c0_3 = arith.constant 0 : index
    %c0_4 = arith.constant 0 : index
    %4 = vector.load %arg0[%c0_3, %c0_4] : memref<16x648xf32, #tpu.memory_space<vmem>>, vector<16x648xf32>
    %c0_5 = arith.constant 0 : index
    %c128 = arith.constant 128 : index
    %5 = vector.load %arg14[%c0_5, %c128] : memref<16x904xf32, #tpu.memory_space<vmem>>, vector<16x648xf32>
    tpu.vector_store %arg14[%c0_5, %c128], %4 {strides = array<i32>} : memref<16x904xf32, #tpu.memory_space<vmem>>, vector<16x648xf32>,
    %c0_6 = arith.constant 0 : index
    %c0_7 = arith.constant 0 : index
    %6 = vector.load %arg1[%c0_6, %c0_7] : memref<8x648xf32, #tpu.memory_space<vmem>>, vector<8x648xf32>
    %7 = tpu.iota {dimensions = array<i32: 1>} : vector<8x648xi32>
    %c0_8 = arith.constant 0 : index
    %c0_9 = arith.constant 0 : index
    %8 = vector.load %arg5[%c0_8, %c0_9] : memref<8x2xf32, #tpu.memory_space<vmem>>, vector<8x1xf32>
    %9 = vector.shape_cast %8 : vector<8x1xf32> to vector<8x1xf32>
    %10 = vector.broadcast %9 : vector<8x1xf32> to vector<8x648xf32>
    %c324_i32 = arith.constant 324 : i32
    %11 = vector.broadcast %c324_i32 : i32 to vector<8x648xi32>
    %12 = arith.cmpi sge, %7, %11 : vector<8x648xi32>
    %c0_10 = arith.constant 0 : index
    %c1 = arith.constant 1 : index
    %13 = vector.load %arg5[%c0_10, %c1] : memref<8x2xf32, #tpu.memory_space<vmem>>, vector<8x1xf32>
    %14 = vector.shape_cast %13 : vector<8x1xf32> to vector<8x1xf32>
    %15 = vector.broadcast %14 : vector<8x1xf32> to vector<8x648xf32>
    %16 = arith.select %12, %15, %10 : vector<8x648xi1>, vector<8x648xf32>
    %c0_11 = arith.constant 0 : index
    %c109 = arith.constant 109 : index
    %17 = vector.load %arg14[%c0_11, %c109] : memref<16x904xf32, #tpu.memory_space<vmem>>, vector<16x648xf32>
    %c0_12 = arith.constant 0 : index
    %c0_13 = arith.constant 0 : index
    %18 = vector.load %arg15[%c0_12, %c0_13] : memref<144x648xf32, #tpu.memory_space<vmem>>, vector<16x648xf32>
    tpu.vector_store %arg15[%c0_12, %c0_13], %17 {strides = array<i32>} : memref<144x648xf32, #tpu.memory_space<vmem>>, vector<16x648xf32>,
    %c0_14 = arith.constant 0 : index
    %c110 = arith.constant 110 : index
    %19 = vector.load %arg14[%c0_14, %c110] : memref<16x904xf32, #tpu.memory_space<vmem>>, vector<16x648xf32>
    %c16 = arith.constant 16 : index
    %c0_15 = arith.constant 0 : index
    %20 = vector.load %arg15[%c16, %c0_15] : memref<144x648xf32, #tpu.memory_space<vmem>>, vector<16x648xf32>
    tpu.vector_store %arg15[%c16, %c0_15], %19 {strides = array<i32>} : memref<144x648xf32, #tpu.memory_space<vmem>>, vector<16x648xf32>,
    %c0_16 = arith.constant 0 : index
    %c111 = arith.constant 111 : index
    %21 = vector.load %arg14[%c0_16, %c111] : memref<16x904xf32, #tpu.memory_space<vmem>>, vector<16x648xf32>
    %c32 = arith.constant 32 : index
    %c0_17 = arith.constant 0 : index
    %22 = vector.load %arg15[%c32, %c0_17] : memref<144x648xf32, #tpu.memory_space<vmem>>, vector<16x648xf32>
    tpu.vector_store %arg15[%c32, %c0_17], %21 {strides = array<i32>} : memref<144x648xf32, #tpu.memory_space<vmem>>, vector<16x648xf32>,
    %c0_18 = arith.constant 0 : index
    %c127 = arith.constant 127 : index
    %23 = vector.load %arg14[%c0_18, %c127] : memref<16x904xf32, #tpu.memory_space<vmem>>, vector<16x648xf32>
    %c48 = arith.constant 48 : index
    %c0_19 = arith.constant 0 : index
    %24 = vector.load %arg15[%c48, %c0_19] : memref<144x648xf32, #tpu.memory_space<vmem>>, vector<16x648xf32>
    tpu.vector_store %arg15[%c48, %c0_19], %23 {strides = array<i32>} : memref<144x648xf32, #tpu.memory_space<vmem>>, vector<16x648xf32>,
    %c0_20 = arith.constant 0 : index
    %c128_21 = arith.constant 128 : index
    %25 = vector.load %arg14[%c0_20, %c128_21] : memref<16x904xf32, #tpu.memory_space<vmem>>, vector<16x648xf32>
    %c64 = arith.constant 64 : index
    %c0_22 = arith.constant 0 : index
    %26 = vector.load %arg15[%c64, %c0_22] : memref<144x648xf32, #tpu.memory_space<vmem>>, vector<16x648xf32>
    tpu.vector_store %arg15[%c64, %c0_22], %25 {strides = array<i32>} : memref<144x648xf32, #tpu.memory_space<vmem>>, vector<16x648xf32>,
    %c0_23 = arith.constant 0 : index
    %c129 = arith.constant 129 : index
    %27 = vector.load %arg14[%c0_23, %c129] : memref<16x904xf32, #tpu.memory_space<vmem>>, vector<16x648xf32>
    %c80 = arith.constant 80 : index
    %c0_24 = arith.constant 0 : index
    %28 = vector.load %arg15[%c80, %c0_24] : memref<144x648xf32, #tpu.memory_space<vmem>>, vector<16x648xf32>
    tpu.vector_store %arg15[%c80, %c0_24], %27 {strides = array<i32>} : memref<144x648xf32, #tpu.memory_space<vmem>>, vector<16x648xf32>,
    %c0_25 = arith.constant 0 : index
    %c145 = arith.constant 145 : index
    %29 = vector.load %arg14[%c0_25, %c145] : memref<16x904xf32, #tpu.memory_space<vmem>>, vector<16x648xf32>
    %c96 = arith.constant 96 : index
    %c0_26 = arith.constant 0 : index
    %30 = vector.load %arg15[%c96, %c0_26] : memref<144x648xf32, #tpu.memory_space<vmem>>, vector<16x648xf32>
    tpu.vector_store %arg15[%c96, %c0_26], %29 {strides = array<i32>} : memref<144x648xf32, #tpu.memory_space<vmem>>, vector<16x648xf32>,
    %c0_27 = arith.constant 0 : index
    %c146 = arith.constant 146 : index
    %31 = vector.load %arg14[%c0_27, %c146] : memref<16x904xf32, #tpu.memory_space<vmem>>, vector<16x648xf32>
    %c112 = arith.constant 112 : index
    %c0_28 = arith.constant 0 : index
    %32 = vector.load %arg15[%c112, %c0_28] : memref<144x648xf32, #tpu.memory_space<vmem>>, vector<16x648xf32>
    tpu.vector_store %arg15[%c112, %c0_28], %31 {strides = array<i32>} : memref<144x648xf32, #tpu.memory_space<vmem>>, vector<16x648xf32>,
    %c0_29 = arith.constant 0 : index
    %c147 = arith.constant 147 : index
    %33 = vector.load %arg14[%c0_29, %c147] : memref<16x904xf32, #tpu.memory_space<vmem>>, vector<16x648xf32>
    %c128_30 = arith.constant 128 : index
    %c0_31 = arith.constant 0 : index
    %34 = vector.load %arg15[%c128_30, %c0_31] : memref<144x648xf32, #tpu.memory_space<vmem>>, vector<16x648xf32>
    tpu.vector_store %arg15[%c128_30, %c0_31], %33 {strides = array<i32>} : memref<144x648xf32, #tpu.memory_space<vmem>>, vector<16x648xf32>,
    %c0_32 = arith.constant 0 : index
    %c0_33 = arith.constant 0 : index
    %35 = vector.load %arg2[%c0_32, %c0_33] : memref<8x144xf32, #tpu.memory_space<vmem>>, vector<8x144xf32>
    %c0_34 = arith.constant 0 : index
    %c0_35 = arith.constant 0 : index
    %36 = vector.load %arg15[%c0_34, %c0_35] : memref<144x648xf32, #tpu.memory_space<vmem>>, vector<144x648xf32>
    %cst_36 = arith.constant dense<0.000000e+00> : vector<8x648xf32>
    %37 = tpu.matmul %35, %36, %cst_36 {dimension_numbers = #tpu.dot_dimension_numbers<[1], [0], [0], [1], [0, 0, 1, 1], [], []>} : vector<8x144xf32>, vector<144x648xf32>, vector<8x648xf32> -> vector<8x648xf32>
    %38 = arith.addf %37, %16 : vector<8x648xf32>
    %39 = arith.mulf %38, %6 : vector<8x648xf32>
    %cst_37 = arith.constant dense<0.000000e+00> : vector<8xf32>
    %40 = vector.multi_reduction <add>, %39, %cst_37 [1] : vector<8x648xf32> to vector<8xf32>
    %41 = vector.shape_cast %40 : vector<8xf32> to vector<8x1xf32>
    %42 = arith.mulf %39, %39 : vector<8x648xf32>
    %cst_38 = arith.constant dense<0.000000e+00> : vector<8xf32>
    %43 = vector.multi_reduction <add>, %42, %cst_38 [1] : vector<8x648xf32> to vector<8xf32>
    %44 = vector.shape_cast %43 : vector<8xf32> to vector<8x1xf32>
    %cst_39 = arith.constant 0.001953125 : f32
    %45 = vector.broadcast %cst_39 : f32 to vector<8x1xf32>
    %46 = arith.mulf %41, %45 : vector<8x1xf32>
    %cst_40 = arith.constant 0.001953125 : f32
    %47 = vector.broadcast %cst_40 : f32 to vector<8x1xf32>
    %48 = arith.mulf %44, %47 : vector<8x1xf32>
    %49 = arith.mulf %46, %46 : vector<8x1xf32>
    %50 = arith.subf %48, %49 : vector<8x1xf32>
    %c0_41 = arith.constant 0 : index
    %c0_42 = arith.constant 0 : index
    %51 = vector.load %arg8[%c0_41, %c0_42] : memref<8x1xf32, #tpu.memory_space<vmem>>, vector<8x1xf32>
    %cst_43 = arith.constant 9.99999974E-6 : f32
    %52 = vector.broadcast %cst_43 : f32 to vector<8x1xf32>
    %53 = arith.addf %50, %52 : vector<8x1xf32>
    %54 = math.rsqrt %53 : vector<8x1xf32>
    %55 = arith.mulf %51, %54 : vector<8x1xf32>
    %c0_44 = arith.constant 0 : index
    %c0_45 = arith.constant 0 : index
    %56 = vector.load %arg9[%c0_44, %c0_45] : memref<8x1xf32, #tpu.memory_space<vmem>>, vector<8x1xf32>
    %57 = arith.mulf %46, %55 : vector<8x1xf32>
    %58 = arith.subf %56, %57 : vector<8x1xf32>
    %59 = vector.broadcast %55 : vector<8x1xf32> to vector<8x648xf32>
    %60 = arith.mulf %39, %59 : vector<8x648xf32>
    %61 = vector.broadcast %58 : vector<8x1xf32> to vector<8x648xf32>
    %62 = arith.addf %60, %61 : vector<8x648xf32>
    %cst_46 = arith.constant 5.000000e-01 : f32
    %63 = vector.broadcast %cst_46 : f32 to vector<8x648xf32>
    %64 = arith.mulf %63, %62 : vector<8x648xf32>
    %65 = math.tanh %64 : vector<8x648xf32>
    %66 = arith.mulf %64, %65 : vector<8x648xf32>
    %67 = arith.addf %64, %66 : vector<8x648xf32>
    %68 = arith.mulf %67, %6 : vector<8x648xf32>
    %c0_47 = arith.constant 0 : index
    %c128_48 = arith.constant 128 : index
    %69 = vector.load %arg14[%c0_47, %c128_48] : memref<16x904xf32, #tpu.memory_space<vmem>>, vector<8x648xf32>
    tpu.vector_store %arg14[%c0_47, %c128_48], %68 {strides = array<i32>} : memref<16x904xf32, #tpu.memory_space<vmem>>, vector<8x648xf32>,
    %c0_49 = arith.constant 0 : index
    %c109_50 = arith.constant 109 : index
    %70 = vector.load %arg14[%c0_49, %c109_50] : memref<16x904xf32, #tpu.memory_space<vmem>>, vector<16x648xf32>
    %c0_51 = arith.constant 0 : index
    %c0_52 = arith.constant 0 : index
    %71 = vector.load %arg15[%c0_51, %c0_52] : memref<144x648xf32, #tpu.memory_space<vmem>>, vector<16x648xf32>
    tpu.vector_store %arg15[%c0_51, %c0_52], %70 {strides = array<i32>} : memref<144x648xf32, #tpu.memory_space<vmem>>, vector<16x648xf32>,
    %c0_53 = arith.constant 0 : index
    %c110_54 = arith.constant 110 : index
    %72 = vector.load %arg14[%c0_53, %c110_54] : memref<16x904xf32, #tpu.memory_space<vmem>>, vector<16x648xf32>
    %c16_55 = arith.constant 16 : index
    %c0_56 = arith.constant 0 : index
    %73 = vector.load %arg15[%c16_55, %c0_56] : memref<144x648xf32, #tpu.memory_space<vmem>>, vector<16x648xf32>
    tpu.vector_store %arg15[%c16_55, %c0_56], %72 {strides = array<i32>} : memref<144x648xf32, #tpu.memory_space<vmem>>, vector<16x648xf32>,
    %c0_57 = arith.constant 0 : index
    %c111_58 = arith.constant 111 : index
    %74 = vector.load %arg14[%c0_57, %c111_58] : memref<16x904xf32, #tpu.memory_space<vmem>>, vector<16x648xf32>
    %c32_59 = arith.constant 32 : index
    %c0_60 = arith.constant 0 : index
    %75 = vector.load %arg15[%c32_59, %c0_60] : memref<144x648xf32, #tpu.memory_space<vmem>>, vector<16x648xf32>
    tpu.vector_store %arg15[%c32_59, %c0_60], %74 {strides = array<i32>} : memref<144x648xf32, #tpu.memory_space<vmem>>, vector<16x648xf32>,
    %c0_61 = arith.constant 0 : index
    %c127_62 = arith.constant 127 : index
    %76 = vector.load %arg14[%c0_61, %c127_62] : memref<16x904xf32, #tpu.memory_space<vmem>>, vector<16x648xf32>
    %c48_63 = arith.constant 48 : index
    %c0_64 = arith.constant 0 : index
    %77 = vector.load %arg15[%c48_63, %c0_64] : memref<144x648xf32, #tpu.memory_space<vmem>>, vector<16x648xf32>
    tpu.vector_store %arg15[%c48_63, %c0_64], %76 {strides = array<i32>} : memref<144x648xf32, #tpu.memory_space<vmem>>, vector<16x648xf32>,
    %c0_65 = arith.constant 0 : index
    %c128_66 = arith.constant 128 : index
    %78 = vector.load %arg14[%c0_65, %c128_66] : memref<16x904xf32, #tpu.memory_space<vmem>>, vector<16x648xf32>
    %c64_67 = arith.constant 64 : index
    %c0_68 = arith.constant 0 : index
    %79 = vector.load %arg15[%c64_67, %c0_68] : memref<144x648xf32, #tpu.memory_space<vmem>>, vector<16x648xf32>
    tpu.vector_store %arg15[%c64_67, %c0_68], %78 {strides = array<i32>} : memref<144x648xf32, #tpu.memory_space<vmem>>, vector<16x648xf32>,
    %c0_69 = arith.constant 0 : index
    %c129_70 = arith.constant 129 : index
    %80 = vector.load %arg14[%c0_69, %c129_70] : memref<16x904xf32, #tpu.memory_space<vmem>>, vector<16x648xf32>
    %c80_71 = arith.constant 80 : index
    %c0_72 = arith.constant 0 : index
    %81 = vector.load %arg15[%c80_71, %c0_72] : memref<144x648xf32, #tpu.memory_space<vmem>>, vector<16x648xf32>
    tpu.vector_store %arg15[%c80_71, %c0_72], %80 {strides = array<i32>} : memref<144x648xf32, #tpu.memory_space<vmem>>, vector<16x648xf32>,
    %c0_73 = arith.constant 0 : index
    %c145_74 = arith.constant 145 : index
    %82 = vector.load %arg14[%c0_73, %c145_74] : memref<16x904xf32, #tpu.memory_space<vmem>>, vector<16x648xf32>
    %c96_75 = arith.constant 96 : index
    %c0_76 = arith.constant 0 : index
    %83 = vector.load %arg15[%c96_75, %c0_76] : memref<144x648xf32, #tpu.memory_space<vmem>>, vector<16x648xf32>
    tpu.vector_store %arg15[%c96_75, %c0_76], %82 {strides = array<i32>} : memref<144x648xf32, #tpu.memory_space<vmem>>, vector<16x648xf32>,
    %c0_77 = arith.constant 0 : index
    %c146_78 = arith.constant 146 : index
    %84 = vector.load %arg14[%c0_77, %c146_78] : memref<16x904xf32, #tpu.memory_space<vmem>>, vector<16x648xf32>
    %c112_79 = arith.constant 112 : index
    %c0_80 = arith.constant 0 : index
    %85 = vector.load %arg15[%c112_79, %c0_80] : memref<144x648xf32, #tpu.memory_space<vmem>>, vector<16x648xf32>
    tpu.vector_store %arg15[%c112_79, %c0_80], %84 {strides = array<i32>} : memref<144x648xf32, #tpu.memory_space<vmem>>, vector<16x648xf32>,
    %c0_81 = arith.constant 0 : index
    %c147_82 = arith.constant 147 : index
    %86 = vector.load %arg14[%c0_81, %c147_82] : memref<16x904xf32, #tpu.memory_space<vmem>>, vector<16x648xf32>
    %c128_83 = arith.constant 128 : index
    %c0_84 = arith.constant 0 : index
    %87 = vector.load %arg15[%c128_83, %c0_84] : memref<144x648xf32, #tpu.memory_space<vmem>>, vector<16x648xf32>
    tpu.vector_store %arg15[%c128_83, %c0_84], %86 {strides = array<i32>} : memref<144x648xf32, #tpu.memory_space<vmem>>, vector<16x648xf32>,
    %c0_85 = arith.constant 0 : index
    %c0_86 = arith.constant 0 : index
    %88 = vector.load %arg3[%c0_85, %c0_86] : memref<8x144xf32, #tpu.memory_space<vmem>>, vector<8x144xf32>
    %c0_87 = arith.constant 0 : index
    %c0_88 = arith.constant 0 : index
    %89 = vector.load %arg15[%c0_87, %c0_88] : memref<144x648xf32, #tpu.memory_space<vmem>>, vector<144x648xf32>
    %cst_89 = arith.constant dense<0.000000e+00> : vector<8x648xf32>
    %90 = tpu.matmul %88, %89, %cst_89 {dimension_numbers = #tpu.dot_dimension_numbers<[1], [0], [0], [1], [0, 0, 1, 1], [], []>} : vector<8x144xf32>, vector<144x648xf32>, vector<8x648xf32> -> vector<8x648xf32>
    %c0_90 = arith.constant 0 : index
    %c0_91 = arith.constant 0 : index
    %91 = vector.load %arg6[%c0_90, %c0_91] : memref<8x1xf32, #tpu.memory_space<vmem>>, vector<8x1xf32>
    %92 = vector.broadcast %91 : vector<8x1xf32> to vector<8x648xf32>
    %93 = arith.addf %90, %92 : vector<8x648xf32>
    %94 = arith.mulf %93, %6 : vector<8x648xf32>
    %cst_92 = arith.constant dense<0.000000e+00> : vector<8xf32>
    %95 = vector.multi_reduction <add>, %94, %cst_92 [1] : vector<8x648xf32> to vector<8xf32>
    %96 = vector.shape_cast %95 : vector<8xf32> to vector<8x1xf32>
    %97 = arith.mulf %94, %94 : vector<8x648xf32>
    %cst_93 = arith.constant dense<0.000000e+00> : vector<8xf32>
    %98 = vector.multi_reduction <add>, %97, %cst_93 [1] : vector<8x648xf32> to vector<8xf32>
    %99 = vector.shape_cast %98 : vector<8xf32> to vector<8x1xf32>
    %cst_94 = arith.constant 0.001953125 : f32
    %100 = vector.broadcast %cst_94 : f32 to vector<8x1xf32>
    %101 = arith.mulf %96, %100 : vector<8x1xf32>
    %cst_95 = arith.constant 0.001953125 : f32
    %102 = vector.broadcast %cst_95 : f32 to vector<8x1xf32>
    %103 = arith.mulf %99, %102 : vector<8x1xf32>
    %104 = arith.mulf %101, %101 : vector<8x1xf32>
    %105 = arith.subf %103, %104 : vector<8x1xf32>
    %c0_96 = arith.constant 0 : index
    %c0_97 = arith.constant 0 : index
    %106 = vector.load %arg10[%c0_96, %c0_97] : memref<8x1xf32, #tpu.memory_space<vmem>>, vector<8x1xf32>
    %cst_98 = arith.constant 9.99999974E-6 : f32
    %107 = vector.broadcast %cst_98 : f32 to vector<8x1xf32>
    %108 = arith.addf %105, %107 : vector<8x1xf32>
    %109 = math.rsqrt %108 : vector<8x1xf32>
    %110 = arith.mulf %106, %109 : vector<8x1xf32>
    %c0_99 = arith.constant 0 : index
    %c0_100 = arith.constant 0 : index
    %111 = vector.load %arg11[%c0_99, %c0_100] : memref<8x1xf32, #tpu.memory_space<vmem>>, vector<8x1xf32>
    %112 = arith.mulf %101, %110 : vector<8x1xf32>
    %113 = arith.subf %111, %112 : vector<8x1xf32>
    %114 = vector.broadcast %110 : vector<8x1xf32> to vector<8x648xf32>
    %115 = arith.mulf %94, %114 : vector<8x648xf32>
    %116 = vector.broadcast %113 : vector<8x1xf32> to vector<8x648xf32>
    %117 = arith.addf %115, %116 : vector<8x648xf32>
    %cst_101 = arith.constant 5.000000e-01 : f32
    %118 = vector.broadcast %cst_101 : f32 to vector<8x648xf32>
    %119 = arith.mulf %118, %117 : vector<8x648xf32>
    %120 = math.tanh %119 : vector<8x648xf32>
    %121 = arith.mulf %119, %120 : vector<8x648xf32>
    %122 = arith.addf %119, %121 : vector<8x648xf32>
    %123 = arith.mulf %122, %6 : vector<8x648xf32>
    %c0_102 = arith.constant 0 : index
    %c0_103 = arith.constant 0 : index
    %124 = vector.load %arg12[%c0_102, %c0_103] : memref<8x648xf32, #tpu.memory_space<vmem>>, vector<8x648xf32>
    tpu.vector_store %arg12[%c0_102, %c0_103], %123 {strides = array<i32>} : memref<8x648xf32, #tpu.memory_space<vmem>>, vector<8x648xf32>,
    %c0_104 = arith.constant 0 : index
    %c128_105 = arith.constant 128 : index
    %125 = vector.load %arg14[%c0_104, %c128_105] : memref<16x904xf32, #tpu.memory_space<vmem>>, vector<8x648xf32>
    tpu.vector_store %arg14[%c0_104, %c128_105], %123 {strides = array<i32>} : memref<16x904xf32, #tpu.memory_space<vmem>>, vector<8x648xf32>,
    %c0_106 = arith.constant 0 : index
    %c128_107 = arith.constant 128 : index
    %126 = vector.load %arg14[%c0_106, %c128_107] : memref<16x904xf32, #tpu.memory_space<vmem>>, vector<16x648xf32>
    %c0_108 = arith.constant 0 : index
    %c0_109 = arith.constant 0 : index
    %127 = vector.load %arg15[%c0_108, %c0_109] : memref<144x648xf32, #tpu.memory_space<vmem>>, vector<16x648xf32>
    tpu.vector_store %arg15[%c0_108, %c0_109], %126 {strides = array<i32>} : memref<144x648xf32, #tpu.memory_space<vmem>>, vector<16x648xf32>,
    %c0_110 = arith.constant 0 : index
    %c129_111 = arith.constant 129 : index
    %128 = vector.load %arg14[%c0_110, %c129_111] : memref<16x904xf32, #tpu.memory_space<vmem>>, vector<16x648xf32>
    %c16_112 = arith.constant 16 : index
    %c0_113 = arith.constant 0 : index
    %129 = vector.load %arg15[%c16_112, %c0_113] : memref<144x648xf32, #tpu.memory_space<vmem>>, vector<16x648xf32>
    tpu.vector_store %arg15[%c16_112, %c0_113], %128 {strides = array<i32>} : memref<144x648xf32, #tpu.memory_space<vmem>>, vector<16x648xf32>,
    %c0_114 = arith.constant 0 : index
    %c146_115 = arith.constant 146 : index
    %130 = vector.load %arg14[%c0_114, %c146_115] : memref<16x904xf32, #tpu.memory_space<vmem>>, vector<16x648xf32>
    %c32_116 = arith.constant 32 : index
    %c0_117 = arith.constant 0 : index
    %131 = vector.load %arg15[%c32_116, %c0_117] : memref<144x648xf32, #tpu.memory_space<vmem>>, vector<16x648xf32>
    tpu.vector_store %arg15[%c32_116, %c0_117], %130 {strides = array<i32>} : memref<144x648xf32, #tpu.memory_space<vmem>>, vector<16x648xf32>,
    %c0_118 = arith.constant 0 : index
    %c147_119 = arith.constant 147 : index
    %132 = vector.load %arg14[%c0_118, %c147_119] : memref<16x904xf32, #tpu.memory_space<vmem>>, vector<16x648xf32>
    %c48_120 = arith.constant 48 : index
    %c0_121 = arith.constant 0 : index
    %133 = vector.load %arg15[%c48_120, %c0_121] : memref<144x648xf32, #tpu.memory_space<vmem>>, vector<16x648xf32>
    tpu.vector_store %arg15[%c48_120, %c0_121], %132 {strides = array<i32>} : memref<144x648xf32, #tpu.memory_space<vmem>>, vector<16x648xf32>,
    %c0_122 = arith.constant 0 : index
    %c0_123 = arith.constant 0 : index
    %134 = vector.load %arg4[%c0_122, %c0_123] : memref<8x64xf32, #tpu.memory_space<vmem>>, vector<8x64xf32>
    %c0_124 = arith.constant 0 : index
    %c0_125 = arith.constant 0 : index
    %135 = vector.load %arg15[%c0_124, %c0_125] : memref<144x648xf32, #tpu.memory_space<vmem>>, vector<64x648xf32>
    %cst_126 = arith.constant dense<0.000000e+00> : vector<8x648xf32>
    %136 = tpu.matmul %134, %135, %cst_126 {dimension_numbers = #tpu.dot_dimension_numbers<[1], [0], [0], [1], [0, 0, 1, 1], [], []>} : vector<8x64xf32>, vector<64x648xf32>, vector<8x648xf32> -> vector<8x648xf32>
    %c0_127 = arith.constant 0 : index
    %c0_128 = arith.constant 0 : index
    %137 = vector.load %arg7[%c0_127, %c0_128] : memref<8x1xf32, #tpu.memory_space<vmem>>, vector<8x1xf32>
    %138 = vector.broadcast %137 : vector<8x1xf32> to vector<8x648xf32>
    %139 = arith.addf %136, %138 : vector<8x648xf32>
    %c0_129 = arith.constant 0 : index
    %c0_130 = arith.constant 0 : index
    %140 = vector.load %arg13[%c0_129, %c0_130] : memref<8x648xf32, #tpu.memory_space<vmem>>, vector<8x648xf32>
    tpu.vector_store %arg13[%c0_129, %c0_130], %139 {strides = array<i32>} : memref<8x648xf32, #tpu.memory_space<vmem>>, vector<8x648xf32>,
    return
  }
}

</mosaic_0001>

<llo_original>
// kernel: down_block_forward.1
$region0: #{down_block_forward.1}
  #allocation0 [shape = 'u32[]', space=smem, size = 0x4, offset = 0x4, fixed_abs, tag = 'smem constant byte address 0x4 - core index']
  #allocation1 [shape = 'u32[72,128]{1,0:T(1,128)}', space=vmem, size = 0x9000, scoped, tag = 'internal scratch']
  #allocation2 [shape = 'f32[16,904]{1,0:T(8,128)}', space=vmem, size = 0x10000, scoped, tag = 'scratch operand']
  #allocation3 [shape = 'f32[144,648]{1,0:T(8,128)}', space=vmem, size = 0x6c000, scoped, tag = 'scratch operand']
  %s0 = inlined_call_operand.vmem [shape: f32[16,648], index: 0, kind: input, shape index: {}]
  %s1 = inlined_call_operand.vmem [shape: f32[8,648], index: 1, kind: input, shape index: {}]
  %s2 = inlined_call_operand.vmem [shape: f32[8,144], index: 2, kind: input, shape index: {}]
  %s3 = inlined_call_operand.vmem [shape: f32[8,144], index: 3, kind: input, shape index: {}]
  %s4 = inlined_call_operand.vmem [shape: f32[8,64], index: 4, kind: input, shape index: {}]
  %s5 = inlined_call_operand.vmem [shape: f32[8,2], index: 5, kind: input, shape index: {}]
  %s6 = inlined_call_operand.vmem [shape: f32[8,1], index: 6, kind: input, shape index: {}]
  %s7 = inlined_call_operand.vmem [shape: f32[8,1], index: 7, kind: input, shape index: {}]
  %s8 = inlined_call_operand.vmem [shape: f32[8,1], index: 8, kind: input, shape index: {}, may-alias: {8,10}]
  %s9 = inlined_call_operand.vmem [shape: f32[8,1], index: 9, kind: input, shape index: {}, may-alias: {9,11}]
  %s10 = inlined_call_operand.vmem [shape: f32[8,1], index: 10, kind: input, shape index: {}, may-alias: {8,10}]
  %s11 = inlined_call_operand.vmem [shape: f32[8,1], index: 11, kind: input, shape index: {}, may-alias: {9,11}]
  %s12 = inlined_call_operand.vmem [shape: f32[8,648], index: 12, kind: output, shape index: {0}]
  %s13 = inlined_call_operand.vmem [shape: f32[8,648], index: 13, kind: output, shape index: {1}]
  %14 = xla_tuple %s12, %s13
  %s15 = sld [smem:[#allocation0]]
  $region66: #{down_block_forward.1} parent=0
    _
  %s17 = ssub.s32 1, %s15
  %s18 = scalar_select 0, %s17, %s15
  // Predicated region
  $region2: #{down_block_forward.1} parent=0 // pred_check
    _
  $region3: #{down_block_forward.1} parent=0 // pred_check_branch
    %20 = sbr.rel (0) target = $region5
  $region4: #{down_block_forward.1} parent=0 // pred_region
    _
  $region5: #{down_block_forward.1} parent=0 // pred_fallthru
    _
  // Predicated region
  $region6: #{down_block_forward.1} parent=0 // pred_check
    _
  $region7: #{down_block_forward.1} parent=0 // pred_check_branch
    %22 = sbr.rel (0) target = $region9
  $region8: #{down_block_forward.1} parent=0 // pred_region
    _
  $region9: #{down_block_forward.1} parent=0 // pred_fallthru
    _
  // Predicated region
  $region10: #{down_block_forward.1} parent=0 // pred_check
    _
  $region11: #{down_block_forward.1} parent=0 // pred_check_branch
    %24 = sbr.rel (0) target = $region13
  $region12: #{down_block_forward.1} parent=0 // pred_region
    _
  $region13: #{down_block_forward.1} parent=0 // pred_fallthru
    _
  // Predicated region
  $region14: #{down_block_forward.1} parent=0 // pred_check
    _
  $region15: #{down_block_forward.1} parent=0 // pred_check_branch
    %26 = sbr.rel (0) target = $region17
  $region16: #{down_block_forward.1} parent=0 // pred_region
    _
  $region17: #{down_block_forward.1} parent=0 // pred_fallthru
    _
  // Predicated region
  $region18: #{down_block_forward.1} parent=0 // pred_check
    _
  $region19: #{down_block_forward.1} parent=0 // pred_check_branch
    %28 = sbr.rel (0) target = $region21
  $region20: #{down_block_forward.1} parent=0 // pred_region
    _
  $region21: #{down_block_forward.1} parent=0 // pred_fallthru
    _
  // Predicated region
  $region22: #{down_block_forward.1} parent=0 // pred_check
    _
  $region23: #{down_block_forward.1} parent=0 // pred_check_branch
    %30 = sbr.rel (0) target = $region25
  $region24: #{down_block_forward.1} parent=0 // pred_region
    _
  $region25: #{down_block_forward.1} parent=0 // pred_fallthru
    _
  // Predicated region
  $region26: #{down_block_forward.1} parent=0 // pred_check
    _
  $region27: #{down_block_forward.1} parent=0 // pred_check_branch
    %32 = sbr.rel (0) target = $region29
  $region28: #{down_block_forward.1} parent=0 // pred_region
    _
  $region29: #{down_block_forward.1} parent=0 // pred_fallthru
    _
  // Predicated region
  $region30: #{down_block_forward.1} parent=0 // pred_check
    _
  $region31: #{down_block_forward.1} parent=0 // pred_check_branch
    %34 = sbr.rel (0) target = $region33
  $region32: #{down_block_forward.1} parent=0 // pred_region
    _
  $region33: #{down_block_forward.1} parent=0 // pred_fallthru
    _
  // Predicated region
  $region34: #{down_block_forward.1} parent=0 // pred_check
    _
  $region35: #{down_block_forward.1} parent=0 // pred_check_branch
    %36 = sbr.rel (0) target = $region37
  $region36: #{down_block_forward.1} parent=0 // pred_region
    _
  $region37: #{down_block_forward.1} parent=0 // pred_fallthru
    _
  // Predicated region
  $region38: #{down_block_forward.1} parent=0 // pred_check
    _
  $region39: #{down_block_forward.1} parent=0 // pred_check_branch
    %38 = sbr.rel (0) target = $region41
  $region40: #{down_block_forward.1} parent=0 // pred_region
    _
  $region41: #{down_block_forward.1} parent=0 // pred_fallthru
    _
  // Predicated region
  $region42: #{down_block_forward.1} parent=0 // pred_check
    _
  $region43: #{down_block_forward.1} parent=0 // pred_check_branch
    %40 = sbr.rel (0) target = $region45
  $region44: #{down_block_forward.1} parent=0 // pred_region
    _
  $region45: #{down_block_forward.1} parent=0 // pred_fallthru
    _
  // Predicated region
  $region46: #{down_block_forward.1} parent=0 // pred_check
    _
  $region47: #{down_block_forward.1} parent=0 // pred_check_branch
    %42 = sbr.rel (0) target = $region49
  $region48: #{down_block_forward.1} parent=0 // pred_region
    _
  $region49: #{down_block_forward.1} parent=0 // pred_fallthru
    _
  %43 = vst [vmem:[#allocation2] sm:$0xff] 0.0
  %44 = vst [vmem:[#allocation2 + $0x40] sm:$0xff] 0.0
  %vm45 = vcmask 1047616
  %46 = vst.msk [vmem:[#allocation2 + $0x30] sm:$0xff] %vm45, 0.0
  %vm47 = vcmask 64512
  %48 = vst.msk [vmem:[#allocation2 + $0x38] sm:$0xff] %vm47, 0.0
  %49 = vst.msk [vmem:[#allocation2 + $0x70] sm:$0xff] %vm45, 0.0
  %50 = vst.msk [vmem:[#allocation2 + $0x78] sm:$0xff] %vm47, 0.0
  %v51 = vld [vmem:[%s0] sm:$0xff]
  %v52 = vld [vmem:[%s0 + $0x8] sm:$0xff]
  %v53 = vld [vmem:[%s0 + $0x10] sm:$0xff]
  %v54 = vld [vmem:[%s0 + $0x18] sm:$0xff]
  %v55 = vld [vmem:[%s0 + $0x20] sm:$0xff]
  %v56 = vld [vmem:[%s0 + $0x28] sm:$0xff]
  %v57 = vld [vmem:[%s0 + $0x30] sm:$0xff]
  %v58 = vld [vmem:[%s0 + $0x38] sm:$0xff]
  %v59 = vld [vmem:[%s0 + $0x40] sm:$0xff]
  %v60 = vld [vmem:[%s0 + $0x48] sm:$0xff]
  %v61 = vld [vmem:[%s0 + $0x50] sm:$0xff]
  %v62 = vld [vmem:[%s0 + $0x58] sm:$0xff]
  %63 = vst [vmem:[#allocation2 + $0x8] sm:$0xff] %v51
  %64 = vst [vmem:[#allocation2 + $0x10] sm:$0xff] %v52
  %65 = vst [vmem:[#allocation2 + $0x18] sm:$0xff] %v53
  %66 = vst [vmem:[#allocation2 + $0x20] sm:$0xff] %v54
  %67 = vst [vmem:[#allocation2 + $0x28] sm:$0xff] %v55
  %68 = vst.msk [vmem:[#allocation2 + $0x30] sm:$0xff] %vm47, %v56
  %69 = vst [vmem:[#allocation2 + $0x48] sm:$0xff] %v57
  %70 = vst [vmem:[#allocation2 + $0x50] sm:$0xff] %v58
  %71 = vst [vmem:[#allocation2 + $0x58] sm:$0xff] %v59
  %72 = vst [vmem:[#allocation2 + $0x60] sm:$0xff] %v60
  %73 = vst [vmem:[#allocation2 + $0x68] sm:$0xff] %v61
  %74 = vst.msk [vmem:[#allocation2 + $0x70] sm:$0xff] %vm47, %v62
  %v75 = vld [vmem:[%s1] sm:$0xff]
  %v76 = vld [vmem:[%s1 + $0x8] sm:$0xff]
  %v77 = vld [vmem:[%s1 + $0x10] sm:$0xff]
  %v78 = vld [vmem:[%s1 + $0x18] sm:$0xff]
  %v79 = vld [vmem:[%s1 + $0x20] sm:$0xff]
  %v80 = vld [vmem:[%s1 + $0x28] sm:$0xff]
  %v81 = vlaneseq
  %v82 = vand.u32 %v81, 127
  %v83 = vadd.s32 %v82, 128
  %v84 = vadd.s32 %v82, 256
  %v85 = vadd.s32 %v82, 384
  %v86 = vadd.s32 %v82, 512
  %v87 = vadd.s32 %v82, 640
  %v88 = vld [vmem:[%s5] sm:$0xff]
  %90 = vset.pattern.permute.xlu0 0
  %91 = vperm.xlu0 %90, %v88
  %v92 = vpop.permute.xlu0 %91
  %vm94 = vcmp.ge.s32.totalorder %v82, 324
  %vm95 = vcmp.ge.s32.totalorder %v83, 324
  %vm96 = vcmp.ge.s32.totalorder %v84, 324
  %vm97 = vcmp.ge.s32.totalorder %v85, 324
  %vm98 = vcmp.ge.s32.totalorder %v86, 324
  %vm99 = vcmp.ge.s32.totalorder %v87, 324
  %100 = vset.pattern.permute.xlu0 1
  %101 = vperm.xlu0 %100, %v88
  %v102 = vpop.permute.xlu0 %101
  %v104 = vsel %vm94, %v102, %v92
  %v105 = vsel %vm95, %v102, %v92
  %v106 = vsel %vm96, %v102, %v92
  %v107 = vsel %vm97, %v102, %v92
  %v108 = vsel %vm98, %v102, %v92
  %v109 = vsel %vm99, %v102, %v92
  %v110 = vld [vmem:[#allocation2] sm:$0xff]
  %v111 = vld [vmem:[#allocation2 + $0x8] sm:$0xff]
  %v112 = vld [vmem:[#allocation2 + $0x10] sm:$0xff]
  %v113 = vld [vmem:[#allocation2 + $0x18] sm:$0xff]
  %v114 = vld [vmem:[#allocation2 + $0x20] sm:$0xff]
  %v115 = vld [vmem:[#allocation2 + $0x28] sm:$0xff]
  %v116 = vld [vmem:[#allocation2 + $0x40] sm:$0xff]
  %v117 = vld [vmem:[#allocation2 + $0x48] sm:$0xff]
  %v118 = vld [vmem:[#allocation2 + $0x50] sm:$0xff]
  %v119 = vld [vmem:[#allocation2 + $0x58] sm:$0xff]
  %v120 = vld [vmem:[#allocation2 + $0x60] sm:$0xff]
  %v121 = vld [vmem:[#allocation2 + $0x68] sm:$0xff]
  %134 = vrot.lane.b32.xlu0 %v110, 19
  %v135 = vpop.permute.xlu0 %134
  %136 = vrot.lane.b32.xlu0 %v111, 19
  %v137 = vpop.permute.xlu0 %136
  %138 = vrot.lane.b32.xlu0 %v112, 19
  %v139 = vpop.permute.xlu0 %138
  %140 = vrot.lane.b32.xlu0 %v113, 19
  %v141 = vpop.permute.xlu0 %140
  %142 = vrot.lane.b32.xlu0 %v114, 19
  %v143 = vpop.permute.xlu0 %142
  %144 = vrot.lane.b32.xlu0 %v115, 19
  %v145 = vpop.permute.xlu0 %144
  %146 = vrot.lane.b32.xlu0 %v116, 19
  %v147 = vpop.permute.xlu0 %146
  %148 = vrot.lane.b32.xlu0 %v117, 19
  %v149 = vpop.permute.xlu0 %148
  %150 = vrot.lane.b32.xlu0 %v118, 19
  %v151 = vpop.permute.xlu0 %150
  %152 = vrot.lane.b32.xlu0 %v119, 19
  %v153 = vpop.permute.xlu0 %152
  %154 = vrot.lane.b32.xlu0 %v120, 19
  %v155 = vpop.permute.xlu0 %154
  %156 = vrot.lane.b32.xlu0 %v121, 19
  %v157 = vpop.permute.xlu0 %156
  %vm158 = vcmask 154624
  %v159 = vsel %vm158, %v135, %v137
  %v160 = vsel %vm158, %v137, %v139
  %v161 = vsel %vm158, %v139, %v141
  %v162 = vsel %vm158, %v141, %v143
  %v163 = vsel %vm158, %v143, %v145
  %v164 = vsel %vm158, %v147, %v149
  %v165 = vsel %vm158, %v149, %v151
  %v166 = vsel %vm158, %v151, %v153
  %v167 = vsel %vm158, %v153, %v155
  %v168 = vsel %vm158, %v155, %v157
  %181 = vst [vmem:[#allocation3] sm:$0xff] %v159
  %182 = vst [vmem:[#allocation3 + $0x8] sm:$0xff] %v160
  %183 = vst [vmem:[#allocation3 + $0x10] sm:$0xff] %v161
  %184 = vst [vmem:[#allocation3 + $0x18] sm:$0xff] %v162
  %185 = vst [vmem:[#allocation3 + $0x20] sm:$0xff] %v163
  %186 = vst.msk [vmem:[#allocation3 + $0x28] sm:$0xff] %vm47, %v145
  %187 = vst [vmem:[#allocation3 + $0x30] sm:$0xff] %v164
  %188 = vst [vmem:[#allocation3 + $0x38] sm:$0xff] %v165
  %189 = vst [vmem:[#allocation3 + $0x40] sm:$0xff] %v166
  %190 = vst [vmem:[#allocation3 + $0x48] sm:$0xff] %v167
  %191 = vst [vmem:[#allocation3 + $0x50] sm:$0xff] %v168
  %192 = vst.msk [vmem:[#allocation3 + $0x58] sm:$0xff] %vm47, %v157
  %v193 = vld [vmem:[#allocation2] sm:$0xff]
  %v194 = vld [vmem:[#allocation2 + $0x8] sm:$0xff]
  %v195 = vld [vmem:[#allocation2 + $0x10] sm:$0xff]
  %v196 = vld [vmem:[#allocation2 + $0x18] sm:$0xff]
  %v197 = vld [vmem:[#allocation2 + $0x20] sm:$0xff]
  %v198 = vld [vmem:[#allocation2 + $0x28] sm:$0xff]
  %v199 = vld [vmem:[#allocation2 + $0x40] sm:$0xff]
  %v200 = vld [vmem:[#allocation2 + $0x48] sm:$0xff]
  %v201 = vld [vmem:[#allocation2 + $0x50] sm:$0xff]
  %v202 = vld [vmem:[#allocation2 + $0x58] sm:$0xff]
  %v203 = vld [vmem:[#allocation2 + $0x60] sm:$0xff]
  %v204 = vld [vmem:[#allocation2 + $0x68] sm:$0xff]
  %217 = vrot.lane.b32.xlu0 %v193, 18
  %v218 = vpop.permute.xlu0 %217
  %219 = vrot.lane.b32.xlu0 %v194, 18
  %v220 = vpop.permute.xlu0 %219
  %221 = vrot.lane.b32.xlu0 %v195, 18
  %v222 = vpop.permute.xlu0 %221
  %223 = vrot.lane.b32.xlu0 %v196, 18
  %v224 = vpop.permute.xlu0 %223
  %225 = vrot.lane.b32.xlu0 %v197, 18
  %v226 = vpop.permute.xlu0 %225
  %227 = vrot.lane.b32.xlu0 %v198, 18
  %v228 = vpop.permute.xlu0 %227
  %229 = vrot.lane.b32.xlu0 %v199, 18
  %v230 = vpop.permute.xlu0 %229
  %231 = vrot.lane.b32.xlu0 %v200, 18
  %v232 = vpop.permute.xlu0 %231
  %233 = vrot.lane.b32.xlu0 %v201, 18
  %v234 = vpop.permute.xlu0 %233
  %235 = vrot.lane.b32.xlu0 %v202, 18
  %v236 = vpop.permute.xlu0 %235
  %237 = vrot.lane.b32.xlu0 %v203, 18
  %v238 = vpop.permute.xlu0 %237
  %239 = vrot.lane.b32.xlu0 %v204, 18
  %v240 = vpop.permute.xlu0 %239
  %vm241 = vcmask 146432
  %v242 = vsel %vm241, %v218, %v220
  %v243 = vsel %vm241, %v220, %v222
  %v244 = vsel %vm241, %v222, %v224
  %v245 = vsel %vm241, %v224, %v226
  %v246 = vsel %vm241, %v226, %v228
  %v247 = vsel %vm241, %v230, %v232
  %v248 = vsel %vm241, %v232, %v234
  %v249 = vsel %vm241, %v234, %v236
  %v250 = vsel %vm241, %v236, %v238
  %v251 = vsel %vm241, %v238, %v240
  %264 = vst [vmem:[#allocation3 + $0x60] sm:$0xff] %v242
  %265 = vst [vmem:[#allocation3 + $0x68] sm:$0xff] %v243
  %266 = vst [vmem:[#allocation3 + $0x70] sm:$0xff] %v244
  %267 = vst [vmem:[#allocation3 + $0x78] sm:$0xff] %v245
  %268 = vst [vmem:[#allocation3 + $0x80] sm:$0xff] %v246
  %269 = vst.msk [vmem:[#allocation3 + $0x88] sm:$0xff] %vm47, %v228
  %270 = vst [vmem:[#allocation3 + $0x90] sm:$0xff] %v247
  %271 = vst [vmem:[#allocation3 + $0x98] sm:$0xff] %v248
  %272 = vst [vmem:[#allocation3 + $0xa0] sm:$0xff] %v249
  %273 = vst [vmem:[#allocation3 + $0xa8] sm:$0xff] %v250
  %274 = vst [vmem:[#allocation3 + $0xb0] sm:$0xff] %v251
  %275 = vst.msk [vmem:[#allocation3 + $0xb8] sm:$0xff] %vm47, %v240
  %v276 = vld [vmem:[#allocation2] sm:$0xff]
  %v277 = vld [vmem:[#allocation2 + $0x8] sm:$0xff]
  %v278 = vld [vmem:[#allocation2 + $0x10] sm:$0xff]
  %v279 = vld [vmem:[#allocation2 + $0x18] sm:$0xff]
  %v280 = vld [vmem:[#allocation2 + $0x20] sm:$0xff]
  %v281 = vld [vmem:[#allocation2 + $0x28] sm:$0xff]
  %v282 = vld [vmem:[#allocation2 + $0x40] sm:$0xff]
  %v283 = vld [vmem:[#allocation2 + $0x48] sm:$0xff]
  %v284 = vld [vmem:[#allocation2 + $0x50] sm:$0xff]
  %v285 = vld [vmem:[#allocation2 + $0x58] sm:$0xff]
  %v286 = vld [vmem:[#allocation2 + $0x60] sm:$0xff]
  %v287 = vld [vmem:[#allocation2 + $0x68] sm:$0xff]
  %300 = vrot.lane.b32.xlu0 %v276, 17
  %v301 = vpop.permute.xlu0 %300
  %302 = vrot.lane.b32.xlu0 %v277, 17
  %v303 = vpop.permute.xlu0 %302
  %304 = vrot.lane.b32.xlu0 %v278, 17
  %v305 = vpop.permute.xlu0 %304
  %306 = vrot.lane.b32.xlu0 %v279, 17
  %v307 = vpop.permute.xlu0 %306
  %308 = vrot.lane.b32.xlu0 %v280, 17
  %v309 = vpop.permute.xlu0 %308
  %310 = vrot.lane.b32.xlu0 %v281, 17
  %v311 = vpop.permute.xlu0 %310
  %312 = vrot.lane.b32.xlu0 %v282, 17
  %v313 = vpop.permute.xlu0 %312
  %314 = vrot.lane.b32.xlu0 %v283, 17
  %v315 = vpop.permute.xlu0 %314
  %316 = vrot.lane.b32.xlu0 %v284, 17
  %v317 = vpop.permute.xlu0 %316
  %318 = vrot.lane.b32.xlu0 %v285, 17
  %v319 = vpop.permute.xlu0 %318
  %320 = vrot.lane.b32.xlu0 %v286, 17
  %v321 = vpop.permute.xlu0 %320
  %322 = vrot.lane.b32.xlu0 %v287, 17
  %v323 = vpop.permute.xlu0 %322
  %vm324 = vcmask 138240
  %v325 = vsel %vm324, %v301, %v303
  %v326 = vsel %vm324, %v303, %v305
  %v327 = vsel %vm324, %v305, %v307
  %v328 = vsel %vm324, %v307, %v309
  %v329 = vsel %vm324, %v309, %v311
  %v330 = vsel %vm324, %v313, %v315
  %v331 = vsel %vm324, %v315, %v317
  %v332 = vsel %vm324, %v317, %v319
  %v333 = vsel %vm324, %v319, %v321
  %v334 = vsel %vm324, %v321, %v323
  %347 = vst [vmem:[#allocation3 + $0xc0] sm:$0xff] %v325
  %348 = vst [vmem:[#allocation3 + $0xc8] sm:$0xff] %v326
  %349 = vst [vmem:[#allocation3 + $0xd0] sm:$0xff] %v327
  %350 = vst [vmem:[#allocation3 + $0xd8] sm:$0xff] %v328
  %351 = vst [vmem:[#allocation3 + $0xe0] sm:$0xff] %v329
  %352 = vst.msk [vmem:[#allocation3 + $0xe8] sm:$0xff] %vm47, %v311
  %353 = vst [vmem:[#allocation3 + $0xf0] sm:$0xff] %v330
  %354 = vst [vmem:[#allocation3 + $0xf8] sm:$0xff] %v331
  %355 = vst [vmem:[#allocation3 + $0x100] sm:$0xff] %v332
  %356 = vst [vmem:[#allocation3 + $0x108] sm:$0xff] %v333
  %357 = vst [vmem:[#allocation3 + $0x110] sm:$0xff] %v334
  %358 = vst.msk [vmem:[#allocation3 + $0x118] sm:$0xff] %vm47, %v323
  %v359 = vld [vmem:[#allocation2] sm:$0xff]
  %v360 = vld [vmem:[#allocation2 + $0x8] sm:$0xff]
  %v361 = vld [vmem:[#allocation2 + $0x10] sm:$0xff]
  %v362 = vld [vmem:[#allocation2 + $0x18] sm:$0xff]
  %v363 = vld [vmem:[#allocation2 + $0x20] sm:$0xff]
  %v364 = vld [vmem:[#allocation2 + $0x28] sm:$0xff]
  %v365 = vld [vmem:[#allocation2 + $0x30] sm:$0xff]
  %v366 = vld [vmem:[#allocation2 + $0x40] sm:$0xff]
  %v367 = vld [vmem:[#allocation2 + $0x48] sm:$0xff]
  %v368 = vld [vmem:[#allocation2 + $0x50] sm:$0xff]
  %v369 = vld [vmem:[#allocation2 + $0x58] sm:$0xff]
  %v370 = vld [vmem:[#allocation2 + $0x60] sm:$0xff]
  %v371 = vld [vmem:[#allocation2 + $0x68] sm:$0xff]
  %v372 = vld [vmem:[#allocation2 + $0x70] sm:$0xff]
  %387 = vrot.lane.b32.xlu0 %v359, 1
  %v388 = vpop.permute.xlu0 %387
  %389 = vrot.lane.b32.xlu0 %v360, 1
  %v390 = vpop.permute.xlu0 %389
  %391 = vrot.lane.b32.xlu0 %v361, 1
  %v392 = vpop.permute.xlu0 %391
  %393 = vrot.lane.b32.xlu0 %v362, 1
  %v394 = vpop.permute.xlu0 %393
  %395 = vrot.lane.b32.xlu0 %v363, 1
  %v396 = vpop.permute.xlu0 %395
  %397 = vrot.lane.b32.xlu0 %v364, 1
  %v398 = vpop.permute.xlu0 %397
  %399 = vrot.lane.b32.xlu0 %v365, 1
  %v400 = vpop.permute.xlu0 %399
  %401 = vrot.lane.b32.xlu0 %v366, 1
  %v402 = vpop.permute.xlu0 %401
  %403 = vrot.lane.b32.xlu0 %v367, 1
  %v404 = vpop.permute.xlu0 %403
  %405 = vrot.lane.b32.xlu0 %v368, 1
  %v406 = vpop.permute.xlu0 %405
  %407 = vrot.lane.b32.xlu0 %v369, 1
  %v408 = vpop.permute.xlu0 %407
  %409 = vrot.lane.b32.xlu0 %v370, 1
  %v410 = vpop.permute.xlu0 %409
  %411 = vrot.lane.b32.xlu0 %v371, 1
  %v412 = vpop.permute.xlu0 %411
  %413 = vrot.lane.b32.xlu0 %v372, 1
  %v414 = vpop.permute.xlu0 %413
  %vm415 = vcmask 7168
  %v416 = vsel %vm415, %v388, %v390
  %v417 = vsel %vm415, %v390, %v392
  %v418 = vsel %vm415, %v392, %v394
  %v419 = vsel %vm415, %v394, %v396
  %v420 = vsel %vm415, %v396, %v398
  %v421 = vsel %vm415, %v398, %v400
  %v422 = vsel %vm415, %v402, %v404
  %v423 = vsel %vm415, %v404, %v406
  %v424 = vsel %vm415, %v406, %v408
  %v425 = vsel %vm415, %v408, %v410
  %v426 = vsel %vm415, %v410, %v412
  %v427 = vsel %vm415, %v412, %v414
  %440 = vst [vmem:[#allocation3 + $0x120] sm:$0xff] %v416
  %441 = vst [vmem:[#allocation3 + $0x128] sm:$0xff] %v417
  %442 = vst [vmem:[#allocation3 + $0x130] sm:$0xff] %v418
  %443 = vst [vmem:[#allocation3 + $0x138] sm:$0xff] %v419
  %444 = vst [vmem:[#allocation3 + $0x140] sm:$0xff] %v420
  %445 = vst.msk [vmem:[#allocation3 + $0x148] sm:$0xff] %vm47, %v421
  %446 = vst [vmem:[#allocation3 + $0x150] sm:$0xff] %v422
  %447 = vst [vmem:[#allocation3 + $0x158] sm:$0xff] %v423
  %448 = vst [vmem:[#allocation3 + $0x160] sm:$0xff] %v424
  %449 = vst [vmem:[#allocation3 + $0x168] sm:$0xff] %v425
  %450 = vst [vmem:[#allocation3 + $0x170] sm:$0xff] %v426
  %451 = vst.msk [vmem:[#allocation3 + $0x178] sm:$0xff] %vm47, %v427
  %v452 = vld [vmem:[#allocation2 + $0x8] sm:$0xff]
  %v453 = vld [vmem:[#allocation2 + $0x10] sm:$0xff]
  %v454 = vld [vmem:[#allocation2 + $0x18] sm:$0xff]
  %v455 = vld [vmem:[#allocation2 + $0x20] sm:$0xff]
  %v456 = vld [vmem:[#allocation2 + $0x28] sm:$0xff]
  %v457 = vld [vmem:[#allocation2 + $0x30] sm:$0xff]
  %v458 = vld [vmem:[#allocation2 + $0x48] sm:$0xff]
  %v459 = vld [vmem:[#allocation2 + $0x50] sm:$0xff]
  %v460 = vld [vmem:[#allocation2 + $0x58] sm:$0xff]
  %v461 = vld [vmem:[#allocation2 + $0x60] sm:$0xff]
  %v462 = vld [vmem:[#allocation2 + $0x68] sm:$0xff]
  %v463 = vld [vmem:[#allocation2 + $0x70] sm:$0xff]
  %464 = vst [vmem:[#allocation3 + $0x180] sm:$0xff] %v452
  %465 = vst [vmem:[#allocation3 + $0x188] sm:$0xff] %v453
  %466 = vst [vmem:[#allocation3 + $0x190] sm:$0xff] %v454
  %467 = vst [vmem:[#allocation3 + $0x198] sm:$0xff] %v455
  %468 = vst [vmem:[#allocation3 + $0x1a0] sm:$0xff] %v456
  %469 = vst.msk [vmem:[#allocation3 + $0x1a8] sm:$0xff] %vm47, %v457
  %470 = vst [vmem:[#allocation3 + $0x1b0] sm:$0xff] %v458
  %471 = vst [vmem:[#allocation3 + $0x1b8] sm:$0xff] %v459
  %472 = vst [vmem:[#allocation3 + $0x1c0] sm:$0xff] %v460
  %473 = vst [vmem:[#allocation3 + $0x1c8] sm:$0xff] %v461
  %474 = vst [vmem:[#allocation3 + $0x1d0] sm:$0xff] %v462
  %475 = vst.msk [vmem:[#allocation3 + $0x1d8] sm:$0xff] %vm47, %v463
  %v476 = vld [vmem:[#allocation2 + $0x8] sm:$0xff]
  %v477 = vld [vmem:[#allocation2 + $0x10] sm:$0xff]
  %v478 = vld [vmem:[#allocation2 + $0x18] sm:$0xff]
  %v479 = vld [vmem:[#allocation2 + $0x20] sm:$0xff]
  %v480 = vld [vmem:[#allocation2 + $0x28] sm:$0xff]
  %v481 = vld [vmem:[#allocation2 + $0x30] sm:$0xff]
  %v482 = vld [vmem:[#allocation2 + $0x48] sm:$0xff]
  %v483 = vld [vmem:[#allocation2 + $0x50] sm:$0xff]
  %v484 = vld [vmem:[#allocation2 + $0x58] sm:$0xff]
  %v485 = vld [vmem:[#allocation2 + $0x60] sm:$0xff]
  %v486 = vld [vmem:[#allocation2 + $0x68] sm:$0xff]
  %v487 = vld [vmem:[#allocation2 + $0x70] sm:$0xff]
  %500 = vrot.lane.b32.xlu0 %v476, 127
  %v501 = vpop.permute.xlu0 %500
  %502 = vrot.lane.b32.xlu0 %v477, 127
  %v503 = vpop.permute.xlu0 %502
  %504 = vrot.lane.b32.xlu0 %v478, 127
  %v505 = vpop.permute.xlu0 %504
  %506 = vrot.lane.b32.xlu0 %v479, 127
  %v507 = vpop.permute.xlu0 %506
  %508 = vrot.lane.b32.xlu0 %v480, 127
  %v509 = vpop.permute.xlu0 %508
  %510 = vrot.lane.b32.xlu0 %v481, 127
  %v511 = vpop.permute.xlu0 %510
  %512 = vrot.lane.b32.xlu0 %v482, 127
  %v513 = vpop.permute.xlu0 %512
  %514 = vrot.lane.b32.xlu0 %v483, 127
  %v515 = vpop.permute.xlu0 %514
  %516 = vrot.lane.b32.xlu0 %v484, 127
  %v517 = vpop.permute.xlu0 %516
  %518 = vrot.lane.b32.xlu0 %v485, 127
  %v519 = vpop.permute.xlu0 %518
  %520 = vrot.lane.b32.xlu0 %v486, 127
  %v521 = vpop.permute.xlu0 %520
  %522 = vrot.lane.b32.xlu0 %v487, 127
  %v523 = vpop.permute.xlu0 %522
  %vm524 = vcmask 1039360
  %v525 = vsel %vm524, %v501, %v503
  %v526 = vsel %vm524, %v503, %v505
  %v527 = vsel %vm524, %v505, %v507
  %v528 = vsel %vm524, %v507, %v509
  %v529 = vsel %vm524, %v509, %v511
  %v530 = vsel %vm524, %v513, %v515
  %v531 = vsel %vm524, %v515, %v517
  %v532 = vsel %vm524, %v517, %v519
  %v533 = vsel %vm524, %v519, %v521
  %v534 = vsel %vm524, %v521, %v523
  %547 = vst [vmem:[#allocation3 + $0x1e0] sm:$0xff] %v525
  %548 = vst [vmem:[#allocation3 + $0x1e8] sm:$0xff] %v526
  %549 = vst [vmem:[#allocation3 + $0x1f0] sm:$0xff] %v527
  %550 = vst [vmem:[#allocation3 + $0x1f8] sm:$0xff] %v528
  %551 = vst [vmem:[#allocation3 + $0x200] sm:$0xff] %v529
  %552 = vst.msk [vmem:[#allocation3 + $0x208] sm:$0xff] %vm47, %v511
  %553 = vst [vmem:[#allocation3 + $0x210] sm:$0xff] %v530
  %554 = vst [vmem:[#allocation3 + $0x218] sm:$0xff] %v531
  %555 = vst [vmem:[#allocation3 + $0x220] sm:$0xff] %v532
  %556 = vst [vmem:[#allocation3 + $0x228] sm:$0xff] %v533
  %557 = vst [vmem:[#allocation3 + $0x230] sm:$0xff] %v534
  %558 = vst.msk [vmem:[#allocation3 + $0x238] sm:$0xff] %vm47, %v523
  %v559 = vld [vmem:[#allocation2 + $0x8] sm:$0xff]
  %v560 = vld [vmem:[#allocation2 + $0x10] sm:$0xff]
  %v561 = vld [vmem:[#allocation2 + $0x18] sm:$0xff]
  %v562 = vld [vmem:[#allocation2 + $0x20] sm:$0xff]
  %v563 = vld [vmem:[#allocation2 + $0x28] sm:$0xff]
  %v564 = vld [vmem:[#allocation2 + $0x30] sm:$0xff]
  %v565 = vld [vmem:[#allocation2 + $0x48] sm:$0xff]
  %v566 = vld [vmem:[#allocation2 + $0x50] sm:$0xff]
  %v567 = vld [vmem:[#allocation2 + $0x58] sm:$0xff]
  %v568 = vld [vmem:[#allocation2 + $0x60] sm:$0xff]
  %v569 = vld [vmem:[#allocation2 + $0x68] sm:$0xff]
  %v570 = vld [vmem:[#allocation2 + $0x70] sm:$0xff]
  %583 = vrot.lane.b32.xlu0 %v559, 111
  %v584 = vpop.permute.xlu0 %583
  %585 = vrot.lane.b32.xlu0 %v560, 111
  %v586 = vpop.permute.xlu0 %585
  %587 = vrot.lane.b32.xlu0 %v561, 111
  %v588 = vpop.permute.xlu0 %587
  %589 = vrot.lane.b32.xlu0 %v562, 111
  %v590 = vpop.permute.xlu0 %589
  %591 = vrot.lane.b32.xlu0 %v563, 111
  %v592 = vpop.permute.xlu0 %591
  %593 = vrot.lane.b32.xlu0 %v564, 111
  %v594 = vpop.permute.xlu0 %593
  %595 = vrot.lane.b32.xlu0 %v565, 111
  %v596 = vpop.permute.xlu0 %595
  %597 = vrot.lane.b32.xlu0 %v566, 111
  %v598 = vpop.permute.xlu0 %597
  %599 = vrot.lane.b32.xlu0 %v567, 111
  %v600 = vpop.permute.xlu0 %599
  %601 = vrot.lane.b32.xlu0 %v568, 111
  %v602 = vpop.permute.xlu0 %601
  %603 = vrot.lane.b32.xlu0 %v569, 111
  %v604 = vpop.permute.xlu0 %603
  %605 = vrot.lane.b32.xlu0 %v570, 111
  %v606 = vpop.permute.xlu0 %605
  %vm607 = vcmask 908288
  %v608 = vsel %vm607, %v584, %v586
  %v609 = vsel %vm607, %v586, %v588
  %v610 = vsel %vm607, %v588, %v590
  %v611 = vsel %vm607, %v590, %v592
  %v612 = vsel %vm607, %v592, %v594
  %v613 = vsel %vm607, %v596, %v598
  %v614 = vsel %vm607, %v598, %v600
  %v615 = vsel %vm607, %v600, %v602
  %v616 = vsel %vm607, %v602, %v604
  %v617 = vsel %vm607, %v604, %v606
  %630 = vst [vmem:[#allocation3 + $0x240] sm:$0xff] %v608
  %631 = vst [vmem:[#allocation3 + $0x248] sm:$0xff] %v609
  %632 = vst [vmem:[#allocation3 + $0x250] sm:$0xff] %v610
  %633 = vst [vmem:[#allocation3 + $0x258] sm:$0xff] %v611
  %634 = vst [vmem:[#allocation3 + $0x260] sm:$0xff] %v612
  %635 = vst.msk [vmem:[#allocation3 + $0x268] sm:$0xff] %vm47, %v594
  %636 = vst [vmem:[#allocation3 + $0x270] sm:$0xff] %v613
  %637 = vst [vmem:[#allocation3 + $0x278] sm:$0xff] %v614
  %638 = vst [vmem:[#allocation3 + $0x280] sm:$0xff] %v615
  %639 = vst [vmem:[#allocation3 + $0x288] sm:$0xff] %v616
  %640 = vst [vmem:[#allocation3 + $0x290] sm:$0xff] %v617
  %641 = vst.msk [vmem:[#allocation3 + $0x298] sm:$0xff] %vm47, %v606
  %v642 = vld [vmem:[#allocation2 + $0x8] sm:$0xff]
  %v643 = vld [vmem:[#allocation2 + $0x10] sm:$0xff]
  %v644 = vld [vmem:[#allocation2 + $0x18] sm:$0xff]
  %v645 = vld [vmem:[#allocation2 + $0x20] sm:$0xff]
  %v646 = vld [vmem:[#allocation2 + $0x28] sm:$0xff]
  %v647 = vld [vmem:[#allocation2 + $0x30] sm:$0xff]
  %v648 = vld [vmem:[#allocation2 + $0x48] sm:$0xff]
  %v649 = vld [vmem:[#allocation2 + $0x50] sm:$0xff]
  %v650 = vld [vmem:[#allocation2 + $0x58] sm:$0xff]
  %v651 = vld [vmem:[#allocation2 + $0x60] sm:$0xff]
  %v652 = vld [vmem:[#allocation2 + $0x68] sm:$0xff]
  %v653 = vld [vmem:[#allocation2 + $0x70] sm:$0xff]
  %666 = vrot.lane.b32.xlu0 %v642, 110
  %v667 = vpop.permute.xlu0 %666
  %668 = vrot.lane.b32.xlu0 %v643, 110
  %v669 = vpop.permute.xlu0 %668
  %670 = vrot.lane.b32.xlu0 %v644, 110
  %v671 = vpop.permute.xlu0 %670
  %672 = vrot.lane.b32.xlu0 %v645, 110
  %v673 = vpop.permute.xlu0 %672
  %674 = vrot.lane.b32.xlu0 %v646, 110
  %v675 = vpop.permute.xlu0 %674
  %676 = vrot.lane.b32.xlu0 %v647, 110
  %v677 = vpop.permute.xlu0 %676
  %678 = vrot.lane.b32.xlu0 %v648, 110
  %v679 = vpop.permute.xlu0 %678
  %680 = vrot.lane.b32.xlu0 %v649, 110
  %v681 = vpop.permute.xlu0 %680
  %682 = vrot.lane.b32.xlu0 %v650, 110
  %v683 = vpop.permute.xlu0 %682
  %684 = vrot.lane.b32.xlu0 %v651, 110
  %v685 = vpop.permute.xlu0 %684
  %686 = vrot.lane.b32.xlu0 %v652, 110
  %v687 = vpop.permute.xlu0 %686
  %688 = vrot.lane.b32.xlu0 %v653, 110
  %v689 = vpop.permute.xlu0 %688
  %vm690 = vcmask 900096
  %v691 = vsel %vm690, %v667, %v669
  %v692 = vsel %vm690, %v669, %v671
  %v693 = vsel %vm690, %v671, %v673
  %v694 = vsel %vm690, %v673, %v675
  %v695 = vsel %vm690, %v675, %v677
  %v696 = vsel %vm690, %v679, %v681
  %v697 = vsel %vm690, %v681, %v683
  %v698 = vsel %vm690, %v683, %v685
  %v699 = vsel %vm690, %v685, %v687
  %v700 = vsel %vm690, %v687, %v689
  %713 = vst [vmem:[#allocation3 + $0x2a0] sm:$0xff] %v691
  %714 = vst [vmem:[#allocation3 + $0x2a8] sm:$0xff] %v692
  %715 = vst [vmem:[#allocation3 + $0x2b0] sm:$0xff] %v693
  %716 = vst [vmem:[#allocation3 + $0x2b8] sm:$0xff] %v694
  %717 = vst [vmem:[#allocation3 + $0x2c0] sm:$0xff] %v695
  %718 = vst.msk [vmem:[#allocation3 + $0x2c8] sm:$0xff] %vm47, %v677
  %719 = vst [vmem:[#allocation3 + $0x2d0] sm:$0xff] %v696
  %720 = vst [vmem:[#allocation3 + $0x2d8] sm:$0xff] %v697
  %721 = vst [vmem:[#allocation3 + $0x2e0] sm:$0xff] %v698
  %722 = vst [vmem:[#allocation3 + $0x2e8] sm:$0xff] %v699
  %723 = vst [vmem:[#allocation3 + $0x2f0] sm:$0xff] %v700
  %724 = vst.msk [vmem:[#allocation3 + $0x2f8] sm:$0xff] %vm47, %v689
  %v725 = vld [vmem:[#allocation2 + $0x8] sm:$0xff]
  %v726 = vld [vmem:[#allocation2 + $0x10] sm:$0xff]
  %v727 = vld [vmem:[#allocation2 + $0x18] sm:$0xff]
  %v728 = vld [vmem:[#allocation2 + $0x20] sm:$0xff]
  %v729 = vld [vmem:[#allocation2 + $0x28] sm:$0xff]
  %v730 = vld [vmem:[#allocation2 + $0x30] sm:$0xff]
  %v731 = vld [vmem:[#allocation2 + $0x48] sm:$0xff]
  %v732 = vld [vmem:[#allocation2 + $0x50] sm:$0xff]
  %v733 = vld [vmem:[#allocation2 + $0x58] sm:$0xff]
  %v734 = vld [vmem:[#allocation2 + $0x60] sm:$0xff]
  %v735 = vld [vmem:[#allocation2 + $0x68] sm:$0xff]
  %v736 = vld [vmem:[#allocation2 + $0x70] sm:$0xff]
  %749 = vrot.lane.b32.xlu0 %v725, 109
  %v750 = vpop.permute.xlu0 %749
  %751 = vrot.lane.b32.xlu0 %v726, 109
  %v752 = vpop.permute.xlu0 %751
  %753 = vrot.lane.b32.xlu0 %v727, 109
  %v754 = vpop.permute.xlu0 %753
  %755 = vrot.lane.b32.xlu0 %v728, 109
  %v756 = vpop.permute.xlu0 %755
  %757 = vrot.lane.b32.xlu0 %v729, 109
  %v758 = vpop.permute.xlu0 %757
  %759 = vrot.lane.b32.xlu0 %v730, 109
  %v760 = vpop.permute.xlu0 %759
  %761 = vrot.lane.b32.xlu0 %v731, 109
  %v762 = vpop.permute.xlu0 %761
  %763 = vrot.lane.b32.xlu0 %v732, 109
  %v764 = vpop.permute.xlu0 %763
  %765 = vrot.lane.b32.xlu0 %v733, 109
  %v766 = vpop.permute.xlu0 %765
  %767 = vrot.lane.b32.xlu0 %v734, 109
  %v768 = vpop.permute.xlu0 %767
  %769 = vrot.lane.b32.xlu0 %v735, 109
  %v770 = vpop.permute.xlu0 %769
  %771 = vrot.lane.b32.xlu0 %v736, 109
  %v772 = vpop.permute.xlu0 %771
  %vm773 = vcmask 891904
  %v774 = vsel %vm773, %v750, %v752
  %v775 = vsel %vm773, %v752, %v754
  %v776 = vsel %vm773, %v754, %v756
  %v777 = vsel %vm773, %v756, %v758
  %v778 = vsel %vm773, %v758, %v760
  %v779 = vsel %vm773, %v762, %v764
  %v780 = vsel %vm773, %v764, %v766
  %v781 = vsel %vm773, %v766, %v768
  %v782 = vsel %vm773, %v768, %v770
  %v783 = vsel %vm773, %v770, %v772
  %796 = vst [vmem:[#allocation3 + $0x300] sm:$0xff] %v774
  %797 = vst [vmem:[#allocation3 + $0x308] sm:$0xff] %v775
  %798 = vst [vmem:[#allocation3 + $0x310] sm:$0xff] %v776
  %799 = vst [vmem:[#allocation3 + $0x318] sm:$0xff] %v777
  %800 = vst [vmem:[#allocation3 + $0x320] sm:$0xff] %v778
  %801 = vst.msk [vmem:[#allocation3 + $0x328] sm:$0xff] %vm47, %v760
  %802 = vst [vmem:[#allocation3 + $0x330] sm:$0xff] %v779
  %803 = vst [vmem:[#allocation3 + $0x338] sm:$0xff] %v780
  %804 = vst [vmem:[#allocation3 + $0x340] sm:$0xff] %v781
  %805 = vst [vmem:[#allocation3 + $0x348] sm:$0xff] %v782
  %806 = vst [vmem:[#allocation3 + $0x350] sm:$0xff] %v783
  %807 = vst.msk [vmem:[#allocation3 + $0x358] sm:$0xff] %vm47, %v772
  %v808 = vld [vmem:[%s2] sm:$0xff]
  %v809 = vld [vmem:[%s2 + $0x8] sm:$0xff]
  %v810 = vld [vmem:[#allocation3] sm:$0xff]
  %v811 = vld [vmem:[#allocation3 + $0x8] sm:$0xff]
  %v812 = vld [vmem:[#allocation3 + $0x10] sm:$0xff]
  %v813 = vld [vmem:[#allocation3 + $0x18] sm:$0xff]
  %v814 = vld [vmem:[#allocation3 + $0x20] sm:$0xff]
  %v815 = vld [vmem:[#allocation3 + $0x28] sm:$0xff]
  %v816 = vld [vmem:[#allocation3 + $0x30] sm:$0xff]
  %v817 = vld [vmem:[#allocation3 + $0x38] sm:$0xff]
  %v818 = vld [vmem:[#allocation3 + $0x40] sm:$0xff]
  %v819 = vld [vmem:[#allocation3 + $0x48] sm:$0xff]
  %v820 = vld [vmem:[#allocation3 + $0x50] sm:$0xff]
  %v821 = vld [vmem:[#allocation3 + $0x58] sm:$0xff]
  %v822 = vld [vmem:[#allocation3 + $0x60] sm:$0xff]
  %v823 = vld [vmem:[#allocation3 + $0x68] sm:$0xff]
  %v824 = vld [vmem:[#allocation3 + $0x70] sm:$0xff]
  %v825 = vld [vmem:[#allocation3 + $0x78] sm:$0xff]
  %v826 = vld [vmem:[#allocation3 + $0x80] sm:$0xff]
  %v827 = vld [vmem:[#allocation3 + $0x88] sm:$0xff]
  %v828 = vld [vmem:[#allocation3 + $0x90] sm:$0xff]
  %v829 = vld [vmem:[#allocation3 + $0x98] sm:$0xff]
  %v830 = vld [vmem:[#allocation3 + $0xa0] sm:$0xff]
  %v831 = vld [vmem:[#allocation3 + $0xa8] sm:$0xff]
  %v832 = vld [vmem:[#allocation3 + $0xb0] sm:$0xff]
  %v833 = vld [vmem:[#allocation3 + $0xb8] sm:$0xff]
  %v834 = vld [vmem:[#allocation3 + $0xc0] sm:$0xff]
  %v835 = vld [vmem:[#allocation3 + $0xc8] sm:$0xff]
  %v836 = vld [vmem:[#allocation3 + $0xd0] sm:$0xff]
  %v837 = vld [vmem:[#allocation3 + $0xd8] sm:$0xff]
  %v838 = vld [vmem:[#allocation3 + $0xe0] sm:$0xff]
  %v839 = vld [vmem:[#allocation3 + $0xe8] sm:$0xff]
  %v840 = vld [vmem:[#allocation3 + $0xf0] sm:$0xff]
  %v841 = vld [vmem:[#allocation3 + $0xf8] sm:$0xff]
  %v842 = vld [vmem:[#allocation3 + $0x100] sm:$0xff]
  %v843 = vld [vmem:[#allocation3 + $0x108] sm:$0xff]
  %v844 = vld [vmem:[#allocation3 + $0x110] sm:$0xff]
  %v845 = vld [vmem:[#allocation3 + $0x118] sm:$0xff]
  %v846 = vld [vmem:[#allocation3 + $0x120] sm:$0xff]
  %v847 = vld [vmem:[#allocation3 + $0x128] sm:$0xff]
  %v848 = vld [vmem:[#allocation3 + $0x130] sm:$0xff]
  %v849 = vld [vmem:[#allocation3 + $0x138] sm:$0xff]
  %v850 = vld [vmem:[#allocation3 + $0x140] sm:$0xff]
  %v851 = vld [vmem:[#allocation3 + $0x148] sm:$0xff]
  %v852 = vld [vmem:[#allocation3 + $0x150] sm:$0xff]
  %v853 = vld [vmem:[#allocation3 + $0x158] sm:$0xff]
  %v854 = vld [vmem:[#allocation3 + $0x160] sm:$0xff]
  %v855 = vld [vmem:[#allocation3 + $0x168] sm:$0xff]
  %v856 = vld [vmem:[#allocation3 + $0x170] sm:$0xff]
  %v857 = vld [vmem:[#allocation3 + $0x178] sm:$0xff]
  %v858 = vld [vmem:[#allocation3 + $0x180] sm:$0xff]
  %v859 = vld [vmem:[#allocation3 + $0x188] sm:$0xff]
  %v860 = vld [vmem:[#allocation3 + $0x190] sm:$0xff]
  %v861 = vld [vmem:[#allocation3 + $0x198] sm:$0xff]
  %v862 = vld [vmem:[#allocation3 + $0x1a0] sm:$0xff]
  %v863 = vld [vmem:[#allocation3 + $0x1a8] sm:$0xff]
  %v864 = vld [vmem:[#allocation3 + $0x1b0] sm:$0xff]
  %v865 = vld [vmem:[#allocation3 + $0x1b8] sm:$0xff]
  %v866 = vld [vmem:[#allocation3 + $0x1c0] sm:$0xff]
  %v867 = vld [vmem:[#allocation3 + $0x1c8] sm:$0xff]
  %v868 = vld [vmem:[#allocation3 + $0x1d0] sm:$0xff]
  %v869 = vld [vmem:[#allocation3 + $0x1d8] sm:$0xff]
  %v870 = vld [vmem:[#allocation3 + $0x1e0] sm:$0xff]
  %v871 = vld [vmem:[#allocation3 + $0x1e8] sm:$0xff]
  %v872 = vld [vmem:[#allocation3 + $0x1f0] sm:$0xff]
  %v873 = vld [vmem:[#allocation3 + $0x1f8] sm:$0xff]
  %v874 = vld [vmem:[#allocation3 + $0x200] sm:$0xff]
  %v875 = vld [vmem:[#allocation3 + $0x208] sm:$0xff]
  %v876 = vld [vmem:[#allocation3 + $0x210] sm:$0xff]
  %v877 = vld [vmem:[#allocation3 + $0x218] sm:$0xff]
  %v878 = vld [vmem:[#allocation3 + $0x220] sm:$0xff]
  %v879 = vld [vmem:[#allocation3 + $0x228] sm:$0xff]
  %v880 = vld [vmem:[#allocation3 + $0x230] sm:$0xff]
  %v881 = vld [vmem:[#allocation3 + $0x238] sm:$0xff]
  %v882 = vld [vmem:[#allocation3 + $0x240] sm:$0xff]
  %v883 = vld [vmem:[#allocation3 + $0x248] sm:$0xff]
  %v884 = vld [vmem:[#allocation3 + $0x250] sm:$0xff]
  %v885 = vld [vmem:[#allocation3 + $0x258] sm:$0xff]
  %v886 = vld [vmem:[#allocation3 + $0x260] sm:$0xff]
  %v887 = vld [vmem:[#allocation3 + $0x268] sm:$0xff]
  %v888 = vld [vmem:[#allocation3 + $0x270] sm:$0xff]
  %v889 = vld [vmem:[#allocation3 + $0x278] sm:$0xff]
  %v890 = vld [vmem:[#allocation3 + $0x280] sm:$0xff]
  %v891 = vld [vmem:[#allocation3 + $0x288] sm:$0xff]
  %v892 = vld [vmem:[#allocation3 + $0x290] sm:$0xff]
  %v893 = vld [vmem:[#allocation3 + $0x298] sm:$0xff]
  %v894 = vld [vmem:[#allocation3 + $0x2a0] sm:$0xff]
  %v895 = vld [vmem:[#allocation3 + $0x2a8] sm:$0xff]
  %v896 = vld [vmem:[#allocation3 + $0x2b0] sm:$0xff]
  %v897 = vld [vmem:[#allocation3 + $0x2b8] sm:$0xff]
  %v898 = vld [vmem:[#allocation3 + $0x2c0] sm:$0xff]
  %v899 = vld [vmem:[#allocation3 + $0x2c8] sm:$0xff]
  %v900 = vld [vmem:[#allocation3 + $0x2d0] sm:$0xff]
  %v901 = vld [vmem:[#allocation3 + $0x2d8] sm:$0xff]
  %v902 = vld [vmem:[#allocation3 + $0x2e0] sm:$0xff]
  %v903 = vld [vmem:[#allocation3 + $0x2e8] sm:$0xff]
  %v904 = vld [vmem:[#allocation3 + $0x2f0] sm:$0xff]
  %v905 = vld [vmem:[#allocation3 + $0x2f8] sm:$0xff]
  %v906 = vld [vmem:[#allocation3 + $0x300] sm:$0xff]
  %v907 = vld [vmem:[#allocation3 + $0x308] sm:$0xff]
  %v908 = vld [vmem:[#allocation3 + $0x310] sm:$0xff]
  %v909 = vld [vmem:[#allocation3 + $0x318] sm:$0xff]
  %v910 = vld [vmem:[#allocation3 + $0x320] sm:$0xff]
  %v911 = vld [vmem:[#allocation3 + $0x328] sm:$0xff]
  %v912 = vld [vmem:[#allocation3 + $0x330] sm:$0xff]
  %v913 = vld [vmem:[#allocation3 + $0x338] sm:$0xff]
  %v914 = vld [vmem:[#allocation3 + $0x340] sm:$0xff]
  %v915 = vld [vmem:[#allocation3 + $0x348] sm:$0xff]
  %v916 = vld [vmem:[#allocation3 + $0x350] sm:$0xff]
  %v917 = vld [vmem:[#allocation3 + $0x358] sm:$0xff]
  %vm918 = vcmask 130048
  %v920 = vsel %vm918, %v809, 0
  %922 = vmatpush.msra.mxu0 %v900
  %923 = vmatpush.msra.mxu0 %v894
  %924 = vmatpush.msra.mxu0 %v888
  %925 = vmatpush.msra.mxu0 %v882
  %926 = vmatpush.msra.mxu0 %v876
  %927 = vmatpush.msra.mxu0 %v870
  %928 = vmatpush.msra.mxu0 %v864
  %929 = vmatpush.msra.mxu0 %v858
  %930 = vmatpush.msra.mxu0 %v852
  %931 = vmatpush.msra.mxu0 %v846
  %932 = vmatpush.msra.mxu0 %v840
  %933 = vmatpush.msra.mxu0 %v834
  %934 = vmatpush.msra.mxu0 %v828
  %935 = vmatpush.msra.mxu0 %v822
  %936 = vmatpush.msra.mxu0 %v816
  %937 = vmatpush.msra.mxu0 %v810
  %938 = vmatmul.f32.gmra.mxu0 %v808
  %v939 = vpop.f32.mrf.mxu0
  %v940 = vadd.f32 %v104, %v939
  %941 = vdwg.mxu0
  %942 = vmatpush.msra.mxu0 0.0
  %943 = vmatpush.msra.mxu0 0.0
  %944 = vmatpush.msra.mxu0 0.0
  %945 = vmatpush.msra.mxu0 0.0
  %946 = vmatpush.msra.mxu0 0.0
  %947 = vmatpush.msra.mxu0 0.0
  %948 = vmatpush.msra.mxu0 0.0
  %949 = vmatpush.msra.mxu0 0.0
  %950 = vmatpush.msra.mxu0 0.0
  %951 = vmatpush.msra.mxu0 0.0
  %952 = vmatpush.msra.mxu0 0.0
  %953 = vmatpush.msra.mxu0 0.0
  %954 = vmatpush.msra.mxu0 0.0
  %955 = vmatpush.msra.mxu0 0.0
  %956 = vmatpush.msra.mxu0 %v912
  %957 = vmatpush.msra.mxu0 %v906
  %958 = vmatmul.f32.gmra.mxu0 %v920
  %v959 = vpop.f32.mrf.mxu0
  %v960 = vadd.f32 %v940, %v959
  %961 = vdwg.mxu0
  %962 = vmatpush.msra.mxu0 %v901
  %963 = vmatpush.msra.mxu0 %v895
  %964 = vmatpush.msra.mxu0 %v889
  %965 = vmatpush.msra.mxu0 %v883
  %966 = vmatpush.msra.mxu0 %v877
  %967 = vmatpush.msra.mxu0 %v871
  %968 = vmatpush.msra.mxu0 %v865
  %969 = vmatpush.msra.mxu0 %v859
  %970 = vmatpush.msra.mxu0 %v853
  %971 = vmatpush.msra.mxu0 %v847
  %972 = vmatpush.msra.mxu0 %v841
  %973 = vmatpush.msra.mxu0 %v835
  %974 = vmatpush.msra.mxu0 %v829
  %975 = vmatpush.msra.mxu0 %v823
  %976 = vmatpush.msra.mxu0 %v817
  %977 = vmatpush.msra.mxu0 %v811
  %978 = vmatmul.f32.gmra.mxu0 %v808
  %v979 = vpop.f32.mrf.mxu0
  %v980 = vadd.f32 %v105, %v979
  %981 = vdwg.mxu0
  %982 = vmatpush.msra.mxu0 0.0
  %983 = vmatpush.msra.mxu0 0.0
  %984 = vmatpush.msra.mxu0 0.0
  %985 = vmatpush.msra.mxu0 0.0
  %986 = vmatpush.msra.mxu0 0.0
  %987 = vmatpush.msra.mxu0 0.0
  %988 = vmatpush.msra.mxu0 0.0
  %989 = vmatpush.msra.mxu0 0.0
  %990 = vmatpush.msra.mxu0 0.0
  %991 = vmatpush.msra.mxu0 0.0
  %992 = vmatpush.msra.mxu0 0.0
  %993 = vmatpush.msra.mxu0 0.0
  %994 = vmatpush.msra.mxu0 0.0
  %995 = vmatpush.msra.mxu0 0.0
  %996 = vmatpush.msra.mxu0 %v913
  %997 = vmatpush.msra.mxu0 %v907
  %998 = vmatmul.f32.gmra.mxu0 %v920
  %v999 = vpop.f32.mrf.mxu0
  %v1000 = vadd.f32 %v980, %v999
  %1001 = vdwg.mxu0
  %1002 = vmatpush.msra.mxu0 %v902
  %1003 = vmatpush.msra.mxu0 %v896
  %1004 = vmatpush.msra.mxu0 %v890
  %1005 = vmatpush.msra.mxu0 %v884
  %1006 = vmatpush.msra.mxu0 %v878
  %1007 = vmatpush.msra.mxu0 %v872
  %1008 = vmatpush.msra.mxu0 %v866
  %1009 = vmatpush.msra.mxu0 %v860
  %1010 = vmatpush.msra.mxu0 %v854
  %1011 = vmatpush.msra.mxu0 %v848
  %1012 = vmatpush.msra.mxu0 %v842
  %1013 = vmatpush.msra.mxu0 %v836
  %1014 = vmatpush.msra.mxu0 %v830
  %1015 = vmatpush.msra.mxu0 %v824
  %1016 = vmatpush.msra.mxu0 %v818
  %1017 = vmatpush.msra.mxu0 %v812
  %1018 = vmatmul.f32.gmra.mxu0 %v808
  %v1019 = vpop.f32.mrf.mxu0
  %v1020 = vadd.f32 %v106, %v1019
  %1021 = vdwg.mxu0
  %1022 = vmatpush.msra.mxu0 0.0
  %1023 = vmatpush.msra.mxu0 0.0
  %1024 = vmatpush.msra.mxu0 0.0
  %1025 = vmatpush.msra.mxu0 0.0
  %1026 = vmatpush.msra.mxu0 0.0
  %1027 = vmatpush.msra.mxu0 0.0
  %1028 = vmatpush.msra.mxu0 0.0
  %1029 = vmatpush.msra.mxu0 0.0
  %1030 = vmatpush.msra.mxu0 0.0
  %1031 = vmatpush.msra.mxu0 0.0
  %1032 = vmatpush.msra.mxu0 0.0
  %1033 = vmatpush.msra.mxu0 0.0
  %1034 = vmatpush.msra.mxu0 0.0
  %1035 = vmatpush.msra.mxu0 0.0
  %1036 = vmatpush.msra.mxu0 %v914
  %1037 = vmatpush.msra.mxu0 %v908
  %1038 = vmatmul.f32.gmra.mxu0 %v920
  %v1039 = vpop.f32.mrf.mxu0
  %v1040 = vadd.f32 %v1020, %v1039
  %1041 = vdwg.mxu0
  %1042 = vmatpush.msra.mxu0 %v903
  %1043 = vmatpush.msra.mxu0 %v897
  %1044 = vmatpush.msra.mxu0 %v891
  %1045 = vmatpush.msra.mxu0 %v885
  %1046 = vmatpush.msra.mxu0 %v879
  %1047 = vmatpush.msra.mxu0 %v873
  %1048 = vmatpush.msra.mxu0 %v867
  %1049 = vmatpush.msra.mxu0 %v861
  %1050 = vmatpush.msra.mxu0 %v855
  %1051 = vmatpush.msra.mxu0 %v849
  %1052 = vmatpush.msra.mxu0 %v843
  %1053 = vmatpush.msra.mxu0 %v837
  %1054 = vmatpush.msra.mxu0 %v831
  %1055 = vmatpush.msra.mxu0 %v825
  %1056 = vmatpush.msra.mxu0 %v819
  %1057 = vmatpush.msra.mxu0 %v813
  %1058 = vmatmul.f32.gmra.mxu0 %v808
  %v1059 = vpop.f32.mrf.mxu0
  %v1060 = vadd.f32 %v107, %v1059
  %1061 = vdwg.mxu0
  %1062 = vmatpush.msra.mxu0 0.0
  %1063 = vmatpush.msra.mxu0 0.0
  %1064 = vmatpush.msra.mxu0 0.0
  %1065 = vmatpush.msra.mxu0 0.0
  %1066 = vmatpush.msra.mxu0 0.0
  %1067 = vmatpush.msra.mxu0 0.0
  %1068 = vmatpush.msra.mxu0 0.0
  %1069 = vmatpush.msra.mxu0 0.0
  %1070 = vmatpush.msra.mxu0 0.0
  %1071 = vmatpush.msra.mxu0 0.0
  %1072 = vmatpush.msra.mxu0 0.0
  %1073 = vmatpush.msra.mxu0 0.0
  %1074 = vmatpush.msra.mxu0 0.0
  %1075 = vmatpush.msra.mxu0 0.0
  %1076 = vmatpush.msra.mxu0 %v915
  %1077 = vmatpush.msra.mxu0 %v909
  %1078 = vmatmul.f32.gmra.mxu0 %v920
  %v1079 = vpop.f32.mrf.mxu0
  %v1080 = vadd.f32 %v1060, %v1079
  %1081 = vdwg.mxu0
  %1082 = vmatpush.msra.mxu0 %v904
  %1083 = vmatpush.msra.mxu0 %v898
  %1084 = vmatpush.msra.mxu0 %v892
  %1085 = vmatpush.msra.mxu0 %v886
  %1086 = vmatpush.msra.mxu0 %v880
  %1087 = vmatpush.msra.mxu0 %v874
  %1088 = vmatpush.msra.mxu0 %v868
  %1089 = vmatpush.msra.mxu0 %v862
  %1090 = vmatpush.msra.mxu0 %v856
  %1091 = vmatpush.msra.mxu0 %v850
  %1092 = vmatpush.msra.mxu0 %v844
  %1093 = vmatpush.msra.mxu0 %v838
  %1094 = vmatpush.msra.mxu0 %v832
  %1095 = vmatpush.msra.mxu0 %v826
  %1096 = vmatpush.msra.mxu0 %v820
  %1097 = vmatpush.msra.mxu0 %v814
  %1098 = vmatmul.f32.gmra.mxu0 %v808
  %v1099 = vpop.f32.mrf.mxu0
  %v1100 = vadd.f32 %v108, %v1099
  %1101 = vdwg.mxu0
  %1102 = vmatpush.msra.mxu0 0.0
  %1103 = vmatpush.msra.mxu0 0.0
  %1104 = vmatpush.msra.mxu0 0.0
  %1105 = vmatpush.msra.mxu0 0.0
  %1106 = vmatpush.msra.mxu0 0.0
  %1107 = vmatpush.msra.mxu0 0.0
  %1108 = vmatpush.msra.mxu0 0.0
  %1109 = vmatpush.msra.mxu0 0.0
  %1110 = vmatpush.msra.mxu0 0.0
  %1111 = vmatpush.msra.mxu0 0.0
  %1112 = vmatpush.msra.mxu0 0.0
  %1113 = vmatpush.msra.mxu0 0.0
  %1114 = vmatpush.msra.mxu0 0.0
  %1115 = vmatpush.msra.mxu0 0.0
  %1116 = vmatpush.msra.mxu0 %v916
  %1117 = vmatpush.msra.mxu0 %v910
  %1118 = vmatmul.f32.gmra.mxu0 %v920
  %v1119 = vpop.f32.mrf.mxu0
  %v1120 = vadd.f32 %v1100, %v1119
  %1121 = vdwg.mxu0
  %1122 = vmatpush.msra.mxu0 %v905
  %1123 = vmatpush.msra.mxu0 %v899
  %1124 = vmatpush.msra.mxu0 %v893
  %1125 = vmatpush.msra.mxu0 %v887
  %1126 = vmatpush.msra.mxu0 %v881
  %1127 = vmatpush.msra.mxu0 %v875
  %1128 = vmatpush.msra.mxu0 %v869
  %1129 = vmatpush.msra.mxu0 %v863
  %1130 = vmatpush.msra.mxu0 %v857
  %1131 = vmatpush.msra.mxu0 %v851
  %1132 = vmatpush.msra.mxu0 %v845
  %1133 = vmatpush.msra.mxu0 %v839
  %1134 = vmatpush.msra.mxu0 %v833
  %1135 = vmatpush.msra.mxu0 %v827
  %1136 = vmatpush.msra.mxu0 %v821
  %1137 = vmatpush.msra.mxu0 %v815
  %1138 = vmatmul.f32.gmra.mxu0 %v808
  %v1139 = vpop.f32.mrf.mxu0
  %v1140 = vadd.f32 %v109, %v1139
  %1141 = vdwg.mxu0
  %1142 = vmatpush.msra.mxu0 0.0
  %1143 = vmatpush.msra.mxu0 0.0
  %1144 = vmatpush.msra.mxu0 0.0
  %1145 = vmatpush.msra.mxu0 0.0
  %1146 = vmatpush.msra.mxu0 0.0
  %1147 = vmatpush.msra.mxu0 0.0
  %1148 = vmatpush.msra.mxu0 0.0
  %1149 = vmatpush.msra.mxu0 0.0
  %1150 = vmatpush.msra.mxu0 0.0
  %1151 = vmatpush.msra.mxu0 0.0
  %1152 = vmatpush.msra.mxu0 0.0
  %1153 = vmatpush.msra.mxu0 0.0
  %1154 = vmatpush.msra.mxu0 0.0
  %1155 = vmatpush.msra.mxu0 0.0
  %1156 = vmatpush.msra.mxu0 %v917
  %1157 = vmatpush.msra.mxu0 %v911
  %1158 = vmatmul.f32.gmra.mxu0 %v920
  %v1159 = vpop.f32.mrf.mxu0
  %v1160 = vadd.f32 %v1140, %v1159
  %1161 = vdwg.mxu0
  %v1162 = vmul.f32 %v960, %v75
  %v1163 = vmul.f32 %v1000, %v76
  %v1164 = vmul.f32 %v1040, %v77
  %v1165 = vmul.f32 %v1080, %v78
  %v1166 = vmul.f32 %v1120, %v79
  %v1167 = vmul.f32 %v1160, %v80
  %v1168 = vadd.f32 %v1162, %v1163
  %v1169 = vadd.f32 %v1168, %v1164
  %v1170 = vadd.f32 %v1169, %v1165
  %v1171 = vadd.f32 %v1170, %v1166
  %v1172 = vsel %vm47, %v1167, 0.0
  %v1173 = vadd.f32 %v1171, %v1172
  %1174 = vadd.xlane.f32.xlu0 %v1173
  %v1175 = vpop.xlane.xlu0 %1174
  %v1176 = vmul.f32 %v1162, %v1162
  %v1177 = vmul.f32 %v1163, %v1163
  %v1178 = vmul.f32 %v1164, %v1164
  %v1179 = vmul.f32 %v1165, %v1165
  %v1180 = vmul.f32 %v1166, %v1166
  %v1181 = vmul.f32 %v1167, %v1167
  %v1182 = vadd.f32 %v1176, %v1177
  %v1183 = vadd.f32 %v1182, %v1178
  %v1184 = vadd.f32 %v1183, %v1179
  %v1185 = vadd.f32 %v1184, %v1180
  %v1186 = vsel %vm47, %v1181, 0.0
  %v1187 = vadd.f32 %v1185, %v1186
  %1188 = vadd.xlane.f32.xlu0 %v1187
  %v1189 = vpop.xlane.xlu0 %1188
  %v1190 = vmul.f32 %v1175, 0.001953125
  %v1191 = vmul.f32 %v1189, 0.001953125
  %v1192 = vmul.f32 %v1190, %v1190
  %v1193 = vsub.f32 %v1191, %v1192
  %v1194 = vld [vmem:[%s8] sm:$0xff]
  %v1195 = vadd.f32 %v1193, 1e-05
  %v1196 = vrsqrt.pop %v1195
  %v1197 = vmul.f32 %v1196, %v1195
  %v1198 = vmul.f32 %v1197, %v1196
  %v1199 = vmul.f32 0.5, %v1198
  %v1200 = vsub.f32 1.5, %v1199
  %v1201 = vmul.f32 %v1196, %v1200
  %vm1202 = vweird.f32 %v1195
  %vm1203 = vweird.f32 %v1196
  %vm1204 = vmor %vm1202, %vm1203
  %v1205 = vsel %vm1204, %v1196, %v1201
  %v1206 = vmul.f32 %v1194, %v1205
  %v1207 = vld [vmem:[%s9] sm:$0xff]
  %v1208 = vmul.f32 %v1190, %v1206
  %v1209 = vsub.f32 %v1207, %v1208
  %1211 = vset.pattern.permute.xlu0 0
  %1212 = vperm.xlu0 %1211, %v1206
  %v1213 = vpop.permute.xlu0 %1212
  %v1215 = vmul.f32 %v1162, %v1213
  %v1216 = vmul.f32 %v1163, %v1213
  %v1217 = vmul.f32 %v1164, %v1213
  %v1218 = vmul.f32 %v1165, %v1213
  %v1219 = vmul.f32 %v1166, %v1213
  %v1220 = vmul.f32 %v1167, %v1213
  %1222 = vset.pattern.permute.xlu0 0
  %1223 = vperm.xlu0 %1222, %v1209
  %v1224 = vpop.permute.xlu0 %1223
  %v1226 = vadd.f32 %v1215, %v1224
  %v1227 = vadd.f32 %v1216, %v1224
  %v1228 = vadd.f32 %v1217, %v1224
  %v1229 = vadd.f32 %v1218, %v1224
  %v1230 = vadd.f32 %v1219, %v1224
  %v1231 = vadd.f32 %v1220, %v1224
  %v1232 = vmul.f32 %v1226, 0.5
  %v1233 = vmul.f32 %v1227, 0.5
  %v1234 = vmul.f32 %v1228, 0.5
  %v1235 = vmul.f32 %v1229, 0.5
  %v1236 = vmul.f32 %v1230, 0.5
  %v1237 = vmul.f32 %v1231, 0.5
  %v1238 = vtanh.pop %v1232
  %v1239 = vtanh.pop %v1233
  %v1240 = vtanh.pop %v1234
  %v1241 = vtanh.pop %v1235
  %v1242 = vtanh.pop %v1236
  %v1243 = vtanh.pop %v1237
  %v1244 = vmul.f32 %v1232, %v1238
  %v1245 = vmul.f32 %v1233, %v1239
  %v1246 = vmul.f32 %v1234, %v1240
  %v1247 = vmul.f32 %v1235, %v1241
  %v1248 = vmul.f32 %v1236, %v1242
  %v1249 = vmul.f32 %v1237, %v1243
  %v1250 = vadd.f32 %v1232, %v1244
  %v1251 = vadd.f32 %v1233, %v1245
  %v1252 = vadd.f32 %v1234, %v1246
  %v1253 = vadd.f32 %v1235, %v1247
  %v1254 = vadd.f32 %v1236, %v1248
  %v1255 = vadd.f32 %v1237, %v1249
  %v1256 = vmul.f32 %v1250, %v75
  %v1257 = vmul.f32 %v1251, %v76
  %v1258 = vmul.f32 %v1252, %v77
  %v1259 = vmul.f32 %v1253, %v78
  %v1260 = vmul.f32 %v1254, %v79
  %v1261 = vmul.f32 %v1255, %v80
  %1262 = vst [vmem:[#allocation2 + $0x8] sm:$0xff] %v1256
  %1263 = vst [vmem:[#allocation2 + $0x10] sm:$0xff] %v1257
  %1264 = vst [vmem:[#allocation2 + $0x18] sm:$0xff] %v1258
  %1265 = vst [vmem:[#allocation2 + $0x20] sm:$0xff] %v1259
  %1266 = vst [vmem:[#allocation2 + $0x28] sm:$0xff] %v1260
  %1267 = vst.msk [vmem:[#allocation2 + $0x30] sm:$0xff] %vm47, %v1261
  %v1268 = vld [vmem:[#allocation2] sm:$0xff]
  %v1269 = vld [vmem:[#allocation2 + $0x8] sm:$0xff]
  %v1270 = vld [vmem:[#allocation2 + $0x10] sm:$0xff]
  %v1271 = vld [vmem:[#allocation2 + $0x18] sm:$0xff]
  %v1272 = vld [vmem:[#allocation2 + $0x20] sm:$0xff]
  %v1273 = vld [vmem:[#allocation2 + $0x28] sm:$0xff]
  %v1274 = vld [vmem:[#allocation2 + $0x40] sm:$0xff]
  %v1275 = vld [vmem:[#allocation2 + $0x48] sm:$0xff]
  %v1276 = vld [vmem:[#allocation2 + $0x50] sm:$0xff]
  %v1277 = vld [vmem:[#allocation2 + $0x58] sm:$0xff]
  %v1278 = vld [vmem:[#allocation2 + $0x60] sm:$0xff]
  %v1279 = vld [vmem:[#allocation2 + $0x68] sm:$0xff]
  %1292 = vrot.lane.b32.xlu0 %v1268, 19
  %v1293 = vpop.permute.xlu0 %1292
  %1294 = vrot.lane.b32.xlu0 %v1269, 19
  %v1295 = vpop.permute.xlu0 %1294
  %1296 = vrot.lane.b32.xlu0 %v1270, 19
  %v1297 = vpop.permute.xlu0 %1296
  %1298 = vrot.lane.b32.xlu0 %v1271, 19
  %v1299 = vpop.permute.xlu0 %1298
  %1300 = vrot.lane.b32.xlu0 %v1272, 19
  %v1301 = vpop.permute.xlu0 %1300
  %1302 = vrot.lane.b32.xlu0 %v1273, 19
  %v1303 = vpop.permute.xlu0 %1302
  %1304 = vrot.lane.b32.xlu0 %v1274, 19
  %v1305 = vpop.permute.xlu0 %1304
  %1306 = vrot.lane.b32.xlu0 %v1275, 19
  %v1307 = vpop.permute.xlu0 %1306
  %1308 = vrot.lane.b32.xlu0 %v1276, 19
  %v1309 = vpop.permute.xlu0 %1308
  %1310 = vrot.lane.b32.xlu0 %v1277, 19
  %v1311 = vpop.permute.xlu0 %1310
  %1312 = vrot.lane.b32.xlu0 %v1278, 19
  %v1313 = vpop.permute.xlu0 %1312
  %1314 = vrot.lane.b32.xlu0 %v1279, 19
  %v1315 = vpop.permute.xlu0 %1314
  %v1316 = vsel %vm158, %v1293, %v1295
  %v1317 = vsel %vm158, %v1295, %v1297
  %v1318 = vsel %vm158, %v1297, %v1299
  %v1319 = vsel %vm158, %v1299, %v1301
  %v1320 = vsel %vm158, %v1301, %v1303
  %v1321 = vsel %vm158, %v1305, %v1307
  %v1322 = vsel %vm158, %v1307, %v1309
  %v1323 = vsel %vm158, %v1309, %v1311
  %v1324 = vsel %vm158, %v1311, %v1313
  %v1325 = vsel %vm158, %v1313, %v1315
  %1338 = vst [vmem:[#allocation3] sm:$0xff] %v1316
  %1339 = vst [vmem:[#allocation3 + $0x8] sm:$0xff] %v1317
  %1340 = vst [vmem:[#allocation3 + $0x10] sm:$0xff] %v1318
  %1341 = vst [vmem:[#allocation3 + $0x18] sm:$0xff] %v1319
  %1342 = vst [vmem:[#allocation3 + $0x20] sm:$0xff] %v1320
  %1343 = vst.msk [vmem:[#allocation3 + $0x28] sm:$0xff] %vm47, %v1303
  %1344 = vst [vmem:[#allocation3 + $0x30] sm:$0xff] %v1321
  %1345 = vst [vmem:[#allocation3 + $0x38] sm:$0xff] %v1322
  %1346 = vst [vmem:[#allocation3 + $0x40] sm:$0xff] %v1323
  %1347 = vst [vmem:[#allocation3 + $0x48] sm:$0xff] %v1324
  %1348 = vst [vmem:[#allocation3 + $0x50] sm:$0xff] %v1325
  %1349 = vst.msk [vmem:[#allocation3 + $0x58] sm:$0xff] %vm47, %v1315
  %v1350 = vld [vmem:[#allocation2] sm:$0xff]
  %v1351 = vld [vmem:[#allocation2 + $0x8] sm:$0xff]
  %v1352 = vld [vmem:[#allocation2 + $0x10] sm:$0xff]
  %v1353 = vld [vmem:[#allocation2 + $0x18] sm:$0xff]
  %v1354 = vld [vmem:[#allocation2 + $0x20] sm:$0xff]
  %v1355 = vld [vmem:[#allocation2 + $0x28] sm:$0xff]
  %v1356 = vld [vmem:[#allocation2 + $0x40] sm:$0xff]
  %v1357 = vld [vmem:[#allocation2 + $0x48] sm:$0xff]
  %v1358 = vld [vmem:[#allocation2 + $0x50] sm:$0xff]
  %v1359 = vld [vmem:[#allocation2 + $0x58] sm:$0xff]
  %v1360 = vld [vmem:[#allocation2 + $0x60] sm:$0xff]
  %v1361 = vld [vmem:[#allocation2 + $0x68] sm:$0xff]
  %1374 = vrot.lane.b32.xlu0 %v1350, 18
  %v1375 = vpop.permute.xlu0 %1374
  %1376 = vrot.lane.b32.xlu0 %v1351, 18
  %v1377 = vpop.permute.xlu0 %1376
  %1378 = vrot.lane.b32.xlu0 %v1352, 18
  %v1379 = vpop.permute.xlu0 %1378
  %1380 = vrot.lane.b32.xlu0 %v1353, 18
  %v1381 = vpop.permute.xlu0 %1380
  %1382 = vrot.lane.b32.xlu0 %v1354, 18
  %v1383 = vpop.permute.xlu0 %1382
  %1384 = vrot.lane.b32.xlu0 %v1355, 18
  %v1385 = vpop.permute.xlu0 %1384
  %1386 = vrot.lane.b32.xlu0 %v1356, 18
  %v1387 = vpop.permute.xlu0 %1386
  %1388 = vrot.lane.b32.xlu0 %v1357, 18
  %v1389 = vpop.permute.xlu0 %1388
  %1390 = vrot.lane.b32.xlu0 %v1358, 18
  %v1391 = vpop.permute.xlu0 %1390
  %1392 = vrot.lane.b32.xlu0 %v1359, 18
  %v1393 = vpop.permute.xlu0 %1392
  %1394 = vrot.lane.b32.xlu0 %v1360, 18
  %v1395 = vpop.permute.xlu0 %1394
  %1396 = vrot.lane.b32.xlu0 %v1361, 18
  %v1397 = vpop.permute.xlu0 %1396
  %v1398 = vsel %vm241, %v1375, %v1377
  %v1399 = vsel %vm241, %v1377, %v1379
  %v1400 = vsel %vm241, %v1379, %v1381
  %v1401 = vsel %vm241, %v1381, %v1383
  %v1402 = vsel %vm241, %v1383, %v1385
  %v1403 = vsel %vm241, %v1387, %v1389
  %v1404 = vsel %vm241, %v1389, %v1391
  %v1405 = vsel %vm241, %v1391, %v1393
  %v1406 = vsel %vm241, %v1393, %v1395
  %v1407 = vsel %vm241, %v1395, %v1397
  %1420 = vst [vmem:[#allocation3 + $0x60] sm:$0xff] %v1398
  %1421 = vst [vmem:[#allocation3 + $0x68] sm:$0xff] %v1399
  %1422 = vst [vmem:[#allocation3 + $0x70] sm:$0xff] %v1400
  %1423 = vst [vmem:[#allocation3 + $0x78] sm:$0xff] %v1401
  %1424 = vst [vmem:[#allocation3 + $0x80] sm:$0xff] %v1402
  %1425 = vst.msk [vmem:[#allocation3 + $0x88] sm:$0xff] %vm47, %v1385
  %1426 = vst [vmem:[#allocation3 + $0x90] sm:$0xff] %v1403
  %1427 = vst [vmem:[#allocation3 + $0x98] sm:$0xff] %v1404
  %1428 = vst [vmem:[#allocation3 + $0xa0] sm:$0xff] %v1405
  %1429 = vst [vmem:[#allocation3 + $0xa8] sm:$0xff] %v1406
  %1430 = vst [vmem:[#allocation3 + $0xb0] sm:$0xff] %v1407
  %1431 = vst.msk [vmem:[#allocation3 + $0xb8] sm:$0xff] %vm47, %v1397
  %v1432 = vld [vmem:[#allocation2] sm:$0xff]
  %v1433 = vld [vmem:[#allocation2 + $0x8] sm:$0xff]
  %v1434 = vld [vmem:[#allocation2 + $0x10] sm:$0xff]
  %v1435 = vld [vmem:[#allocation2 + $0x18] sm:$0xff]
  %v1436 = vld [vmem:[#allocation2 + $0x20] sm:$0xff]
  %v1437 = vld [vmem:[#allocation2 + $0x28] sm:$0xff]
  %v1438 = vld [vmem:[#allocation2 + $0x40] sm:$0xff]
  %v1439 = vld [vmem:[#allocation2 + $0x48] sm:$0xff]
  %v1440 = vld [vmem:[#allocation2 + $0x50] sm:$0xff]
  %v1441 = vld [vmem:[#allocation2 + $0x58] sm:$0xff]
  %v1442 = vld [vmem:[#allocation2 + $0x60] sm:$0xff]
  %v1443 = vld [vmem:[#allocation2 + $0x68] sm:$0xff]
  %1456 = vrot.lane.b32.xlu0 %v1432, 17
  %v1457 = vpop.permute.xlu0 %1456
  %1458 = vrot.lane.b32.xlu0 %v1433, 17
  %v1459 = vpop.permute.xlu0 %1458
  %1460 = vrot.lane.b32.xlu0 %v1434, 17
  %v1461 = vpop.permute.xlu0 %1460
  %1462 = vrot.lane.b32.xlu0 %v1435, 17
  %v1463 = vpop.permute.xlu0 %1462
  %1464 = vrot.lane.b32.xlu0 %v1436, 17
  %v1465 = vpop.permute.xlu0 %1464
  %1466 = vrot.lane.b32.xlu0 %v1437, 17
  %v1467 = vpop.permute.xlu0 %1466
  %1468 = vrot.lane.b32.xlu0 %v1438, 17
  %v1469 = vpop.permute.xlu0 %1468
  %1470 = vrot.lane.b32.xlu0 %v1439, 17
  %v1471 = vpop.permute.xlu0 %1470
  %1472 = vrot.lane.b32.xlu0 %v1440, 17
  %v1473 = vpop.permute.xlu0 %1472
  %1474 = vrot.lane.b32.xlu0 %v1441, 17
  %v1475 = vpop.permute.xlu0 %1474
  %1476 = vrot.lane.b32.xlu0 %v1442, 17
  %v1477 = vpop.permute.xlu0 %1476
  %1478 = vrot.lane.b32.xlu0 %v1443, 17
  %v1479 = vpop.permute.xlu0 %1478
  %v1480 = vsel %vm324, %v1457, %v1459
  %v1481 = vsel %vm324, %v1459, %v1461
  %v1482 = vsel %vm324, %v1461, %v1463
  %v1483 = vsel %vm324, %v1463, %v1465
  %v1484 = vsel %vm324, %v1465, %v1467
  %v1485 = vsel %vm324, %v1469, %v1471
  %v1486 = vsel %vm324, %v1471, %v1473
  %v1487 = vsel %vm324, %v1473, %v1475
  %v1488 = vsel %vm324, %v1475, %v1477
  %v1489 = vsel %vm324, %v1477, %v1479
  %1502 = vst [vmem:[#allocation3 + $0xc0] sm:$0xff] %v1480
  %1503 = vst [vmem:[#allocation3 + $0xc8] sm:$0xff] %v1481
  %1504 = vst [vmem:[#allocation3 + $0xd0] sm:$0xff] %v1482
  %1505 = vst [vmem:[#allocation3 + $0xd8] sm:$0xff] %v1483
  %1506 = vst [vmem:[#allocation3 + $0xe0] sm:$0xff] %v1484
  %1507 = vst.msk [vmem:[#allocation3 + $0xe8] sm:$0xff] %vm47, %v1467
  %1508 = vst [vmem:[#allocation3 + $0xf0] sm:$0xff] %v1485
  %1509 = vst [vmem:[#allocation3 + $0xf8] sm:$0xff] %v1486
  %1510 = vst [vmem:[#allocation3 + $0x100] sm:$0xff] %v1487
  %1511 = vst [vmem:[#allocation3 + $0x108] sm:$0xff] %v1488
  %1512 = vst [vmem:[#allocation3 + $0x110] sm:$0xff] %v1489
  %1513 = vst.msk [vmem:[#allocation3 + $0x118] sm:$0xff] %vm47, %v1479
  %v1514 = vld [vmem:[#allocation2] sm:$0xff]
  %v1515 = vld [vmem:[#allocation2 + $0x8] sm:$0xff]
  %v1516 = vld [vmem:[#allocation2 + $0x10] sm:$0xff]
  %v1517 = vld [vmem:[#allocation2 + $0x18] sm:$0xff]
  %v1518 = vld [vmem:[#allocation2 + $0x20] sm:$0xff]
  %v1519 = vld [vmem:[#allocation2 + $0x28] sm:$0xff]
  %v1520 = vld [vmem:[#allocation2 + $0x30] sm:$0xff]
  %v1521 = vld [vmem:[#allocation2 + $0x40] sm:$0xff]
  %v1522 = vld [vmem:[#allocation2 + $0x48] sm:$0xff]
  %v1523 = vld [vmem:[#allocation2 + $0x50] sm:$0xff]
  %v1524 = vld [vmem:[#allocation2 + $0x58] sm:$0xff]
  %v1525 = vld [vmem:[#allocation2 + $0x60] sm:$0xff]
  %v1526 = vld [vmem:[#allocation2 + $0x68] sm:$0xff]
  %v1527 = vld [vmem:[#allocation2 + $0x70] sm:$0xff]
  %1542 = vrot.lane.b32.xlu0 %v1514, 1
  %v1543 = vpop.permute.xlu0 %1542
  %1544 = vrot.lane.b32.xlu0 %v1515, 1
  %v1545 = vpop.permute.xlu0 %1544
  %1546 = vrot.lane.b32.xlu0 %v1516, 1
  %v1547 = vpop.permute.xlu0 %1546
  %1548 = vrot.lane.b32.xlu0 %v1517, 1
  %v1549 = vpop.permute.xlu0 %1548
  %1550 = vrot.lane.b32.xlu0 %v1518, 1
  %v1551 = vpop.permute.xlu0 %1550
  %1552 = vrot.lane.b32.xlu0 %v1519, 1
  %v1553 = vpop.permute.xlu0 %1552
  %1554 = vrot.lane.b32.xlu0 %v1520, 1
  %v1555 = vpop.permute.xlu0 %1554
  %1556 = vrot.lane.b32.xlu0 %v1521, 1
  %v1557 = vpop.permute.xlu0 %1556
  %1558 = vrot.lane.b32.xlu0 %v1522, 1
  %v1559 = vpop.permute.xlu0 %1558
  %1560 = vrot.lane.b32.xlu0 %v1523, 1
  %v1561 = vpop.permute.xlu0 %1560
  %1562 = vrot.lane.b32.xlu0 %v1524, 1
  %v1563 = vpop.permute.xlu0 %1562
  %1564 = vrot.lane.b32.xlu0 %v1525, 1
  %v1565 = vpop.permute.xlu0 %1564
  %1566 = vrot.lane.b32.xlu0 %v1526, 1
  %v1567 = vpop.permute.xlu0 %1566
  %1568 = vrot.lane.b32.xlu0 %v1527, 1
  %v1569 = vpop.permute.xlu0 %1568
  %v1570 = vsel %vm415, %v1543, %v1545
  %v1571 = vsel %vm415, %v1545, %v1547
  %v1572 = vsel %vm415, %v1547, %v1549
  %v1573 = vsel %vm415, %v1549, %v1551
  %v1574 = vsel %vm415, %v1551, %v1553
  %v1575 = vsel %vm415, %v1553, %v1555
  %v1576 = vsel %vm415, %v1557, %v1559
  %v1577 = vsel %vm415, %v1559, %v1561
  %v1578 = vsel %vm415, %v1561, %v1563
  %v1579 = vsel %vm415, %v1563, %v1565
  %v1580 = vsel %vm415, %v1565, %v1567
  %v1581 = vsel %vm415, %v1567, %v1569
  %1594 = vst [vmem:[#allocation3 + $0x120] sm:$0xff] %v1570
  %1595 = vst [vmem:[#allocation3 + $0x128] sm:$0xff] %v1571
  %1596 = vst [vmem:[#allocation3 + $0x130] sm:$0xff] %v1572
  %1597 = vst [vmem:[#allocation3 + $0x138] sm:$0xff] %v1573
  %1598 = vst [vmem:[#allocation3 + $0x140] sm:$0xff] %v1574
  %1599 = vst.msk [vmem:[#allocation3 + $0x148] sm:$0xff] %vm47, %v1575
  %1600 = vst [vmem:[#allocation3 + $0x150] sm:$0xff] %v1576
  %1601 = vst [vmem:[#allocation3 + $0x158] sm:$0xff] %v1577
  %1602 = vst [vmem:[#allocation3 + $0x160] sm:$0xff] %v1578
  %1603 = vst [vmem:[#allocation3 + $0x168] sm:$0xff] %v1579
  %1604 = vst [vmem:[#allocation3 + $0x170] sm:$0xff] %v1580
  %1605 = vst.msk [vmem:[#allocation3 + $0x178] sm:$0xff] %vm47, %v1581
  %v1606 = vld [vmem:[#allocation2 + $0x8] sm:$0xff]
  %v1607 = vld [vmem:[#allocation2 + $0x10] sm:$0xff]
  %v1608 = vld [vmem:[#allocation2 + $0x18] sm:$0xff]
  %v1609 = vld [vmem:[#allocation2 + $0x20] sm:$0xff]
  %v1610 = vld [vmem:[#allocation2 + $0x28] sm:$0xff]
  %v1611 = vld [vmem:[#allocation2 + $0x30] sm:$0xff]
  %v1612 = vld [vmem:[#allocation2 + $0x48] sm:$0xff]
  %v1613 = vld [vmem:[#allocation2 + $0x50] sm:$0xff]
  %v1614 = vld [vmem:[#allocation2 + $0x58] sm:$0xff]
  %v1615 = vld [vmem:[#allocation2 + $0x60] sm:$0xff]
  %v1616 = vld [vmem:[#allocation2 + $0x68] sm:$0xff]
  %v1617 = vld [vmem:[#allocation2 + $0x70] sm:$0xff]
  %1618 = vst [vmem:[#allocation3 + $0x180] sm:$0xff] %v1606
  %1619 = vst [vmem:[#allocation3 + $0x188] sm:$0xff] %v1607
  %1620 = vst [vmem:[#allocation3 + $0x190] sm:$0xff] %v1608
  %1621 = vst [vmem:[#allocation3 + $0x198] sm:$0xff] %v1609
  %1622 = vst [vmem:[#allocation3 + $0x1a0] sm:$0xff] %v1610
  %1623 = vst.msk [vmem:[#allocation3 + $0x1a8] sm:$0xff] %vm47, %v1611
  %1624 = vst [vmem:[#allocation3 + $0x1b0] sm:$0xff] %v1612
  %1625 = vst [vmem:[#allocation3 + $0x1b8] sm:$0xff] %v1613
  %1626 = vst [vmem:[#allocation3 + $0x1c0] sm:$0xff] %v1614
  %1627 = vst [vmem:[#allocation3 + $0x1c8] sm:$0xff] %v1615
  %1628 = vst [vmem:[#allocation3 + $0x1d0] sm:$0xff] %v1616
  %1629 = vst.msk [vmem:[#allocation3 + $0x1d8] sm:$0xff] %vm47, %v1617
  %v1630 = vld [vmem:[#allocation2 + $0x8] sm:$0xff]
  %v1631 = vld [vmem:[#allocation2 + $0x10] sm:$0xff]
  %v1632 = vld [vmem:[#allocation2 + $0x18] sm:$0xff]
  %v1633 = vld [vmem:[#allocation2 + $0x20] sm:$0xff]
  %v1634 = vld [vmem:[#allocation2 + $0x28] sm:$0xff]
  %v1635 = vld [vmem:[#allocation2 + $0x30] sm:$0xff]
  %v1636 = vld [vmem:[#allocation2 + $0x48] sm:$0xff]
  %v1637 = vld [vmem:[#allocation2 + $0x50] sm:$0xff]
  %v1638 = vld [vmem:[#allocation2 + $0x58] sm:$0xff]
  %v1639 = vld [vmem:[#allocation2 + $0x60] sm:$0xff]
  %v1640 = vld [vmem:[#allocation2 + $0x68] sm:$0xff]
  %v1641 = vld [vmem:[#allocation2 + $0x70] sm:$0xff]
  %1654 = vrot.lane.b32.xlu0 %v1630, 127
  %v1655 = vpop.permute.xlu0 %1654
  %1656 = vrot.lane.b32.xlu0 %v1631, 127
  %v1657 = vpop.permute.xlu0 %1656
  %1658 = vrot.lane.b32.xlu0 %v1632, 127
  %v1659 = vpop.permute.xlu0 %1658
  %1660 = vrot.lane.b32.xlu0 %v1633, 127
  %v1661 = vpop.permute.xlu0 %1660
  %1662 = vrot.lane.b32.xlu0 %v1634, 127
  %v1663 = vpop.permute.xlu0 %1662
  %1664 = vrot.lane.b32.xlu0 %v1635, 127
  %v1665 = vpop.permute.xlu0 %1664
  %1666 = vrot.lane.b32.xlu0 %v1636, 127
  %v1667 = vpop.permute.xlu0 %1666
  %1668 = vrot.lane.b32.xlu0 %v1637, 127
  %v1669 = vpop.permute.xlu0 %1668
  %1670 = vrot.lane.b32.xlu0 %v1638, 127
  %v1671 = vpop.permute.xlu0 %1670
  %1672 = vrot.lane.b32.xlu0 %v1639, 127
  %v1673 = vpop.permute.xlu0 %1672
  %1674 = vrot.lane.b32.xlu0 %v1640, 127
  %v1675 = vpop.permute.xlu0 %1674
  %1676 = vrot.lane.b32.xlu0 %v1641, 127
  %v1677 = vpop.permute.xlu0 %1676
  %v1678 = vsel %vm524, %v1655, %v1657
  %v1679 = vsel %vm524, %v1657, %v1659
  %v1680 = vsel %vm524, %v1659, %v1661
  %v1681 = vsel %vm524, %v1661, %v1663
  %v1682 = vsel %vm524, %v1663, %v1665
  %v1683 = vsel %vm524, %v1667, %v1669
  %v1684 = vsel %vm524, %v1669, %v1671
  %v1685 = vsel %vm524, %v1671, %v1673
  %v1686 = vsel %vm524, %v1673, %v1675
  %v1687 = vsel %vm524, %v1675, %v1677
  %1700 = vst [vmem:[#allocation3 + $0x1e0] sm:$0xff] %v1678
  %1701 = vst [vmem:[#allocation3 + $0x1e8] sm:$0xff] %v1679
  %1702 = vst [vmem:[#allocation3 + $0x1f0] sm:$0xff] %v1680
  %1703 = vst [vmem:[#allocation3 + $0x1f8] sm:$0xff] %v1681
  %1704 = vst [vmem:[#allocation3 + $0x200] sm:$0xff] %v1682
  %1705 = vst.msk [vmem:[#allocation3 + $0x208] sm:$0xff] %vm47, %v1665
  %1706 = vst [vmem:[#allocation3 + $0x210] sm:$0xff] %v1683
  %1707 = vst [vmem:[#allocation3 + $0x218] sm:$0xff] %v1684
  %1708 = vst [vmem:[#allocation3 + $0x220] sm:$0xff] %v1685
  %1709 = vst [vmem:[#allocation3 + $0x228] sm:$0xff] %v1686
  %1710 = vst [vmem:[#allocation3 + $0x230] sm:$0xff] %v1687
  %1711 = vst.msk [vmem:[#allocation3 + $0x238] sm:$0xff] %vm47, %v1677
  %v1712 = vld [vmem:[#allocation2 + $0x8] sm:$0xff]
  %v1713 = vld [vmem:[#allocation2 + $0x10] sm:$0xff]
  %v1714 = vld [vmem:[#allocation2 + $0x18] sm:$0xff]
  %v1715 = vld [vmem:[#allocation2 + $0x20] sm:$0xff]
  %v1716 = vld [vmem:[#allocation2 + $0x28] sm:$0xff]
  %v1717 = vld [vmem:[#allocation2 + $0x30] sm:$0xff]
  %v1718 = vld [vmem:[#allocation2 + $0x48] sm:$0xff]
  %v1719 = vld [vmem:[#allocation2 + $0x50] sm:$0xff]
  %v1720 = vld [vmem:[#allocation2 + $0x58] sm:$0xff]
  %v1721 = vld [vmem:[#allocation2 + $0x60] sm:$0xff]
  %v1722 = vld [vmem:[#allocation2 + $0x68] sm:$0xff]
  %v1723 = vld [vmem:[#allocation2 + $0x70] sm:$0xff]
  %1736 = vrot.lane.b32.xlu0 %v1712, 111
  %v1737 = vpop.permute.xlu0 %1736
  %1738 = vrot.lane.b32.xlu0 %v1713, 111
  %v1739 = vpop.permute.xlu0 %1738
  %1740 = vrot.lane.b32.xlu0 %v1714, 111
  %v1741 = vpop.permute.xlu0 %1740
  %1742 = vrot.lane.b32.xlu0 %v1715, 111
  %v1743 = vpop.permute.xlu0 %1742
  %1744 = vrot.lane.b32.xlu0 %v1716, 111
  %v1745 = vpop.permute.xlu0 %1744
  %1746 = vrot.lane.b32.xlu0 %v1717, 111
  %v1747 = vpop.permute.xlu0 %1746
  %1748 = vrot.lane.b32.xlu0 %v1718, 111
  %v1749 = vpop.permute.xlu0 %1748
  %1750 = vrot.lane.b32.xlu0 %v1719, 111
  %v1751 = vpop.permute.xlu0 %1750
  %1752 = vrot.lane.b32.xlu0 %v1720, 111
  %v1753 = vpop.permute.xlu0 %1752
  %1754 = vrot.lane.b32.xlu0 %v1721, 111
  %v1755 = vpop.permute.xlu0 %1754
  %1756 = vrot.lane.b32.xlu0 %v1722, 111
  %v1757 = vpop.permute.xlu0 %1756
  %1758 = vrot.lane.b32.xlu0 %v1723, 111
  %v1759 = vpop.permute.xlu0 %1758
  %v1760 = vsel %vm607, %v1737, %v1739
  %v1761 = vsel %vm607, %v1739, %v1741
  %v1762 = vsel %vm607, %v1741, %v1743
  %v1763 = vsel %vm607, %v1743, %v1745
  %v1764 = vsel %vm607, %v1745, %v1747
  %v1765 = vsel %vm607, %v1749, %v1751
  %v1766 = vsel %vm607, %v1751, %v1753
  %v1767 = vsel %vm607, %v1753, %v1755
  %v1768 = vsel %vm607, %v1755, %v1757
  %v1769 = vsel %vm607, %v1757, %v1759
  %1782 = vst [vmem:[#allocation3 + $0x240] sm:$0xff] %v1760
  %1783 = vst [vmem:[#allocation3 + $0x248] sm:$0xff] %v1761
  %1784 = vst [vmem:[#allocation3 + $0x250] sm:$0xff] %v1762
  %1785 = vst [vmem:[#allocation3 + $0x258] sm:$0xff] %v1763
  %1786 = vst [vmem:[#allocation3 + $0x260] sm:$0xff] %v1764
  %1787 = vst.msk [vmem:[#allocation3 + $0x268] sm:$0xff] %vm47, %v1747
  %1788 = vst [vmem:[#allocation3 + $0x270] sm:$0xff] %v1765
  %1789 = vst [vmem:[#allocation3 + $0x278] sm:$0xff] %v1766
  %1790 = vst [vmem:[#allocation3 + $0x280] sm:$0xff] %v1767
  %1791 = vst [vmem:[#allocation3 + $0x288] sm:$0xff] %v1768
  %1792 = vst [vmem:[#allocation3 + $0x290] sm:$0xff] %v1769
  %1793 = vst.msk [vmem:[#allocation3 + $0x298] sm:$0xff] %vm47, %v1759
  %v1794 = vld [vmem:[#allocation2 + $0x8] sm:$0xff]
  %v1795 = vld [vmem:[#allocation2 + $0x10] sm:$0xff]
  %v1796 = vld [vmem:[#allocation2 + $0x18] sm:$0xff]
  %v1797 = vld [vmem:[#allocation2 + $0x20] sm:$0xff]
  %v1798 = vld [vmem:[#allocation2 + $0x28] sm:$0xff]
  %v1799 = vld [vmem:[#allocation2 + $0x30] sm:$0xff]
  %v1800 = vld [vmem:[#allocation2 + $0x48] sm:$0xff]
  %v1801 = vld [vmem:[#allocation2 + $0x50] sm:$0xff]
  %v1802 = vld [vmem:[#allocation2 + $0x58] sm:$0xff]
  %v1803 = vld [vmem:[#allocation2 + $0x60] sm:$0xff]
  %v1804 = vld [vmem:[#allocation2 + $0x68] sm:$0xff]
  %v1805 = vld [vmem:[#allocation2 + $0x70] sm:$0xff]
  %1818 = vrot.lane.b32.xlu0 %v1794, 110
  %v1819 = vpop.permute.xlu0 %1818
  %1820 = vrot.lane.b32.xlu0 %v1795, 110
  %v1821 = vpop.permute.xlu0 %1820
  %1822 = vrot.lane.b32.xlu0 %v1796, 110
  %v1823 = vpop.permute.xlu0 %1822
  %1824 = vrot.lane.b32.xlu0 %v1797, 110
  %v1825 = vpop.permute.xlu0 %1824
  %1826 = vrot.lane.b32.xlu0 %v1798, 110
  %v1827 = vpop.permute.xlu0 %1826
  %1828 = vrot.lane.b32.xlu0 %v1799, 110
  %v1829 = vpop.permute.xlu0 %1828
  %1830 = vrot.lane.b32.xlu0 %v1800, 110
  %v1831 = vpop.permute.xlu0 %1830
  %1832 = vrot.lane.b32.xlu0 %v1801, 110
  %v1833 = vpop.permute.xlu0 %1832
  %1834 = vrot.lane.b32.xlu0 %v1802, 110
  %v1835 = vpop.permute.xlu0 %1834
  %1836 = vrot.lane.b32.xlu0 %v1803, 110
  %v1837 = vpop.permute.xlu0 %1836
  %1838 = vrot.lane.b32.xlu0 %v1804, 110
  %v1839 = vpop.permute.xlu0 %1838
  %1840 = vrot.lane.b32.xlu0 %v1805, 110
  %v1841 = vpop.permute.xlu0 %1840
  %v1842 = vsel %vm690, %v1819, %v1821
  %v1843 = vsel %vm690, %v1821, %v1823
  %v1844 = vsel %vm690, %v1823, %v1825
  %v1845 = vsel %vm690, %v1825, %v1827
  %v1846 = vsel %vm690, %v1827, %v1829
  %v1847 = vsel %vm690, %v1831, %v1833
  %v1848 = vsel %vm690, %v1833, %v1835
  %v1849 = vsel %vm690, %v1835, %v1837
  %v1850 = vsel %vm690, %v1837, %v1839
  %v1851 = vsel %vm690, %v1839, %v1841
  %1864 = vst [vmem:[#allocation3 + $0x2a0] sm:$0xff] %v1842
  %1865 = vst [vmem:[#allocation3 + $0x2a8] sm:$0xff] %v1843
  %1866 = vst [vmem:[#allocation3 + $0x2b0] sm:$0xff] %v1844
  %1867 = vst [vmem:[#allocation3 + $0x2b8] sm:$0xff] %v1845
  %1868 = vst [vmem:[#allocation3 + $0x2c0] sm:$0xff] %v1846
  %1869 = vst.msk [vmem:[#allocation3 + $0x2c8] sm:$0xff] %vm47, %v1829
  %1870 = vst [vmem:[#allocation3 + $0x2d0] sm:$0xff] %v1847
  %1871 = vst [vmem:[#allocation3 + $0x2d8] sm:$0xff] %v1848
  %1872 = vst [vmem:[#allocation3 + $0x2e0] sm:$0xff] %v1849
  %1873 = vst [vmem:[#allocation3 + $0x2e8] sm:$0xff] %v1850
  %1874 = vst [vmem:[#allocation3 + $0x2f0] sm:$0xff] %v1851
  %1875 = vst.msk [vmem:[#allocation3 + $0x2f8] sm:$0xff] %vm47, %v1841
  %v1876 = vld [vmem:[#allocation2 + $0x8] sm:$0xff]
  %v1877 = vld [vmem:[#allocation2 + $0x10] sm:$0xff]
  %v1878 = vld [vmem:[#allocation2 + $0x18] sm:$0xff]
  %v1879 = vld [vmem:[#allocation2 + $0x20] sm:$0xff]
  %v1880 = vld [vmem:[#allocation2 + $0x28] sm:$0xff]
  %v1881 = vld [vmem:[#allocation2 + $0x30] sm:$0xff]
  %v1882 = vld [vmem:[#allocation2 + $0x48] sm:$0xff]
  %v1883 = vld [vmem:[#allocation2 + $0x50] sm:$0xff]
  %v1884 = vld [vmem:[#allocation2 + $0x58] sm:$0xff]
  %v1885 = vld [vmem:[#allocation2 + $0x60] sm:$0xff]
  %v1886 = vld [vmem:[#allocation2 + $0x68] sm:$0xff]
  %v1887 = vld [vmem:[#allocation2 + $0x70] sm:$0xff]
  %1900 = vrot.lane.b32.xlu0 %v1876, 109
  %v1901 = vpop.permute.xlu0 %1900
  %1902 = vrot.lane.b32.xlu0 %v1877, 109
  %v1903 = vpop.permute.xlu0 %1902
  %1904 = vrot.lane.b32.xlu0 %v1878, 109
  %v1905 = vpop.permute.xlu0 %1904
  %1906 = vrot.lane.b32.xlu0 %v1879, 109
  %v1907 = vpop.permute.xlu0 %1906
  %1908 = vrot.lane.b32.xlu0 %v1880, 109
  %v1909 = vpop.permute.xlu0 %1908
  %1910 = vrot.lane.b32.xlu0 %v1881, 109
  %v1911 = vpop.permute.xlu0 %1910
  %1912 = vrot.lane.b32.xlu0 %v1882, 109
  %v1913 = vpop.permute.xlu0 %1912
  %1914 = vrot.lane.b32.xlu0 %v1883, 109
  %v1915 = vpop.permute.xlu0 %1914
  %1916 = vrot.lane.b32.xlu0 %v1884, 109
  %v1917 = vpop.permute.xlu0 %1916
  %1918 = vrot.lane.b32.xlu0 %v1885, 109
  %v1919 = vpop.permute.xlu0 %1918
  %1920 = vrot.lane.b32.xlu0 %v1886, 109
  %v1921 = vpop.permute.xlu0 %1920
  %1922 = vrot.lane.b32.xlu0 %v1887, 109
  %v1923 = vpop.permute.xlu0 %1922
  %v1924 = vsel %vm773, %v1901, %v1903
  %v1925 = vsel %vm773, %v1903, %v1905
  %v1926 = vsel %vm773, %v1905, %v1907
  %v1927 = vsel %vm773, %v1907, %v1909
  %v1928 = vsel %vm773, %v1909, %v1911
  %v1929 = vsel %vm773, %v1913, %v1915
  %v1930 = vsel %vm773, %v1915, %v1917
  %v1931 = vsel %vm773, %v1917, %v1919
  %v1932 = vsel %vm773, %v1919, %v1921
  %v1933 = vsel %vm773, %v1921, %v1923
  %1946 = vst [vmem:[#allocation3 + $0x300] sm:$0xff] %v1924
  %1947 = vst [vmem:[#allocation3 + $0x308] sm:$0xff] %v1925
  %1948 = vst [vmem:[#allocation3 + $0x310] sm:$0xff] %v1926
  %1949 = vst [vmem:[#allocation3 + $0x318] sm:$0xff] %v1927
  %1950 = vst [vmem:[#allocation3 + $0x320] sm:$0xff] %v1928
  %1951 = vst.msk [vmem:[#allocation3 + $0x328] sm:$0xff] %vm47, %v1911
  %1952 = vst [vmem:[#allocation3 + $0x330] sm:$0xff] %v1929
  %1953 = vst [vmem:[#allocation3 + $0x338] sm:$0xff] %v1930
  %1954 = vst [vmem:[#allocation3 + $0x340] sm:$0xff] %v1931
  %1955 = vst [vmem:[#allocation3 + $0x348] sm:$0xff] %v1932
  %1956 = vst [vmem:[#allocation3 + $0x350] sm:$0xff] %v1933
  %1957 = vst.msk [vmem:[#allocation3 + $0x358] sm:$0xff] %vm47, %v1923
  %v1958 = vld [vmem:[%s3] sm:$0xff]
  %v1959 = vld [vmem:[%s3 + $0x8] sm:$0xff]
  %v1960 = vld [vmem:[#allocation3] sm:$0xff]
  %v1961 = vld [vmem:[#allocation3 + $0x8] sm:$0xff]
  %v1962 = vld [vmem:[#allocation3 + $0x10] sm:$0xff]
  %v1963 = vld [vmem:[#allocation3 + $0x18] sm:$0xff]
  %v1964 = vld [vmem:[#allocation3 + $0x20] sm:$0xff]
  %v1965 = vld [vmem:[#allocation3 + $0x28] sm:$0xff]
  %v1966 = vld [vmem:[#allocation3 + $0x30] sm:$0xff]
  %v1967 = vld [vmem:[#allocation3 + $0x38] sm:$0xff]
  %v1968 = vld [vmem:[#allocation3 + $0x40] sm:$0xff]
  %v1969 = vld [vmem:[#allocation3 + $0x48] sm:$0xff]
  %v1970 = vld [vmem:[#allocation3 + $0x50] sm:$0xff]
  %v1971 = vld [vmem:[#allocation3 + $0x58] sm:$0xff]
  %v1972 = vld [vmem:[#allocation3 + $0x60] sm:$0xff]
  %v1973 = vld [vmem:[#allocation3 + $0x68] sm:$0xff]
  %v1974 = vld [vmem:[#allocation3 + $0x70] sm:$0xff]
  %v1975 = vld [vmem:[#allocation3 + $0x78] sm:$0xff]
  %v1976 = vld [vmem:[#allocation3 + $0x80] sm:$0xff]
  %v1977 = vld [vmem:[#allocation3 + $0x88] sm:$0xff]
  %v1978 = vld [vmem:[#allocation3 + $0x90] sm:$0xff]
  %v1979 = vld [vmem:[#allocation3 + $0x98] sm:$0xff]
  %v1980 = vld [vmem:[#allocation3 + $0xa0] sm:$0xff]
  %v1981 = vld [vmem:[#allocation3 + $0xa8] sm:$0xff]
  %v1982 = vld [vmem:[#allocation3 + $0xb0] sm:$0xff]
  %v1983 = vld [vmem:[#allocation3 + $0xb8] sm:$0xff]
  %v1984 = vld [vmem:[#allocation3 + $0xc0] sm:$0xff]
  %v1985 = vld [vmem:[#allocation3 + $0xc8] sm:$0xff]
  %v1986 = vld [vmem:[#allocation3 + $0xd0] sm:$0xff]
  %v1987 = vld [vmem:[#allocation3 + $0xd8] sm:$0xff]
  %v1988 = vld [vmem:[#allocation3 + $0xe0] sm:$0xff]
  %v1989 = vld [vmem:[#allocation3 + $0xe8] sm:$0xff]
  %v1990 = vld [vmem:[#allocation3 + $0xf0] sm:$0xff]
  %v1991 = vld [vmem:[#allocation3 + $0xf8] sm:$0xff]
  %v1992 = vld [vmem:[#allocation3 + $0x100] sm:$0xff]
  %v1993 = vld [vmem:[#allocation3 + $0x108] sm:$0xff]
  %v1994 = vld [vmem:[#allocation3 + $0x110] sm:$0xff]
  %v1995 = vld [vmem:[#allocation3 + $0x118] sm:$0xff]
  %v1996 = vld [vmem:[#allocation3 + $0x120] sm:$0xff]
  %v1997 = vld [vmem:[#allocation3 + $0x128] sm:$0xff]
  %v1998 = vld [vmem:[#allocation3 + $0x130] sm:$0xff]
  %v1999 = vld [vmem:[#allocation3 + $0x138] sm:$0xff]
  %v2000 = vld [vmem:[#allocation3 + $0x140] sm:$0xff]
  %v2001 = vld [vmem:[#allocation3 + $0x148] sm:$0xff]
  %v2002 = vld [vmem:[#allocation3 + $0x150] sm:$0xff]
  %v2003 = vld [vmem:[#allocation3 + $0x158] sm:$0xff]
  %v2004 = vld [vmem:[#allocation3 + $0x160] sm:$0xff]
  %v2005 = vld [vmem:[#allocation3 + $0x168] sm:$0xff]
  %v2006 = vld [vmem:[#allocation3 + $0x170] sm:$0xff]
  %v2007 = vld [vmem:[#allocation3 + $0x178] sm:$0xff]
  %v2008 = vld [vmem:[#allocation3 + $0x180] sm:$0xff]
  %v2009 = vld [vmem:[#allocation3 + $0x188] sm:$0xff]
  %v2010 = vld [vmem:[#allocation3 + $0x190] sm:$0xff]
  %v2011 = vld [vmem:[#allocation3 + $0x198] sm:$0xff]
  %v2012 = vld [vmem:[#allocation3 + $0x1a0] sm:$0xff]
  %v2013 = vld [vmem:[#allocation3 + $0x1a8] sm:$0xff]
  %v2014 = vld [vmem:[#allocation3 + $0x1b0] sm:$0xff]
  %v2015 = vld [vmem:[#allocation3 + $0x1b8] sm:$0xff]
  %v2016 = vld [vmem:[#allocation3 + $0x1c0] sm:$0xff]
  %v2017 = vld [vmem:[#allocation3 + $0x1c8] sm:$0xff]
  %v2018 = vld [vmem:[#allocation3 + $0x1d0] sm:$0xff]
  %v2019 = vld [vmem:[#allocation3 + $0x1d8] sm:$0xff]
  %v2020 = vld [vmem:[#allocation3 + $0x1e0] sm:$0xff]
  %v2021 = vld [vmem:[#allocation3 + $0x1e8] sm:$0xff]
  %v2022 = vld [vmem:[#allocation3 + $0x1f0] sm:$0xff]
  %v2023 = vld [vmem:[#allocation3 + $0x1f8] sm:$0xff]
  %v2024 = vld [vmem:[#allocation3 + $0x200] sm:$0xff]
  %v2025 = vld [vmem:[#allocation3 + $0x208] sm:$0xff]
  %v2026 = vld [vmem:[#allocation3 + $0x210] sm:$0xff]
  %v2027 = vld [vmem:[#allocation3 + $0x218] sm:$0xff]
  %v2028 = vld [vmem:[#allocation3 + $0x220] sm:$0xff]
  %v2029 = vld [vmem:[#allocation3 + $0x228] sm:$0xff]
  %v2030 = vld [vmem:[#allocation3 + $0x230] sm:$0xff]
  %v2031 = vld [vmem:[#allocation3 + $0x238] sm:$0xff]
  %v2032 = vld [vmem:[#allocation3 + $0x240] sm:$0xff]
  %v2033 = vld [vmem:[#allocation3 + $0x248] sm:$0xff]
  %v2034 = vld [vmem:[#allocation3 + $0x250] sm:$0xff]
  %v2035 = vld [vmem:[#allocation3 + $0x258] sm:$0xff]
  %v2036 = vld [vmem:[#allocation3 + $0x260] sm:$0xff]
  %v2037 = vld [vmem:[#allocation3 + $0x268] sm:$0xff]
  %v2038 = vld [vmem:[#allocation3 + $0x270] sm:$0xff]
  %v2039 = vld [vmem:[#allocation3 + $0x278] sm:$0xff]
  %v2040 = vld [vmem:[#allocation3 + $0x280] sm:$0xff]
  %v2041 = vld [vmem:[#allocation3 + $0x288] sm:$0xff]
  %v2042 = vld [vmem:[#allocation3 + $0x290] sm:$0xff]
  %v2043 = vld [vmem:[#allocation3 + $0x298] sm:$0xff]
  %v2044 = vld [vmem:[#allocation3 + $0x2a0] sm:$0xff]
  %v2045 = vld [vmem:[#allocation3 + $0x2a8] sm:$0xff]
  %v2046 = vld [vmem:[#allocation3 + $0x2b0] sm:$0xff]
  %v2047 = vld [vmem:[#allocation3 + $0x2b8] sm:$0xff]
  %v2048 = vld [vmem:[#allocation3 + $0x2c0] sm:$0xff]
  %v2049 = vld [vmem:[#allocation3 + $0x2c8] sm:$0xff]
  %v2050 = vld [vmem:[#allocation3 + $0x2d0] sm:$0xff]
  %v2051 = vld [vmem:[#allocation3 + $0x2d8] sm:$0xff]
  %v2052 = vld [vmem:[#allocation3 + $0x2e0] sm:$0xff]
  %v2053 = vld [vmem:[#allocation3 + $0x2e8] sm:$0xff]
  %v2054 = vld [vmem:[#allocation3 + $0x2f0] sm:$0xff]
  %v2055 = vld [vmem:[#allocation3 + $0x2f8] sm:$0xff]
  %v2056 = vld [vmem:[#allocation3 + $0x300] sm:$0xff]
  %v2057 = vld [vmem:[#allocation3 + $0x308] sm:$0xff]
  %v2058 = vld [vmem:[#allocation3 + $0x310] sm:$0xff]
  %v2059 = vld [vmem:[#allocation3 + $0x318] sm:$0xff]
  %v2060 = vld [vmem:[#allocation3 + $0x320] sm:$0xff]
  %v2061 = vld [vmem:[#allocation3 + $0x328] sm:$0xff]
  %v2062 = vld [vmem:[#allocation3 + $0x330] sm:$0xff]
  %v2063 = vld [vmem:[#allocation3 + $0x338] sm:$0xff]
  %v2064 = vld [vmem:[#allocation3 + $0x340] sm:$0xff]
  %v2065 = vld [vmem:[#allocation3 + $0x348] sm:$0xff]
  %v2066 = vld [vmem:[#allocation3 + $0x350] sm:$0xff]
  %v2067 = vld [vmem:[#allocation3 + $0x358] sm:$0xff]
  %v2068 = vld [vmem:[%s6] sm:$0xff]
  %2070 = vset.pattern.permute.xlu0 0
  %2071 = vperm.xlu0 %2070, %v2068
  %v2072 = vpop.permute.xlu0 %2071
  %v2075 = vsel %vm918, %v1959, 0
  %2077 = vmatpush.msra.mxu0 %v2050
  %2078 = vmatpush.msra.mxu0 %v2044
  %2079 = vmatpush.msra.mxu0 %v2038
  %2080 = vmatpush.msra.mxu0 %v2032
  %2081 = vmatpush.msra.mxu0 %v2026
  %2082 = vmatpush.msra.mxu0 %v2020
  %2083 = vmatpush.msra.mxu0 %v2014
  %2084 = vmatpush.msra.mxu0 %v2008
  %2085 = vmatpush.msra.mxu0 %v2002
  %2086 = vmatpush.msra.mxu0 %v1996
  %2087 = vmatpush.msra.mxu0 %v1990
  %2088 = vmatpush.msra.mxu0 %v1984
  %2089 = vmatpush.msra.mxu0 %v1978
  %2090 = vmatpush.msra.mxu0 %v1972
  %2091 = vmatpush.msra.mxu0 %v1966
  %2092 = vmatpush.msra.mxu0 %v1960
  %2093 = vmatmul.f32.gmra.mxu0 %v1958
  %v2094 = vpop.f32.mrf.mxu0
  %v2095 = vadd.f32 %v2072, %v2094
  %2096 = vdwg.mxu0
  %2097 = vmatpush.msra.mxu0 0.0
  %2098 = vmatpush.msra.mxu0 0.0
  %2099 = vmatpush.msra.mxu0 0.0
  %2100 = vmatpush.msra.mxu0 0.0
  %2101 = vmatpush.msra.mxu0 0.0
  %2102 = vmatpush.msra.mxu0 0.0
  %2103 = vmatpush.msra.mxu0 0.0
  %2104 = vmatpush.msra.mxu0 0.0
  %2105 = vmatpush.msra.mxu0 0.0
  %2106 = vmatpush.msra.mxu0 0.0
  %2107 = vmatpush.msra.mxu0 0.0
  %2108 = vmatpush.msra.mxu0 0.0
  %2109 = vmatpush.msra.mxu0 0.0
  %2110 = vmatpush.msra.mxu0 0.0
  %2111 = vmatpush.msra.mxu0 %v2062
  %2112 = vmatpush.msra.mxu0 %v2056
  %2113 = vmatmul.f32.gmra.mxu0 %v2075
  %v2114 = vpop.f32.mrf.mxu0
  %v2115 = vadd.f32 %v2095, %v2114
  %2116 = vdwg.mxu0
  %2117 = vmatpush.msra.mxu0 %v2051
  %2118 = vmatpush.msra.mxu0 %v2045
  %2119 = vmatpush.msra.mxu0 %v2039
  %2120 = vmatpush.msra.mxu0 %v2033
  %2121 = vmatpush.msra.mxu0 %v2027
  %2122 = vmatpush.msra.mxu0 %v2021
  %2123 = vmatpush.msra.mxu0 %v2015
  %2124 = vmatpush.msra.mxu0 %v2009
  %2125 = vmatpush.msra.mxu0 %v2003
  %2126 = vmatpush.msra.mxu0 %v1997
  %2127 = vmatpush.msra.mxu0 %v1991
  %2128 = vmatpush.msra.mxu0 %v1985
  %2129 = vmatpush.msra.mxu0 %v1979
  %2130 = vmatpush.msra.mxu0 %v1973
  %2131 = vmatpush.msra.mxu0 %v1967
  %2132 = vmatpush.msra.mxu0 %v1961
  %2133 = vmatmul.f32.gmra.mxu0 %v1958
  %v2134 = vpop.f32.mrf.mxu0
  %v2135 = vadd.f32 %v2072, %v2134
  %2136 = vdwg.mxu0
  %2137 = vmatpush.msra.mxu0 0.0
  %2138 = vmatpush.msra.mxu0 0.0
  %2139 = vmatpush.msra.mxu0 0.0
  %2140 = vmatpush.msra.mxu0 0.0
  %2141 = vmatpush.msra.mxu0 0.0
  %2142 = vmatpush.msra.mxu0 0.0
  %2143 = vmatpush.msra.mxu0 0.0
  %2144 = vmatpush.msra.mxu0 0.0
  %2145 = vmatpush.msra.mxu0 0.0
  %2146 = vmatpush.msra.mxu0 0.0
  %2147 = vmatpush.msra.mxu0 0.0
  %2148 = vmatpush.msra.mxu0 0.0
  %2149 = vmatpush.msra.mxu0 0.0
  %2150 = vmatpush.msra.mxu0 0.0
  %2151 = vmatpush.msra.mxu0 %v2063
  %2152 = vmatpush.msra.mxu0 %v2057
  %2153 = vmatmul.f32.gmra.mxu0 %v2075
  %v2154 = vpop.f32.mrf.mxu0
  %v2155 = vadd.f32 %v2135, %v2154
  %2156 = vdwg.mxu0
  %2157 = vmatpush.msra.mxu0 %v2052
  %2158 = vmatpush.msra.mxu0 %v2046
  %2159 = vmatpush.msra.mxu0 %v2040
  %2160 = vmatpush.msra.mxu0 %v2034
  %2161 = vmatpush.msra.mxu0 %v2028
  %2162 = vmatpush.msra.mxu0 %v2022
  %2163 = vmatpush.msra.mxu0 %v2016
  %2164 = vmatpush.msra.mxu0 %v2010
  %2165 = vmatpush.msra.mxu0 %v2004
  %2166 = vmatpush.msra.mxu0 %v1998
  %2167 = vmatpush.msra.mxu0 %v1992
  %2168 = vmatpush.msra.mxu0 %v1986
  %2169 = vmatpush.msra.mxu0 %v1980
  %2170 = vmatpush.msra.mxu0 %v1974
  %2171 = vmatpush.msra.mxu0 %v1968
  %2172 = vmatpush.msra.mxu0 %v1962
  %2173 = vmatmul.f32.gmra.mxu0 %v1958
  %v2174 = vpop.f32.mrf.mxu0
  %v2175 = vadd.f32 %v2072, %v2174
  %2176 = vdwg.mxu0
  %2177 = vmatpush.msra.mxu0 0.0
  %2178 = vmatpush.msra.mxu0 0.0
  %2179 = vmatpush.msra.mxu0 0.0
  %2180 = vmatpush.msra.mxu0 0.0
  %2181 = vmatpush.msra.mxu0 0.0
  %2182 = vmatpush.msra.mxu0 0.0
  %2183 = vmatpush.msra.mxu0 0.0
  %2184 = vmatpush.msra.mxu0 0.0
  %2185 = vmatpush.msra.mxu0 0.0
  %2186 = vmatpush.msra.mxu0 0.0
  %2187 = vmatpush.msra.mxu0 0.0
  %2188 = vmatpush.msra.mxu0 0.0
  %2189 = vmatpush.msra.mxu0 0.0
  %2190 = vmatpush.msra.mxu0 0.0
  %2191 = vmatpush.msra.mxu0 %v2064
  %2192 = vmatpush.msra.mxu0 %v2058
  %2193 = vmatmul.f32.gmra.mxu0 %v2075
  %v2194 = vpop.f32.mrf.mxu0
  %v2195 = vadd.f32 %v2175, %v2194
  %2196 = vdwg.mxu0
  %2197 = vmatpush.msra.mxu0 %v2053
  %2198 = vmatpush.msra.mxu0 %v2047
  %2199 = vmatpush.msra.mxu0 %v2041
  %2200 = vmatpush.msra.mxu0 %v2035
  %2201 = vmatpush.msra.mxu0 %v2029
  %2202 = vmatpush.msra.mxu0 %v2023
  %2203 = vmatpush.msra.mxu0 %v2017
  %2204 = vmatpush.msra.mxu0 %v2011
  %2205 = vmatpush.msra.mxu0 %v2005
  %2206 = vmatpush.msra.mxu0 %v1999
  %2207 = vmatpush.msra.mxu0 %v1993
  %2208 = vmatpush.msra.mxu0 %v1987
  %2209 = vmatpush.msra.mxu0 %v1981
  %2210 = vmatpush.msra.mxu0 %v1975
  %2211 = vmatpush.msra.mxu0 %v1969
  %2212 = vmatpush.msra.mxu0 %v1963
  %2213 = vmatmul.f32.gmra.mxu0 %v1958
  %v2214 = vpop.f32.mrf.mxu0
  %v2215 = vadd.f32 %v2072, %v2214
  %2216 = vdwg.mxu0
  %2217 = vmatpush.msra.mxu0 0.0
  %2218 = vmatpush.msra.mxu0 0.0
  %2219 = vmatpush.msra.mxu0 0.0
  %2220 = vmatpush.msra.mxu0 0.0
  %2221 = vmatpush.msra.mxu0 0.0
  %2222 = vmatpush.msra.mxu0 0.0
  %2223 = vmatpush.msra.mxu0 0.0
  %2224 = vmatpush.msra.mxu0 0.0
  %2225 = vmatpush.msra.mxu0 0.0
  %2226 = vmatpush.msra.mxu0 0.0
  %2227 = vmatpush.msra.mxu0 0.0
  %2228 = vmatpush.msra.mxu0 0.0
  %2229 = vmatpush.msra.mxu0 0.0
  %2230 = vmatpush.msra.mxu0 0.0
  %2231 = vmatpush.msra.mxu0 %v2065
  %2232 = vmatpush.msra.mxu0 %v2059
  %2233 = vmatmul.f32.gmra.mxu0 %v2075
  %v2234 = vpop.f32.mrf.mxu0
  %v2235 = vadd.f32 %v2215, %v2234
  %2236 = vdwg.mxu0
  %2237 = vmatpush.msra.mxu0 %v2054
  %2238 = vmatpush.msra.mxu0 %v2048
  %2239 = vmatpush.msra.mxu0 %v2042
  %2240 = vmatpush.msra.mxu0 %v2036
  %2241 = vmatpush.msra.mxu0 %v2030
  %2242 = vmatpush.msra.mxu0 %v2024
  %2243 = vmatpush.msra.mxu0 %v2018
  %2244 = vmatpush.msra.mxu0 %v2012
  %2245 = vmatpush.msra.mxu0 %v2006
  %2246 = vmatpush.msra.mxu0 %v2000
  %2247 = vmatpush.msra.mxu0 %v1994
  %2248 = vmatpush.msra.mxu0 %v1988
  %2249 = vmatpush.msra.mxu0 %v1982
  %2250 = vmatpush.msra.mxu0 %v1976
  %2251 = vmatpush.msra.mxu0 %v1970
  %2252 = vmatpush.msra.mxu0 %v1964
  %2253 = vmatmul.f32.gmra.mxu0 %v1958
  %v2254 = vpop.f32.mrf.mxu0
  %v2255 = vadd.f32 %v2072, %v2254
  %2256 = vdwg.mxu0
  %2257 = vmatpush.msra.mxu0 0.0
  %2258 = vmatpush.msra.mxu0 0.0
  %2259 = vmatpush.msra.mxu0 0.0
  %2260 = vmatpush.msra.mxu0 0.0
  %2261 = vmatpush.msra.mxu0 0.0
  %2262 = vmatpush.msra.mxu0 0.0
  %2263 = vmatpush.msra.mxu0 0.0
  %2264 = vmatpush.msra.mxu0 0.0
  %2265 = vmatpush.msra.mxu0 0.0
  %2266 = vmatpush.msra.mxu0 0.0
  %2267 = vmatpush.msra.mxu0 0.0
  %2268 = vmatpush.msra.mxu0 0.0
  %2269 = vmatpush.msra.mxu0 0.0
  %2270 = vmatpush.msra.mxu0 0.0
  %2271 = vmatpush.msra.mxu0 %v2066
  %2272 = vmatpush.msra.mxu0 %v2060
  %2273 = vmatmul.f32.gmra.mxu0 %v2075
  %v2274 = vpop.f32.mrf.mxu0
  %v2275 = vadd.f32 %v2255, %v2274
  %2276 = vdwg.mxu0
  %2277 = vmatpush.msra.mxu0 %v2055
  %2278 = vmatpush.msra.mxu0 %v2049
  %2279 = vmatpush.msra.mxu0 %v2043
  %2280 = vmatpush.msra.mxu0 %v2037
  %2281 = vmatpush.msra.mxu0 %v2031
  %2282 = vmatpush.msra.mxu0 %v2025
  %2283 = vmatpush.msra.mxu0 %v2019
  %2284 = vmatpush.msra.mxu0 %v2013
  %2285 = vmatpush.msra.mxu0 %v2007
  %2286 = vmatpush.msra.mxu0 %v2001
  %2287 = vmatpush.msra.mxu0 %v1995
  %2288 = vmatpush.msra.mxu0 %v1989
  %2289 = vmatpush.msra.mxu0 %v1983
  %2290 = vmatpush.msra.mxu0 %v1977
  %2291 = vmatpush.msra.mxu0 %v1971
  %2292 = vmatpush.msra.mxu0 %v1965
  %2293 = vmatmul.f32.gmra.mxu0 %v1958
  %v2294 = vpop.f32.mrf.mxu0
  %v2295 = vadd.f32 %v2072, %v2294
  %2296 = vdwg.mxu0
  %2297 = vmatpush.msra.mxu0 0.0
  %2298 = vmatpush.msra.mxu0 0.0
  %2299 = vmatpush.msra.mxu0 0.0
  %2300 = vmatpush.msra.mxu0 0.0
  %2301 = vmatpush.msra.mxu0 0.0
  %2302 = vmatpush.msra.mxu0 0.0
  %2303 = vmatpush.msra.mxu0 0.0
  %2304 = vmatpush.msra.mxu0 0.0
  %2305 = vmatpush.msra.mxu0 0.0
  %2306 = vmatpush.msra.mxu0 0.0
  %2307 = vmatpush.msra.mxu0 0.0
  %2308 = vmatpush.msra.mxu0 0.0
  %2309 = vmatpush.msra.mxu0 0.0
  %2310 = vmatpush.msra.mxu0 0.0
  %2311 = vmatpush.msra.mxu0 %v2067
  %2312 = vmatpush.msra.mxu0 %v2061
  %2313 = vmatmul.f32.gmra.mxu0 %v2075
  %v2314 = vpop.f32.mrf.mxu0
  %v2315 = vadd.f32 %v2295, %v2314
  %2316 = vdwg.mxu0
  %v2317 = vmul.f32 %v2115, %v75
  %v2318 = vmul.f32 %v2155, %v76
  %v2319 = vmul.f32 %v2195, %v77
  %v2320 = vmul.f32 %v2235, %v78
  %v2321 = vmul.f32 %v2275, %v79
  %v2322 = vmul.f32 %v2315, %v80
  %v2323 = vadd.f32 %v2317, %v2318
  %v2324 = vadd.f32 %v2323, %v2319
  %v2325 = vadd.f32 %v2324, %v2320
  %v2326 = vadd.f32 %v2325, %v2321
  %v2327 = vsel %vm47, %v2322, 0.0
  %v2328 = vadd.f32 %v2326, %v2327
  %2329 = vadd.xlane.f32.xlu0 %v2328
  %v2330 = vpop.xlane.xlu0 %2329
  %v2331 = vmul.f32 %v2317, %v2317
  %v2332 = vmul.f32 %v2318, %v2318
  %v2333 = vmul.f32 %v2319, %v2319
  %v2334 = vmul.f32 %v2320, %v2320
  %v2335 = vmul.f32 %v2321, %v2321
  %v2336 = vmul.f32 %v2322, %v2322
  %v2337 = vadd.f32 %v2331, %v2332
  %v2338 = vadd.f32 %v2337, %v2333
  %v2339 = vadd.f32 %v2338, %v2334
  %v2340 = vadd.f32 %v2339, %v2335
  %v2341 = vsel %vm47, %v2336, 0.0
  %v2342 = vadd.f32 %v2340, %v2341
  %2343 = vadd.xlane.f32.xlu0 %v2342
  %v2344 = vpop.xlane.xlu0 %2343
  %v2345 = vmul.f32 %v2330, 0.001953125
  %v2346 = vmul.f32 %v2344, 0.001953125
  %v2347 = vmul.f32 %v2345, %v2345
  %v2348 = vsub.f32 %v2346, %v2347
  %v2349 = vld [vmem:[%s10] sm:$0xff]
  %v2350 = vadd.f32 %v2348, 1e-05
  %v2351 = vrsqrt.pop %v2350
  %v2352 = vmul.f32 %v2351, %v2350
  %v2353 = vmul.f32 %v2352, %v2351
  %v2354 = vmul.f32 0.5, %v2353
  %v2355 = vsub.f32 1.5, %v2354
  %v2356 = vmul.f32 %v2351, %v2355
  %vm2357 = vweird.f32 %v2350
  %vm2358 = vweird.f32 %v2351
  %vm2359 = vmor %vm2357, %vm2358
  %v2360 = vsel %vm2359, %v2351, %v2356
  %v2361 = vmul.f32 %v2349, %v2360
  %v2362 = vld [vmem:[%s11] sm:$0xff]
  %v2363 = vmul.f32 %v2345, %v2361
  %v2364 = vsub.f32 %v2362, %v2363
  %2366 = vset.pattern.permute.xlu0 0
  %2367 = vperm.xlu0 %2366, %v2361
  %v2368 = vpop.permute.xlu0 %2367
  %v2370 = vmul.f32 %v2317, %v2368
  %v2371 = vmul.f32 %v2318, %v2368
  %v2372 = vmul.f32 %v2319, %v2368
  %v2373 = vmul.f32 %v2320, %v2368
  %v2374 = vmul.f32 %v2321, %v2368
  %v2375 = vmul.f32 %v2322, %v2368
  %2377 = vset.pattern.permute.xlu0 0
  %2378 = vperm.xlu0 %2377, %v2364
  %v2379 = vpop.permute.xlu0 %2378
  %v2381 = vadd.f32 %v2370, %v2379
  %v2382 = vadd.f32 %v2371, %v2379
  %v2383 = vadd.f32 %v2372, %v2379
  %v2384 = vadd.f32 %v2373, %v2379
  %v2385 = vadd.f32 %v2374, %v2379
  %v2386 = vadd.f32 %v2375, %v2379
  %v2387 = vmul.f32 %v2381, 0.5
  %v2388 = vmul.f32 %v2382, 0.5
  %v2389 = vmul.f32 %v2383, 0.5
  %v2390 = vmul.f32 %v2384, 0.5
  %v2391 = vmul.f32 %v2385, 0.5
  %v2392 = vmul.f32 %v2386, 0.5
  %v2393 = vtanh.pop %v2387
  %v2394 = vtanh.pop %v2388
  %v2395 = vtanh.pop %v2389
  %v2396 = vtanh.pop %v2390
  %v2397 = vtanh.pop %v2391
  %v2398 = vtanh.pop %v2392
  %v2399 = vmul.f32 %v2387, %v2393
  %v2400 = vmul.f32 %v2388, %v2394
  %v2401 = vmul.f32 %v2389, %v2395
  %v2402 = vmul.f32 %v2390, %v2396
  %v2403 = vmul.f32 %v2391, %v2397
  %v2404 = vmul.f32 %v2392, %v2398
  %v2405 = vadd.f32 %v2387, %v2399
  %v2406 = vadd.f32 %v2388, %v2400
  %v2407 = vadd.f32 %v2389, %v2401
  %v2408 = vadd.f32 %v2390, %v2402
  %v2409 = vadd.f32 %v2391, %v2403
  %v2410 = vadd.f32 %v2392, %v2404
  %v2411 = vmul.f32 %v2405, %v75
  %v2412 = vmul.f32 %v2406, %v76
  %v2413 = vmul.f32 %v2407, %v77
  %v2414 = vmul.f32 %v2408, %v78
  %v2415 = vmul.f32 %v2409, %v79
  %v2416 = vmul.f32 %v2410, %v80
  %2417 = vst [vmem:[%s12] sm:$0xff] %v2411
  %2418 = vst [vmem:[%s12 + $0x8] sm:$0xff] %v2412
  %2419 = vst [vmem:[%s12 + $0x10] sm:$0xff] %v2413
  %2420 = vst [vmem:[%s12 + $0x18] sm:$0xff] %v2414
  %2421 = vst [vmem:[%s12 + $0x20] sm:$0xff] %v2415
  %2422 = vst.msk [vmem:[%s12 + $0x28] sm:$0xff] %vm47, %v2416
  %2423 = vst [vmem:[#allocation2 + $0x8] sm:$0xff] %v2411
  %2424 = vst [vmem:[#allocation2 + $0x10] sm:$0xff] %v2412
  %2425 = vst [vmem:[#allocation2 + $0x18] sm:$0xff] %v2413
  %2426 = vst [vmem:[#allocation2 + $0x20] sm:$0xff] %v2414
  %2427 = vst [vmem:[#allocation2 + $0x28] sm:$0xff] %v2415
  %2428 = vst.msk [vmem:[#allocation2 + $0x30] sm:$0xff] %vm47, %v2416
  %v2429 = vld [vmem:[#allocation2 + $0x8] sm:$0xff]
  %v2430 = vld [vmem:[#allocation2 + $0x10] sm:$0xff]
  %v2431 = vld [vmem:[#allocation2 + $0x18] sm:$0xff]
  %v2432 = vld [vmem:[#allocation2 + $0x20] sm:$0xff]
  %v2433 = vld [vmem:[#allocation2 + $0x28] sm:$0xff]
  %v2434 = vld [vmem:[#allocation2 + $0x30] sm:$0xff]
  %v2435 = vld [vmem:[#allocation2 + $0x48] sm:$0xff]
  %v2436 = vld [vmem:[#allocation2 + $0x50] sm:$0xff]
  %v2437 = vld [vmem:[#allocation2 + $0x58] sm:$0xff]
  %v2438 = vld [vmem:[#allocation2 + $0x60] sm:$0xff]
  %v2439 = vld [vmem:[#allocation2 + $0x68] sm:$0xff]
  %v2440 = vld [vmem:[#allocation2 + $0x70] sm:$0xff]
  %2441 = vst [vmem:[#allocation3] sm:$0xff] %v2429
  %2442 = vst [vmem:[#allocation3 + $0x8] sm:$0xff] %v2430
  %2443 = vst [vmem:[#allocation3 + $0x10] sm:$0xff] %v2431
  %2444 = vst [vmem:[#allocation3 + $0x18] sm:$0xff] %v2432
  %2445 = vst [vmem:[#allocation3 + $0x20] sm:$0xff] %v2433
  %2446 = vst.msk [vmem:[#allocation3 + $0x28] sm:$0xff] %vm47, %v2434
  %2447 = vst [vmem:[#allocation3 + $0x30] sm:$0xff] %v2435
  %2448 = vst [vmem:[#allocation3 + $0x38] sm:$0xff] %v2436
  %2449 = vst [vmem:[#allocation3 + $0x40] sm:$0xff] %v2437
  %2450 = vst [vmem:[#allocation3 + $0x48] sm:$0xff] %v2438
  %2451 = vst [vmem:[#allocation3 + $0x50] sm:$0xff] %v2439
  %2452 = vst.msk [vmem:[#allocation3 + $0x58] sm:$0xff] %vm47, %v2440
  %v2453 = vld [vmem:[#allocation2 + $0x8] sm:$0xff]
  %v2454 = vld [vmem:[#allocation2 + $0x10] sm:$0xff]
  %v2455 = vld [vmem:[#allocation2 + $0x18] sm:$0xff]
  %v2456 = vld [vmem:[#allocation2 + $0x20] sm:$0xff]
  %v2457 = vld [vmem:[#allocation2 + $0x28] sm:$0xff]
  %v2458 = vld [vmem:[#allocation2 + $0x30] sm:$0xff]
  %v2459 = vld [vmem:[#allocation2 + $0x48] sm:$0xff]
  %v2460 = vld [vmem:[#allocation2 + $0x50] sm:$0xff]
  %v2461 = vld [vmem:[#allocation2 + $0x58] sm:$0xff]
  %v2462 = vld [vmem:[#allocation2 + $0x60] sm:$0xff]
  %v2463 = vld [vmem:[#allocation2 + $0x68] sm:$0xff]
  %v2464 = vld [vmem:[#allocation2 + $0x70] sm:$0xff]
  %2477 = vrot.lane.b32.xlu0 %v2453, 127
  %v2478 = vpop.permute.xlu0 %2477
  %2479 = vrot.lane.b32.xlu0 %v2454, 127
  %v2480 = vpop.permute.xlu0 %2479
  %2481 = vrot.lane.b32.xlu0 %v2455, 127
  %v2482 = vpop.permute.xlu0 %2481
  %2483 = vrot.lane.b32.xlu0 %v2456, 127
  %v2484 = vpop.permute.xlu0 %2483
  %2485 = vrot.lane.b32.xlu0 %v2457, 127
  %v2486 = vpop.permute.xlu0 %2485
  %2487 = vrot.lane.b32.xlu0 %v2458, 127
  %v2488 = vpop.permute.xlu0 %2487
  %2489 = vrot.lane.b32.xlu0 %v2459, 127
  %v2490 = vpop.permute.xlu0 %2489
  %2491 = vrot.lane.b32.xlu0 %v2460, 127
  %v2492 = vpop.permute.xlu0 %2491
  %2493 = vrot.lane.b32.xlu0 %v2461, 127
  %v2494 = vpop.permute.xlu0 %2493
  %2495 = vrot.lane.b32.xlu0 %v2462, 127
  %v2496 = vpop.permute.xlu0 %2495
  %2497 = vrot.lane.b32.xlu0 %v2463, 127
  %v2498 = vpop.permute.xlu0 %2497
  %2499 = vrot.lane.b32.xlu0 %v2464, 127
  %v2500 = vpop.permute.xlu0 %2499
  %v2501 = vsel %vm524, %v2478, %v2480
  %v2502 = vsel %vm524, %v2480, %v2482
  %v2503 = vsel %vm524, %v2482, %v2484
  %v2504 = vsel %vm524, %v2484, %v2486
  %v2505 = vsel %vm524, %v2486, %v2488
  %v2506 = vsel %vm524, %v2490, %v2492
  %v2507 = vsel %vm524, %v2492, %v2494
  %v2508 = vsel %vm524, %v2494, %v2496
  %v2509 = vsel %vm524, %v2496, %v2498
  %v2510 = vsel %vm524, %v2498, %v2500
  %2523 = vst [vmem:[#allocation3 + $0x60] sm:$0xff] %v2501
  %2524 = vst [vmem:[#allocation3 + $0x68] sm:$0xff] %v2502
  %2525 = vst [vmem:[#allocation3 + $0x70] sm:$0xff] %v2503
  %2526 = vst [vmem:[#allocation3 + $0x78] sm:$0xff] %v2504
  %2527 = vst [vmem:[#allocation3 + $0x80] sm:$0xff] %v2505
  %2528 = vst.msk [vmem:[#allocation3 + $0x88] sm:$0xff] %vm47, %v2488
  %2529 = vst [vmem:[#allocation3 + $0x90] sm:$0xff] %v2506
  %2530 = vst [vmem:[#allocation3 + $0x98] sm:$0xff] %v2507
  %2531 = vst [vmem:[#allocation3 + $0xa0] sm:$0xff] %v2508
  %2532 = vst [vmem:[#allocation3 + $0xa8] sm:$0xff] %v2509
  %2533 = vst [vmem:[#allocation3 + $0xb0] sm:$0xff] %v2510
  %2534 = vst.msk [vmem:[#allocation3 + $0xb8] sm:$0xff] %vm47, %v2500
  %v2535 = vld [vmem:[#allocation2 + $0x8] sm:$0xff]
  %v2536 = vld [vmem:[#allocation2 + $0x10] sm:$0xff]
  %v2537 = vld [vmem:[#allocation2 + $0x18] sm:$0xff]
  %v2538 = vld [vmem:[#allocation2 + $0x20] sm:$0xff]
  %v2539 = vld [vmem:[#allocation2 + $0x28] sm:$0xff]
  %v2540 = vld [vmem:[#allocation2 + $0x30] sm:$0xff]
  %v2541 = vld [vmem:[#allocation2 + $0x48] sm:$0xff]
  %v2542 = vld [vmem:[#allocation2 + $0x50] sm:$0xff]
  %v2543 = vld [vmem:[#allocation2 + $0x58] sm:$0xff]
  %v2544 = vld [vmem:[#allocation2 + $0x60] sm:$0xff]
  %v2545 = vld [vmem:[#allocation2 + $0x68] sm:$0xff]
  %v2546 = vld [vmem:[#allocation2 + $0x70] sm:$0xff]
  %2559 = vrot.lane.b32.xlu0 %v2535, 110
  %v2560 = vpop.permute.xlu0 %2559
  %2561 = vrot.lane.b32.xlu0 %v2536, 110
  %v2562 = vpop.permute.xlu0 %2561
  %2563 = vrot.lane.b32.xlu0 %v2537, 110
  %v2564 = vpop.permute.xlu0 %2563
  %2565 = vrot.lane.b32.xlu0 %v2538, 110
  %v2566 = vpop.permute.xlu0 %2565
  %2567 = vrot.lane.b32.xlu0 %v2539, 110
  %v2568 = vpop.permute.xlu0 %2567
  %2569 = vrot.lane.b32.xlu0 %v2540, 110
  %v2570 = vpop.permute.xlu0 %2569
  %2571 = vrot.lane.b32.xlu0 %v2541, 110
  %v2572 = vpop.permute.xlu0 %2571
  %2573 = vrot.lane.b32.xlu0 %v2542, 110
  %v2574 = vpop.permute.xlu0 %2573
  %2575 = vrot.lane.b32.xlu0 %v2543, 110
  %v2576 = vpop.permute.xlu0 %2575
  %2577 = vrot.lane.b32.xlu0 %v2544, 110
  %v2578 = vpop.permute.xlu0 %2577
  %2579 = vrot.lane.b32.xlu0 %v2545, 110
  %v2580 = vpop.permute.xlu0 %2579
  %2581 = vrot.lane.b32.xlu0 %v2546, 110
  %v2582 = vpop.permute.xlu0 %2581
  %v2583 = vsel %vm690, %v2560, %v2562
  %v2584 = vsel %vm690, %v2562, %v2564
  %v2585 = vsel %vm690, %v2564, %v2566
  %v2586 = vsel %vm690, %v2566, %v2568
  %v2587 = vsel %vm690, %v2568, %v2570
  %v2588 = vsel %vm690, %v2572, %v2574
  %v2589 = vsel %vm690, %v2574, %v2576
  %v2590 = vsel %vm690, %v2576, %v2578
  %v2591 = vsel %vm690, %v2578, %v2580
  %v2592 = vsel %vm690, %v2580, %v2582
  %2605 = vst [vmem:[#allocation3 + $0xc0] sm:$0xff] %v2583
  %2606 = vst [vmem:[#allocation3 + $0xc8] sm:$0xff] %v2584
  %2607 = vst [vmem:[#allocation3 + $0xd0] sm:$0xff] %v2585
  %2608 = vst [vmem:[#allocation3 + $0xd8] sm:$0xff] %v2586
  %2609 = vst [vmem:[#allocation3 + $0xe0] sm:$0xff] %v2587
  %2610 = vst.msk [vmem:[#allocation3 + $0xe8] sm:$0xff] %vm47, %v2570
  %2611 = vst [vmem:[#allocation3 + $0xf0] sm:$0xff] %v2588
  %2612 = vst [vmem:[#allocation3 + $0xf8] sm:$0xff] %v2589
  %2613 = vst [vmem:[#allocation3 + $0x100] sm:$0xff] %v2590
  %2614 = vst [vmem:[#allocation3 + $0x108] sm:$0xff] %v2591
  %2615 = vst [vmem:[#allocation3 + $0x110] sm:$0xff] %v2592
  %2616 = vst.msk [vmem:[#allocation3 + $0x118] sm:$0xff] %vm47, %v2582
  %v2617 = vld [vmem:[#allocation2 + $0x8] sm:$0xff]
  %v2618 = vld [vmem:[#allocation2 + $0x10] sm:$0xff]
  %v2619 = vld [vmem:[#allocation2 + $0x18] sm:$0xff]
  %v2620 = vld [vmem:[#allocation2 + $0x20] sm:$0xff]
  %v2621 = vld [vmem:[#allocation2 + $0x28] sm:$0xff]
  %v2622 = vld [vmem:[#allocation2 + $0x30] sm:$0xff]
  %v2623 = vld [vmem:[#allocation2 + $0x48] sm:$0xff]
  %v2624 = vld [vmem:[#allocation2 + $0x50] sm:$0xff]
  %v2625 = vld [vmem:[#allocation2 + $0x58] sm:$0xff]
  %v2626 = vld [vmem:[#allocation2 + $0x60] sm:$0xff]
  %v2627 = vld [vmem:[#allocation2 + $0x68] sm:$0xff]
  %v2628 = vld [vmem:[#allocation2 + $0x70] sm:$0xff]
  %2641 = vrot.lane.b32.xlu0 %v2617, 109
  %v2642 = vpop.permute.xlu0 %2641
  %2643 = vrot.lane.b32.xlu0 %v2618, 109
  %v2644 = vpop.permute.xlu0 %2643
  %2645 = vrot.lane.b32.xlu0 %v2619, 109
  %v2646 = vpop.permute.xlu0 %2645
  %2647 = vrot.lane.b32.xlu0 %v2620, 109
  %v2648 = vpop.permute.xlu0 %2647
  %2649 = vrot.lane.b32.xlu0 %v2621, 109
  %v2650 = vpop.permute.xlu0 %2649
  %2651 = vrot.lane.b32.xlu0 %v2622, 109
  %v2652 = vpop.permute.xlu0 %2651
  %2653 = vrot.lane.b32.xlu0 %v2623, 109
  %v2654 = vpop.permute.xlu0 %2653
  %2655 = vrot.lane.b32.xlu0 %v2624, 109
  %v2656 = vpop.permute.xlu0 %2655
  %2657 = vrot.lane.b32.xlu0 %v2625, 109
  %v2658 = vpop.permute.xlu0 %2657
  %2659 = vrot.lane.b32.xlu0 %v2626, 109
  %v2660 = vpop.permute.xlu0 %2659
  %2661 = vrot.lane.b32.xlu0 %v2627, 109
  %v2662 = vpop.permute.xlu0 %2661
  %2663 = vrot.lane.b32.xlu0 %v2628, 109
  %v2664 = vpop.permute.xlu0 %2663
  %v2665 = vsel %vm773, %v2642, %v2644
  %v2666 = vsel %vm773, %v2644, %v2646
  %v2667 = vsel %vm773, %v2646, %v2648
  %v2668 = vsel %vm773, %v2648, %v2650
  %v2669 = vsel %vm773, %v2650, %v2652
  %v2670 = vsel %vm773, %v2654, %v2656
  %v2671 = vsel %vm773, %v2656, %v2658
  %v2672 = vsel %vm773, %v2658, %v2660
  %v2673 = vsel %vm773, %v2660, %v2662
  %v2674 = vsel %vm773, %v2662, %v2664
  %2687 = vst [vmem:[#allocation3 + $0x120] sm:$0xff] %v2665
  %2688 = vst [vmem:[#allocation3 + $0x128] sm:$0xff] %v2666
  %2689 = vst [vmem:[#allocation3 + $0x130] sm:$0xff] %v2667
  %2690 = vst [vmem:[#allocation3 + $0x138] sm:$0xff] %v2668
  %2691 = vst [vmem:[#allocation3 + $0x140] sm:$0xff] %v2669
  %2692 = vst.msk [vmem:[#allocation3 + $0x148] sm:$0xff] %vm47, %v2652
  %2693 = vst [vmem:[#allocation3 + $0x150] sm:$0xff] %v2670
  %2694 = vst [vmem:[#allocation3 + $0x158] sm:$0xff] %v2671
  %2695 = vst [vmem:[#allocation3 + $0x160] sm:$0xff] %v2672
  %2696 = vst [vmem:[#allocation3 + $0x168] sm:$0xff] %v2673
  %2697 = vst [vmem:[#allocation3 + $0x170] sm:$0xff] %v2674
  %2698 = vst.msk [vmem:[#allocation3 + $0x178] sm:$0xff] %vm47, %v2664
  %v2699 = vld [vmem:[%s4] sm:$0xff]
  %v2700 = vld [vmem:[#allocation3] sm:$0xff]
  %v2701 = vld [vmem:[#allocation3 + $0x8] sm:$0xff]
  %v2702 = vld [vmem:[#allocation3 + $0x10] sm:$0xff]
  %v2703 = vld [vmem:[#allocation3 + $0x18] sm:$0xff]
  %v2704 = vld [vmem:[#allocation3 + $0x20] sm:$0xff]
  %v2705 = vld [vmem:[#allocation3 + $0x28] sm:$0xff]
  %v2706 = vld [vmem:[#allocation3 + $0x30] sm:$0xff]
  %v2707 = vld [vmem:[#allocation3 + $0x38] sm:$0xff]
  %v2708 = vld [vmem:[#allocation3 + $0x40] sm:$0xff]
  %v2709 = vld [vmem:[#allocation3 + $0x48] sm:$0xff]
  %v2710 = vld [vmem:[#allocation3 + $0x50] sm:$0xff]
  %v2711 = vld [vmem:[#allocation3 + $0x58] sm:$0xff]
  %v2712 = vld [vmem:[#allocation3 + $0x60] sm:$0xff]
  %v2713 = vld [vmem:[#allocation3 + $0x68] sm:$0xff]
  %v2714 = vld [vmem:[#allocation3 + $0x70] sm:$0xff]
  %v2715 = vld [vmem:[#allocation3 + $0x78] sm:$0xff]
  %v2716 = vld [vmem:[#allocation3 + $0x80] sm:$0xff]
  %v2717 = vld [vmem:[#allocation3 + $0x88] sm:$0xff]
  %v2718 = vld [vmem:[#allocation3 + $0x90] sm:$0xff]
  %v2719 = vld [vmem:[#allocation3 + $0x98] sm:$0xff]
  %v2720 = vld [vmem:[#allocation3 + $0xa0] sm:$0xff]
  %v2721 = vld [vmem:[#allocation3 + $0xa8] sm:$0xff]
  %v2722 = vld [vmem:[#allocation3 + $0xb0] sm:$0xff]
  %v2723 = vld [vmem:[#allocation3 + $0xb8] sm:$0xff]
  %v2724 = vld [vmem:[#allocation3 + $0xc0] sm:$0xff]
  %v2725 = vld [vmem:[#allocation3 + $0xc8] sm:$0xff]
  %v2726 = vld [vmem:[#allocation3 + $0xd0] sm:$0xff]
  %v2727 = vld [vmem:[#allocation3 + $0xd8] sm:$0xff]
  %v2728 = vld [vmem:[#allocation3 + $0xe0] sm:$0xff]
  %v2729 = vld [vmem:[#allocation3 + $0xe8] sm:$0xff]
  %v2730 = vld [vmem:[#allocation3 + $0xf0] sm:$0xff]
  %v2731 = vld [vmem:[#allocation3 + $0xf8] sm:$0xff]
  %v2732 = vld [vmem:[#allocation3 + $0x100] sm:$0xff]
  %v2733 = vld [vmem:[#allocation3 + $0x108] sm:$0xff]
  %v2734 = vld [vmem:[#allocation3 + $0x110] sm:$0xff]
  %v2735 = vld [vmem:[#allocation3 + $0x118] sm:$0xff]
  %v2736 = vld [vmem:[#allocation3 + $0x120] sm:$0xff]
  %v2737 = vld [vmem:[#allocation3 + $0x128] sm:$0xff]
  %v2738 = vld [vmem:[#allocation3 + $0x130] sm:$0xff]
  %v2739 = vld [vmem:[#allocation3 + $0x138] sm:$0xff]
  %v2740 = vld [vmem:[#allocation3 + $0x140] sm:$0xff]
  %v2741 = vld [vmem:[#allocation3 + $0x148] sm:$0xff]
  %v2742 = vld [vmem:[#allocation3 + $0x150] sm:$0xff]
  %v2743 = vld [vmem:[#allocation3 + $0x158] sm:$0xff]
  %v2744 = vld [vmem:[#allocation3 + $0x160] sm:$0xff]
  %v2745 = vld [vmem:[#allocation3 + $0x168] sm:$0xff]
  %v2746 = vld [vmem:[#allocation3 + $0x170] sm:$0xff]
  %v2747 = vld [vmem:[#allocation3 + $0x178] sm:$0xff]
  %v2748 = vld [vmem:[%s7] sm:$0xff]
  %2750 = vset.pattern.permute.xlu0 0
  %2751 = vperm.xlu0 %2750, %v2748
  %v2752 = vpop.permute.xlu0 %2751
  %vm2754 = vcmask 523264
  %v2756 = vsel %vm2754, %v2699, 0
  %2758 = vmatpush.msra.mxu0 0.0
  %2759 = vmatpush.msra.mxu0 0.0
  %2760 = vmatpush.msra.mxu0 0.0
  %2761 = vmatpush.msra.mxu0 0.0
  %2762 = vmatpush.msra.mxu0 0.0
  %2763 = vmatpush.msra.mxu0 0.0
  %2764 = vmatpush.msra.mxu0 0.0
  %2765 = vmatpush.msra.mxu0 0.0
  %2766 = vmatpush.msra.mxu0 %v2742
  %2767 = vmatpush.msra.mxu0 %v2736
  %2768 = vmatpush.msra.mxu0 %v2730
  %2769 = vmatpush.msra.mxu0 %v2724
  %2770 = vmatpush.msra.mxu0 %v2718
  %2771 = vmatpush.msra.mxu0 %v2712
  %2772 = vmatpush.msra.mxu0 %v2706
  %2773 = vmatpush.msra.mxu0 %v2700
  %2774 = vmatmul.f32.gmra.mxu0 %v2756
  %v2775 = vpop.f32.mrf.mxu0
  %v2776 = vadd.f32 %v2752, %v2775
  %2777 = vdwg.mxu0
  %2778 = vmatpush.msra.mxu0 0.0
  %2779 = vmatpush.msra.mxu0 0.0
  %2780 = vmatpush.msra.mxu0 0.0
  %2781 = vmatpush.msra.mxu0 0.0
  %2782 = vmatpush.msra.mxu0 0.0
  %2783 = vmatpush.msra.mxu0 0.0
  %2784 = vmatpush.msra.mxu0 0.0
  %2785 = vmatpush.msra.mxu0 0.0
  %2786 = vmatpush.msra.mxu0 %v2743
  %2787 = vmatpush.msra.mxu0 %v2737
  %2788 = vmatpush.msra.mxu0 %v2731
  %2789 = vmatpush.msra.mxu0 %v2725
  %2790 = vmatpush.msra.mxu0 %v2719
  %2791 = vmatpush.msra.mxu0 %v2713
  %2792 = vmatpush.msra.mxu0 %v2707
  %2793 = vmatpush.msra.mxu0 %v2701
  %2794 = vmatmul.f32.gmra.mxu0 %v2756
  %v2795 = vpop.f32.mrf.mxu0
  %v2796 = vadd.f32 %v2752, %v2795
  %2797 = vdwg.mxu0
  %2798 = vmatpush.msra.mxu0 0.0
  %2799 = vmatpush.msra.mxu0 0.0
  %2800 = vmatpush.msra.mxu0 0.0
  %2801 = vmatpush.msra.mxu0 0.0
  %2802 = vmatpush.msra.mxu0 0.0
  %2803 = vmatpush.msra.mxu0 0.0
  %2804 = vmatpush.msra.mxu0 0.0
  %2805 = vmatpush.msra.mxu0 0.0
  %2806 = vmatpush.msra.mxu0 %v2744
  %2807 = vmatpush.msra.mxu0 %v2738
  %2808 = vmatpush.msra.mxu0 %v2732
  %2809 = vmatpush.msra.mxu0 %v2726
  %2810 = vmatpush.msra.mxu0 %v2720
  %2811 = vmatpush.msra.mxu0 %v2714
  %2812 = vmatpush.msra.mxu0 %v2708
  %2813 = vmatpush.msra.mxu0 %v2702
  %2814 = vmatmul.f32.gmra.mxu0 %v2756
  %v2815 = vpop.f32.mrf.mxu0
  %v2816 = vadd.f32 %v2752, %v2815
  %2817 = vdwg.mxu0
  %2818 = vmatpush.msra.mxu0 0.0
  %2819 = vmatpush.msra.mxu0 0.0
  %2820 = vmatpush.msra.mxu0 0.0
  %2821 = vmatpush.msra.mxu0 0.0
  %2822 = vmatpush.msra.mxu0 0.0
  %2823 = vmatpush.msra.mxu0 0.0
  %2824 = vmatpush.msra.mxu0 0.0
  %2825 = vmatpush.msra.mxu0 0.0
  %2826 = vmatpush.msra.mxu0 %v2745
  %2827 = vmatpush.msra.mxu0 %v2739
  %2828 = vmatpush.msra.mxu0 %v2733
  %2829 = vmatpush.msra.mxu0 %v2727
  %2830 = vmatpush.msra.mxu0 %v2721
  %2831 = vmatpush.msra.mxu0 %v2715
  %2832 = vmatpush.msra.mxu0 %v2709
  %2833 = vmatpush.msra.mxu0 %v2703
  %2834 = vmatmul.f32.gmra.mxu0 %v2756
  %v2835 = vpop.f32.mrf.mxu0
  %v2836 = vadd.f32 %v2752, %v2835
  %2837 = vdwg.mxu0
  %2838 = vmatpush.msra.mxu0 0.0
  %2839 = vmatpush.msra.mxu0 0.0
  %2840 = vmatpush.msra.mxu0 0.0
  %2841 = vmatpush.msra.mxu0 0.0
  %2842 = vmatpush.msra.mxu0 0.0
  %2843 = vmatpush.msra.mxu0 0.0
  %2844 = vmatpush.msra.mxu0 0.0
  %2845 = vmatpush.msra.mxu0 0.0
  %2846 = vmatpush.msra.mxu0 %v2746
  %2847 = vmatpush.msra.mxu0 %v2740
  %2848 = vmatpush.msra.mxu0 %v2734
  %2849 = vmatpush.msra.mxu0 %v2728
  %2850 = vmatpush.msra.mxu0 %v2722
  %2851 = vmatpush.msra.mxu0 %v2716
  %2852 = vmatpush.msra.mxu0 %v2710
  %2853 = vmatpush.msra.mxu0 %v2704
  %2854 = vmatmul.f32.gmra.mxu0 %v2756
  %v2855 = vpop.f32.mrf.mxu0
  %v2856 = vadd.f32 %v2752, %v2855
  %2857 = vdwg.mxu0
  %2858 = vmatpush.msra.mxu0 0.0
  %2859 = vmatpush.msra.mxu0 0.0
  %2860 = vmatpush.msra.mxu0 0.0
  %2861 = vmatpush.msra.mxu0 0.0
  %2862 = vmatpush.msra.mxu0 0.0
  %2863 = vmatpush.msra.mxu0 0.0
  %2864 = vmatpush.msra.mxu0 0.0
  %2865 = vmatpush.msra.mxu0 0.0
  %2866 = vmatpush.msra.mxu0 %v2747
  %2867 = vmatpush.msra.mxu0 %v2741
  %2868 = vmatpush.msra.mxu0 %v2735
  %2869 = vmatpush.msra.mxu0 %v2729
  %2870 = vmatpush.msra.mxu0 %v2723
  %2871 = vmatpush.msra.mxu0 %v2717
  %2872 = vmatpush.msra.mxu0 %v2711
  %2873 = vmatpush.msra.mxu0 %v2705
  %2874 = vmatmul.f32.gmra.mxu0 %v2756
  %v2875 = vpop.f32.mrf.mxu0
  %v2876 = vadd.f32 %v2752, %v2875
  %2877 = vdwg.mxu0
  %2878 = vst [vmem:[%s13] sm:$0xff] %v2776
  %2879 = vst [vmem:[%s13 + $0x8] sm:$0xff] %v2796
  %2880 = vst [vmem:[%s13 + $0x10] sm:$0xff] %v2816
  %2881 = vst [vmem:[%s13 + $0x18] sm:$0xff] %v2836
  %2882 = vst [vmem:[%s13 + $0x20] sm:$0xff] %v2856
  %2883 = vst.msk [vmem:[%s13 + $0x28] sm:$0xff] %vm47, %v2876
  // Predicated region
  $region50: #{down_block_forward.1} parent=0 // pred_check
    _
  $region51: #{down_block_forward.1} parent=0 // pred_check_branch
    %2885 = sbr.rel (0) target = $region53
  $region52: #{down_block_forward.1} parent=0 // pred_region
    _
  $region53: #{down_block_forward.1} parent=0 // pred_fallthru
    _
  // Predicated region
  $region54: #{down_block_forward.1} parent=0 // pred_check
    _
  $region55: #{down_block_forward.1} parent=0 // pred_check_branch
    %2887 = sbr.rel (0) target = $region57
  $region56: #{down_block_forward.1} parent=0 // pred_region
    _
  $region57: #{down_block_forward.1} parent=0 // pred_fallthru
    _
  // Predicated region
  $region58: #{down_block_forward.1} parent=0 // pred_check
    _
  $region59: #{down_block_forward.1} parent=0 // pred_check_branch
    %2889 = sbr.rel (0) target = $region61
  $region60: #{down_block_forward.1} parent=0 // pred_region
    _
  $region61: #{down_block_forward.1} parent=0 // pred_fallthru
    _
  // Predicated region
  $region62: #{down_block_forward.1} parent=0 // pred_check
    _
  $region63: #{down_block_forward.1} parent=0 // pred_check_branch
    %2891 = sbr.rel (0) target = $region65
  $region64: #{down_block_forward.1} parent=0 // pred_region
    _
  $region65: #{down_block_forward.1} parent=0 // pred_fallthru
    _

</llo_original>
